<compile_context>
chip_gen: v6e
topology: v6e:2x2x1
jax: 0.10.0
libtpu: 0.0.40
codegen_flags: <defaults>
</compile_context>

<pallas_src>
import jax
import jax.numpy as jnp
import numpy as np
from jax.experimental import pallas as pl
from jax.experimental.pallas import tpu as pltpu


# ---------------------------------------------------------------------------
# Fused kernel: [1x1 conv + folded BN + ReLU] -> VMEM -> [3x3 conv + BN + ReLU]
# ---------------------------------------------------------------------------
def fused_double_conv_kernel(x_ref, w1_ref, b1_ref, w2_ref, b2_ref, o_ref,
                             y1p_ref):
    # x_ref : (H, W, Cin)         one image (batch dim squeezed via None block)
    # w1_ref: (Cin, Cmid)         1x1 conv weight, BN scale pre-folded
    # b1_ref: (1, Cmid)           folded conv-bias + BN bias
    # w2_ref: (3, 3, Cmid, Cout)  3x3 conv weight, BN scale pre-folded
    # b2_ref: (1, 1, Cout)        folded conv-bias + BN bias
    # o_ref : (H, W, Cout)
    # y1p_ref: VMEM scratch (H+2, W+2, Cmid) -- padded stage-1 activation,
    #          lives only in VMEM (no HBM intermediate, no jnp.pad copy).
    H, W, cout = o_ref.shape
    cin = x_ref.shape[-1]
    cmid = w1_ref.shape[-1]

    # ---- stage 1: 1x1 conv (+ folded BN) + ReLU -> padded VMEM scratch -----
    # (H, W, Cin) -> (H*W, Cin) merges leading (non-lane) dims only: a free
    # relabeling, no relayout.  One MXU matmul for the whole image.
    x2d = x_ref[...].reshape(H * W, cin)
    y1 = jnp.dot(x2d, w1_ref[...], preferred_element_type=jnp.float32)
    y1 = jnp.maximum(y1 + b1_ref[...], 0.0)

    # Zero the scratch (halo included) every grid step: per-core scratch under
    # "parallel" sharding means a program_id==0 guard is unsafe (see header).
    y1p_ref[...] = jnp.zeros(y1p_ref.shape, y1p_ref.dtype)
    y1p_ref[pl.ds(1, H), pl.ds(1, W), :] = y1.reshape(H, W, cmid)

    # ---- stage 2: 3x3 conv (pad=1, 9 shifted matmuls) + folded BN + ReLU ---
    w2 = w2_ref[...]            # hoist weight/bias loads out of the tap loop
    b2 = b2_ref[...]
    # Accumulator kept in vregs: (H, W, Cout) f32 is small at one image/tile.
    # TODO(synk): for large row blocks, accumulate into a VMEM scratch instead.
    acc = None
    for dw in range(3):
        # One sublane-shifted column slice per dw, reused across the 3 dh taps
        # (3 scratch reads total instead of 9).
        xcol = y1p_ref[:, dw:dw + W, :]          # (H+2, W, Cmid)
        for dh in range(3):
            patch = xcol[dh:dh + H]              # cheap slice on the major dim
            tap = jax.lax.dot_general(
                patch, w2[dh, dw],
                dimension_numbers=(((2,), (0,)), ((), ())),
                preferred_element_type=jnp.float32)
            acc = tap if acc is None else acc + tap
    o_ref[...] = jnp.maximum(acc + b2, 0.0).astype(o_ref.dtype)


def double_conv_pallas(x_nhwc, w1, b1, w2, b2):
    # x_nhwc: (N, H, W, Cin); w1: (Cin, Cmid); w2: (3, 3, Cmid, Cout)
    N, H, W, cin = x_nhwc.shape
    cmid = w1.shape[1]
    cout = w2.shape[-1]
    return pl.pallas_call(
        fused_double_conv_kernel,
        out_shape=jax.ShapeDtypeStruct((N, H, W, cout), x_nhwc.dtype),
        grid_spec=pltpu.PrefetchScalarGridSpec(
            num_scalar_prefetch=0,
            grid=(N,),
            in_specs=[
                pl.BlockSpec((None, H, W, cin), lambda n: (n, 0, 0, 0)),
                pl.BlockSpec((cin, cmid), lambda n: (0, 0)),
                pl.BlockSpec((1, cmid), lambda n: (0, 0)),
                pl.BlockSpec((3, 3, cmid, cout), lambda n: (0, 0, 0, 0)),
                pl.BlockSpec((1, 1, cout), lambda n: (0, 0, 0)),
            ],
            out_specs=pl.BlockSpec((None, H, W, cout), lambda n: (n, 0, 0, 0)),
            scratch_shapes=[pltpu.VMEM((H + 2, W + 2, cmid), jnp.float32)],
        ),
        compiler_params=pltpu.CompilerParams(
            dimension_semantics=("parallel",),
            vmem_limit_bytes=32 * 1024 * 1024,
        ),
    )(x_nhwc, w1, b1[None, :], w2, b2[None, None, :])


# ---------------------------------------------------------------------------
# Parameter construction (deterministic) + BN folding into the conv weights
# ---------------------------------------------------------------------------
def init_params(key, in_ch, mid_ch, out_ch, eps=1e-5):
    k = jax.random.split(key, 8)
    cin1 = in_ch + mid_ch
    raw = dict(
        w1=jax.random.normal(k[0], (cin1, mid_ch), jnp.float32) * 0.1,
        b1=jax.random.normal(k[1], (mid_ch,), jnp.float32) * 0.1,
        g1=1.0 + 0.1 * jax.random.normal(k[2], (mid_ch,), jnp.float32),
        beta1=0.1 * jax.random.normal(k[3], (mid_ch,), jnp.float32),
        w2=jax.random.normal(k[4], (3, 3, mid_ch, out_ch), jnp.float32) * 0.1,
        b2=jax.random.normal(k[5], (out_ch,), jnp.float32) * 0.1,
        g2=1.0 + 0.1 * jax.random.normal(k[6], (out_ch,), jnp.float32),
        beta2=0.1 * jax.random.normal(k[7], (out_ch,), jnp.float32),
    )
    # Eval-mode BN (running_mean=0, running_var=1): scale folded into weights,
    # conv-bias + BN shift folded into a single per-channel bias.
    s1 = raw["g1"] / jnp.sqrt(1.0 + eps)
    s2 = raw["g2"] / jnp.sqrt(1.0 + eps)
    folded = dict(
        w1=raw["w1"] * s1[None, :],
        b1=s1 * raw["b1"] + raw["beta1"],
        w2=raw["w2"] * s2[None, None, None, :],
        b2=s2 * raw["b2"] + raw["beta2"],
    )
    return raw, folded


# ---------------------------------------------------------------------------
# Forward (wrapper): NCHW in, NCHW out (PyTorch interface parity)
# ---------------------------------------------------------------------------
@jax.jit
def double_conv_forward(x_nchw, folded):
    x_nhwc = jnp.transpose(x_nchw, (0, 2, 3, 1))      # NCHW -> NHWC
    y = double_conv_pallas(x_nhwc, folded["w1"], folded["b1"],
                           folded["w2"], folded["b2"])
    return jnp.transpose(y, (0, 3, 1, 2))              # NHWC -> NCHW


# ---------------------------------------------------------------------------
# Pure-JAX reference (XLA convs + explicit eval-mode BN) for a sanity check
# ---------------------------------------------------------------------------
def reference_forward(x_nchw, raw, eps=1e-5):
    w1_oihw = jnp.transpose(raw["w1"], (1, 0))[:, :, None, None]   # (Cmid,Cin,1,1)
    w2_oihw = jnp.transpose(raw["w2"], (3, 2, 0, 1))               # (Cout,Cmid,3,3)
    dn = ("NCHW", "OIHW", "NCHW")
    y = jax.lax.conv_general_dilated(x_nchw, w1_oihw, (1, 1), "VALID",
                                     dimension_numbers=dn)
    y = y + raw["b1"][None, :, None, None]
    y = (raw["g1"][None, :, None, None] * y / jnp.sqrt(1.0 + eps)
         + raw["beta1"][None, :, None, None])
    y = jnp.maximum(y, 0.0)
    y = jax.lax.conv_general_dilated(y, w2_oihw, (1, 1), ((1, 1), (1, 1)),
                                     dimension_numbers=dn)
    y = y + raw["b2"][None, :, None, None]
    y = (raw["g2"][None, :, None, None] * y / jnp.sqrt(1.0 + eps)
         + raw["beta2"][None, :, None, None])
    return jnp.maximum(y, 0.0)


if __name__ == "__main__":
    key = jax.random.PRNGKey(0)
    k_x, k_p = jax.random.split(key)

    in_ch, mid_ch, out_ch = 4, 4, 8
    N, H, W = 2, 16, 16
    C = in_ch + mid_ch                  # Conv2d expects in_ch + mid_ch channels

    x = jax.random.normal(k_x, (N, C, H, W), jnp.float32)
    raw, folded = init_params(k_p, in_ch, mid_ch, out_ch)

    out = jax.block_until_ready(double_conv_forward(x, folded))
    ref = jax.block_until_ready(reference_forward(x, raw))
    np.testing.assert_allclose(np.asarray(out), np.asarray(ref),
                               rtol=1e-4, atol=1e-4)
    assert out.shape == (N, out_ch, H, W)

    print("KERNEL_OK")
</pallas_src>

<mosaic_0001>
module attributes {stable_mosaic.version = 11 : i64} {
  func.func @fused_double_conv_kernel(%arg0: i32, %arg1: memref<1x16x16x8xf32, #tpu.memory_space<vmem>>, %arg2: memref<8x4xf32, #tpu.memory_space<vmem>>, %arg3: memref<1x4xf32, #tpu.memory_space<vmem>>, %arg4: memref<3x3x4x8xf32, #tpu.memory_space<vmem>>, %arg5: memref<1x1x8xf32, #tpu.memory_space<vmem>>, %arg6: memref<1x16x16x8xf32, #tpu.memory_space<vmem>>, %arg7: memref<18x18x4xf32, #tpu.memory_space<vmem>>) attributes {dimension_semantics = [#tpu.dimension_semantics<parallel>], iteration_bounds = array<i64: 2>, scalar_prefetch = 0 : i64, scratch_operands = 1 : i64, tpu.core_type = #tpu.core_type<tc>, window_params = [{transform_indices = @transform_0, window_bounds = array<i64: 1, 16, 16, 8>}, {pipeline_mode = #tpu.pipeline_mode<synchronous>, transform_indices = @transform_1, window_bounds = array<i64: 8, 4>}, {pipeline_mode = #tpu.pipeline_mode<synchronous>, transform_indices = @transform_2, window_bounds = array<i64: 1, 4>}, {pipeline_mode = #tpu.pipeline_mode<synchronous>, transform_indices = @transform_3, window_bounds = array<i64: 3, 3, 4, 8>}, {pipeline_mode = #tpu.pipeline_mode<synchronous>, transform_indices = @transform_4, window_bounds = array<i64: 1, 1, 8>}, {transform_indices = @transform_5, window_bounds = array<i64: 1, 16, 16, 8>}]} {
    %c0 = arith.constant 0 : index
    %c0_0 = arith.constant 0 : index
    %c0_1 = arith.constant 0 : index
    %c0_2 = arith.constant 0 : index
    %0 = vector.load %arg1[%c0, %c0_0, %c0_1, %c0_2] : memref<1x16x16x8xf32, #tpu.memory_space<vmem>>, vector<1x16x16x8xf32>
    %1 = vector.shape_cast %0 : vector<1x16x16x8xf32> to vector<16x16x8xf32>
    %2 = vector.shape_cast %1 : vector<16x16x8xf32> to vector<256x8xf32>
    %c0_3 = arith.constant 0 : index
    %c0_4 = arith.constant 0 : index
    %3 = vector.load %arg2[%c0_3, %c0_4] : memref<8x4xf32, #tpu.memory_space<vmem>>, vector<8x4xf32>
    %cst = arith.constant dense<0.000000e+00> : vector<256x4xf32>
    %4 = tpu.matmul %2, %3, %cst {dimension_numbers = #tpu.dot_dimension_numbers<[1], [0], [0], [1], [0, 0, 1, 1], [], []>} : vector<256x8xf32>, vector<8x4xf32>, vector<256x4xf32> -> vector<256x4xf32>
    %c0_5 = arith.constant 0 : index
    %c0_6 = arith.constant 0 : index
    %5 = vector.load %arg3[%c0_5, %c0_6] : memref<1x4xf32, #tpu.memory_space<vmem>>, vector<1x4xf32>
    %6 = vector.broadcast %5 : vector<1x4xf32> to vector<256x4xf32>
    %7 = arith.addf %4, %6 : vector<256x4xf32>
    %cst_7 = arith.constant 0.000000e+00 : f32
    %8 = vector.broadcast %cst_7 : f32 to vector<256x4xf32>
    %9 = arith.maximumf %7, %8 : vector<256x4xf32>
    %cst_8 = arith.constant 0.000000e+00 : f32
    %10 = vector.broadcast %cst_8 : f32 to vector<18x18x4xf32>
    %c0_9 = arith.constant 0 : index
    %c0_10 = arith.constant 0 : index
    %c0_11 = arith.constant 0 : index
    %11 = vector.load %arg7[%c0_9, %c0_10, %c0_11] : memref<18x18x4xf32, #tpu.memory_space<vmem>>, vector<18x18x4xf32>
    tpu.vector_store %arg7[%c0_9, %c0_10, %c0_11], %10 {strides = array<i32>} : memref<18x18x4xf32, #tpu.memory_space<vmem>>, vector<18x18x4xf32>,
    %12 = vector.shape_cast %9 : vector<256x4xf32> to vector<16x16x4xf32>
    %c1 = arith.constant 1 : index
    %c1_12 = arith.constant 1 : index
    %c0_13 = arith.constant 0 : index
    %13 = vector.load %arg7[%c1, %c1_12, %c0_13] : memref<18x18x4xf32, #tpu.memory_space<vmem>>, vector<16x16x4xf32>
    tpu.vector_store %arg7[%c1, %c1_12, %c0_13], %12 {strides = array<i32>} : memref<18x18x4xf32, #tpu.memory_space<vmem>>, vector<16x16x4xf32>,
    %c0_14 = arith.constant 0 : index
    %c0_15 = arith.constant 0 : index
    %c0_16 = arith.constant 0 : index
    %c0_17 = arith.constant 0 : index
    %14 = vector.load %arg4[%c0_14, %c0_15, %c0_16, %c0_17] : memref<3x3x4x8xf32, #tpu.memory_space<vmem>>, vector<3x3x4x8xf32>
    %c0_18 = arith.constant 0 : index
    %c0_19 = arith.constant 0 : index
    %c0_20 = arith.constant 0 : index
    %15 = vector.load %arg5[%c0_18, %c0_19, %c0_20] : memref<1x1x8xf32, #tpu.memory_space<vmem>>, vector<1x1x8xf32>
    %c0_21 = arith.constant 0 : index
    %c0_22 = arith.constant 0 : index
    %c0_23 = arith.constant 0 : index
    %16 = vector.load %arg7[%c0_21, %c0_22, %c0_23] : memref<18x18x4xf32, #tpu.memory_space<vmem>>, vector<18x16x4xf32>
    %17 = vector.extract_strided_slice %16 {offsets = [0, 0, 0], sizes = [16, 16, 4], strides = [1, 1, 1]} : vector<18x16x4xf32> to vector<16x16x4xf32>
    %18 = vector.extract_strided_slice %14 {offsets = [0, 0, 0, 0], sizes = [1, 1, 4, 8], strides = [1, 1, 1, 1]} : vector<3x3x4x8xf32> to vector<1x1x4x8xf32>
    %19 = vector.shape_cast %18 : vector<1x1x4x8xf32> to vector<4x8xf32>
    %cst_24 = arith.constant dense<0.000000e+00> : vector<16x16x8xf32>
    %20 = tpu.matmul %17, %19, %cst_24 {dimension_numbers = #tpu.dot_dimension_numbers<[2], [0], [0, 1], [1], [0, 0, 0, 1, 1, 1], [], []>} : vector<16x16x4xf32>, vector<4x8xf32>, vector<16x16x8xf32> -> vector<16x16x8xf32>
    %21 = vector.extract_strided_slice %16 {offsets = [1, 0, 0], sizes = [16, 16, 4], strides = [1, 1, 1]} : vector<18x16x4xf32> to vector<16x16x4xf32>
    %22 = vector.extract_strided_slice %14 {offsets = [1, 0, 0, 0], sizes = [1, 1, 4, 8], strides = [1, 1, 1, 1]} : vector<3x3x4x8xf32> to vector<1x1x4x8xf32>
    %23 = vector.shape_cast %22 : vector<1x1x4x8xf32> to vector<4x8xf32>
    %cst_25 = arith.constant dense<0.000000e+00> : vector<16x16x8xf32>
    %24 = tpu.matmul %21, %23, %cst_25 {dimension_numbers = #tpu.dot_dimension_numbers<[2], [0], [0, 1], [1], [0, 0, 0, 1, 1, 1], [], []>} : vector<16x16x4xf32>, vector<4x8xf32>, vector<16x16x8xf32> -> vector<16x16x8xf32>
    %25 = arith.addf %20, %24 : vector<16x16x8xf32>
    %26 = vector.extract_strided_slice %16 {offsets = [2, 0, 0], sizes = [16, 16, 4], strides = [1, 1, 1]} : vector<18x16x4xf32> to vector<16x16x4xf32>
    %27 = vector.extract_strided_slice %14 {offsets = [2, 0, 0, 0], sizes = [1, 1, 4, 8], strides = [1, 1, 1, 1]} : vector<3x3x4x8xf32> to vector<1x1x4x8xf32>
    %28 = vector.shape_cast %27 : vector<1x1x4x8xf32> to vector<4x8xf32>
    %cst_26 = arith.constant dense<0.000000e+00> : vector<16x16x8xf32>
    %29 = tpu.matmul %26, %28, %cst_26 {dimension_numbers = #tpu.dot_dimension_numbers<[2], [0], [0, 1], [1], [0, 0, 0, 1, 1, 1], [], []>} : vector<16x16x4xf32>, vector<4x8xf32>, vector<16x16x8xf32> -> vector<16x16x8xf32>
    %30 = arith.addf %25, %29 : vector<16x16x8xf32>
    %c0_27 = arith.constant 0 : index
    %c1_28 = arith.constant 1 : index
    %c0_29 = arith.constant 0 : index
    %31 = vector.load %arg7[%c0_27, %c1_28, %c0_29] : memref<18x18x4xf32, #tpu.memory_space<vmem>>, vector<18x16x4xf32>
    %32 = vector.extract_strided_slice %31 {offsets = [0, 0, 0], sizes = [16, 16, 4], strides = [1, 1, 1]} : vector<18x16x4xf32> to vector<16x16x4xf32>
    %33 = vector.extract_strided_slice %14 {offsets = [0, 1, 0, 0], sizes = [1, 1, 4, 8], strides = [1, 1, 1, 1]} : vector<3x3x4x8xf32> to vector<1x1x4x8xf32>
    %34 = vector.shape_cast %33 : vector<1x1x4x8xf32> to vector<4x8xf32>
    %cst_30 = arith.constant dense<0.000000e+00> : vector<16x16x8xf32>
    %35 = tpu.matmul %32, %34, %cst_30 {dimension_numbers = #tpu.dot_dimension_numbers<[2], [0], [0, 1], [1], [0, 0, 0, 1, 1, 1], [], []>} : vector<16x16x4xf32>, vector<4x8xf32>, vector<16x16x8xf32> -> vector<16x16x8xf32>
    %36 = arith.addf %30, %35 : vector<16x16x8xf32>
    %37 = vector.extract_strided_slice %31 {offsets = [1, 0, 0], sizes = [16, 16, 4], strides = [1, 1, 1]} : vector<18x16x4xf32> to vector<16x16x4xf32>
    %38 = vector.extract_strided_slice %14 {offsets = [1, 1, 0, 0], sizes = [1, 1, 4, 8], strides = [1, 1, 1, 1]} : vector<3x3x4x8xf32> to vector<1x1x4x8xf32>
    %39 = vector.shape_cast %38 : vector<1x1x4x8xf32> to vector<4x8xf32>
    %cst_31 = arith.constant dense<0.000000e+00> : vector<16x16x8xf32>
    %40 = tpu.matmul %37, %39, %cst_31 {dimension_numbers = #tpu.dot_dimension_numbers<[2], [0], [0, 1], [1], [0, 0, 0, 1, 1, 1], [], []>} : vector<16x16x4xf32>, vector<4x8xf32>, vector<16x16x8xf32> -> vector<16x16x8xf32>
    %41 = arith.addf %36, %40 : vector<16x16x8xf32>
    %42 = vector.extract_strided_slice %31 {offsets = [2, 0, 0], sizes = [16, 16, 4], strides = [1, 1, 1]} : vector<18x16x4xf32> to vector<16x16x4xf32>
    %43 = vector.extract_strided_slice %14 {offsets = [2, 1, 0, 0], sizes = [1, 1, 4, 8], strides = [1, 1, 1, 1]} : vector<3x3x4x8xf32> to vector<1x1x4x8xf32>
    %44 = vector.shape_cast %43 : vector<1x1x4x8xf32> to vector<4x8xf32>
    %cst_32 = arith.constant dense<0.000000e+00> : vector<16x16x8xf32>
    %45 = tpu.matmul %42, %44, %cst_32 {dimension_numbers = #tpu.dot_dimension_numbers<[2], [0], [0, 1], [1], [0, 0, 0, 1, 1, 1], [], []>} : vector<16x16x4xf32>, vector<4x8xf32>, vector<16x16x8xf32> -> vector<16x16x8xf32>
    %46 = arith.addf %41, %45 : vector<16x16x8xf32>
    %c0_33 = arith.constant 0 : index
    %c2 = arith.constant 2 : index
    %c0_34 = arith.constant 0 : index
    %47 = vector.load %arg7[%c0_33, %c2, %c0_34] : memref<18x18x4xf32, #tpu.memory_space<vmem>>, vector<18x16x4xf32>
    %48 = vector.extract_strided_slice %47 {offsets = [0, 0, 0], sizes = [16, 16, 4], strides = [1, 1, 1]} : vector<18x16x4xf32> to vector<16x16x4xf32>
    %49 = vector.extract_strided_slice %14 {offsets = [0, 2, 0, 0], sizes = [1, 1, 4, 8], strides = [1, 1, 1, 1]} : vector<3x3x4x8xf32> to vector<1x1x4x8xf32>
    %50 = vector.shape_cast %49 : vector<1x1x4x8xf32> to vector<4x8xf32>
    %cst_35 = arith.constant dense<0.000000e+00> : vector<16x16x8xf32>
    %51 = tpu.matmul %48, %50, %cst_35 {dimension_numbers = #tpu.dot_dimension_numbers<[2], [0], [0, 1], [1], [0, 0, 0, 1, 1, 1], [], []>} : vector<16x16x4xf32>, vector<4x8xf32>, vector<16x16x8xf32> -> vector<16x16x8xf32>
    %52 = arith.addf %46, %51 : vector<16x16x8xf32>
    %53 = vector.extract_strided_slice %47 {offsets = [1, 0, 0], sizes = [16, 16, 4], strides = [1, 1, 1]} : vector<18x16x4xf32> to vector<16x16x4xf32>
    %54 = vector.extract_strided_slice %14 {offsets = [1, 2, 0, 0], sizes = [1, 1, 4, 8], strides = [1, 1, 1, 1]} : vector<3x3x4x8xf32> to vector<1x1x4x8xf32>
    %55 = vector.shape_cast %54 : vector<1x1x4x8xf32> to vector<4x8xf32>
    %cst_36 = arith.constant dense<0.000000e+00> : vector<16x16x8xf32>
    %56 = tpu.matmul %53, %55, %cst_36 {dimension_numbers = #tpu.dot_dimension_numbers<[2], [0], [0, 1], [1], [0, 0, 0, 1, 1, 1], [], []>} : vector<16x16x4xf32>, vector<4x8xf32>, vector<16x16x8xf32> -> vector<16x16x8xf32>
    %57 = arith.addf %52, %56 : vector<16x16x8xf32>
    %58 = vector.extract_strided_slice %47 {offsets = [2, 0, 0], sizes = [16, 16, 4], strides = [1, 1, 1]} : vector<18x16x4xf32> to vector<16x16x4xf32>
    %59 = vector.extract_strided_slice %14 {offsets = [2, 2, 0, 0], sizes = [1, 1, 4, 8], strides = [1, 1, 1, 1]} : vector<3x3x4x8xf32> to vector<1x1x4x8xf32>
    %60 = vector.shape_cast %59 : vector<1x1x4x8xf32> to vector<4x8xf32>
    %cst_37 = arith.constant dense<0.000000e+00> : vector<16x16x8xf32>
    %61 = tpu.matmul %58, %60, %cst_37 {dimension_numbers = #tpu.dot_dimension_numbers<[2], [0], [0, 1], [1], [0, 0, 0, 1, 1, 1], [], []>} : vector<16x16x4xf32>, vector<4x8xf32>, vector<16x16x8xf32> -> vector<16x16x8xf32>
    %62 = arith.addf %57, %61 : vector<16x16x8xf32>
    %63 = vector.broadcast %15 : vector<1x1x8xf32> to vector<16x16x8xf32>
    %64 = arith.addf %62, %63 : vector<16x16x8xf32>
    %cst_38 = arith.constant 0.000000e+00 : f32
    %65 = vector.broadcast %cst_38 : f32 to vector<16x16x8xf32>
    %66 = arith.maximumf %64, %65 : vector<16x16x8xf32>
    %c0_39 = arith.constant 0 : index
    %c0_40 = arith.constant 0 : index
    %c0_41 = arith.constant 0 : index
    %c0_42 = arith.constant 0 : index
    %67 = vector.load %arg6[%c0_39, %c0_40, %c0_41, %c0_42] : memref<1x16x16x8xf32, #tpu.memory_space<vmem>>, vector<1x16x16x8xf32>
    %68 = vector.shape_cast %67 : vector<1x16x16x8xf32> to vector<16x16x8xf32>
    %69 = vector.shape_cast %66 : vector<16x16x8xf32> to vector<1x16x16x8xf32>
    tpu.vector_store %arg6[%c0_39, %c0_40, %c0_41, %c0_42], %69 {strides = array<i32>} : memref<1x16x16x8xf32, #tpu.memory_space<vmem>>, vector<1x16x16x8xf32>,
    return
  }
  func.func @transform_0(%arg0: i32) -> (i32, i32, i32, i32) {
    %c0_i32 = arith.constant 0 : i32
    %c0_i32_0 = arith.constant 0 : i32
    %c0_i32_1 = arith.constant 0 : i32
    %c0_i32_2 = arith.constant 0 : i32
    return %arg0, %c0_i32, %c0_i32_0, %c0_i32_1 : i32, i32, i32, i32
  }
  func.func @transform_1(%arg0: i32) -> (i32, i32) {
    %c0_i32 = arith.constant 0 : i32
    %c0_i32_0 = arith.constant 0 : i32
    %c0_i32_1 = arith.constant 0 : i32
    return %c0_i32, %c0_i32_0 : i32, i32
  }
  func.func @transform_2(%arg0: i32) -> (i32, i32) {
    %c0_i32 = arith.constant 0 : i32
    %c0_i32_0 = arith.constant 0 : i32
    %c0_i32_1 = arith.constant 0 : i32
    return %c0_i32, %c0_i32_0 : i32, i32
  }
  func.func @transform_3(%arg0: i32) -> (i32, i32, i32, i32) {
    %c0_i32 = arith.constant 0 : i32
    %c0_i32_0 = arith.constant 0 : i32
    %c0_i32_1 = arith.constant 0 : i32
    %c0_i32_2 = arith.constant 0 : i32
    %c0_i32_3 = arith.constant 0 : i32
    return %c0_i32, %c0_i32_0, %c0_i32_1, %c0_i32_2 : i32, i32, i32, i32
  }
  func.func @transform_4(%arg0: i32) -> (i32, i32, i32) {
    %c0_i32 = arith.constant 0 : i32
    %c0_i32_0 = arith.constant 0 : i32
    %c0_i32_1 = arith.constant 0 : i32
    %c0_i32_2 = arith.constant 0 : i32
    return %c0_i32, %c0_i32_0, %c0_i32_1 : i32, i32, i32
  }
  func.func @transform_5(%arg0: i32) -> (i32, i32, i32, i32) {
    %c0_i32 = arith.constant 0 : i32
    %c0_i32_0 = arith.constant 0 : i32
    %c0_i32_1 = arith.constant 0 : i32
    %c0_i32_2 = arith.constant 0 : i32
    return %arg0, %c0_i32, %c0_i32_0, %c0_i32_1 : i32, i32, i32, i32
  }
}

</mosaic_0001>

<llo_original>
// kernel: double_conv_forward.1
$region0: #{double_conv_forward.1}
  #allocation0 [shape = 'u32[]', space=smem, size = 0x4, offset = 0x4, fixed_abs, tag = 'smem constant byte address 0x4 - core index']
  #allocation1 [shape = 'u32[144,128]{1,0:T(1,128)}', space=vmem, size = 0x12000, scoped, tag = 'internal scratch']
  #allocation2 [shape = 'f32[18,18,4]{2,1,0:T(8,128)}', space=vmem, size = 0x36000, scoped, tag = 'scratch operand']
  %s0 = inlined_call_operand.vmem [shape: f32[2,16,16,8], index: 0, kind: input, shape index: {}]
  %s1 = inlined_call_operand.vmem [shape: f32[8,4], index: 1, kind: input, shape index: {}]
  %s2 = inlined_call_operand.vmem [shape: f32[1,4], index: 2, kind: input, shape index: {}]
  %s3 = inlined_call_operand.vmem [shape: f32[3,3,4,8], index: 3, kind: input, shape index: {}]
  %s4 = inlined_call_operand.vmem [shape: f32[1,1,8], index: 4, kind: input, shape index: {}]
  %s5 = inlined_call_operand.vmem [shape: f32[2,16,16,8], index: 5, kind: output, shape index: {}]
  %s6 = sld [smem:[#allocation0]]
  $region53: #{double_conv_forward.1} parent=0
    _
  %s8 = ssub.s32 1, %s6
  %s9 = scalar_select 0, %s8, %s6
  loop: start=0, step=1, limit=4
  $region2: #{double_conv_forward.1} parent=0 // loop_pre_header
    _
  $region3: #{double_conv_forward.1} parent=0 // loop_header
    %s11 = sphi 0, %s15
    %p12 = scmp.ge.s32.totalorder %s11, 4
    %s21 = sphi 0, %s23
    %s24 = sphi 0, %s21
    %s25 = sphi 0, %s24
    %s41 = sphi 0, %s25
    %s45 = sphi 0, %s45
    %s47 = sphi 0, %s45
    %s48 = sphi 0, %s47
    %s62 = sphi 0, %s48
    %s66 = sphi 0, %s66
    %s68 = sphi 0, %s66
    %s69 = sphi 0, %s68
    %s83 = sphi 0, %s69
    %s87 = sphi 0, %s87
    %s89 = sphi 0, %s87
    %s90 = sphi 0, %s89
    %s104 = sphi 0, %s90
    %s108 = sphi 0, %s108
    %s110 = sphi 0, %s108
    %s111 = sphi 0, %s110
    %s125 = sphi 0, %s111
    %s131 = sphi 0, %s133
    %s134 = sphi 0, %s131
    %s135 = sphi 0, %s134
    %s151 = sphi 0, %s135
  $region4: #{double_conv_forward.1} parent=0 // loop_header_branch
    %14 = sbr.rel (%p12) target = $region8
  $region5: #{double_conv_forward.1} parent=0 // loop_body
    %s16 = ssub.s32 %s11, 1
    %s17 = ssub.s32 %s11, 2
    %s18 = sadd.s32 %s11, 1
    %s19 = ssub.s32 %s11, %s18
    %p20 = scmp.eq.s32.totalorder %s19, 0
    %s22 = sadd.s32 %s21, 1
    %s23 = scalar_select %p20, %s21, %s22
    %p26 = pneg %p20
    %p27 = scmp.eq.s32.totalorder %s11, 1
    %p28 = por %p26, %p27
    %p29 = scmp.ne.s32.totalorder %s21, %s24
    %p30 = scmp.eq.s32.totalorder %s11, 0
    %p31 = por %p29, %p30
    %p32 = scmp.ne.s32.totalorder %s21, %s24
    %p33 = scmp.eq.s32.totalorder %s16, 1
    %p34 = por %p32, %p33
    %p35 = scmp.ne.s32.totalorder %s24, %s25
    %p36 = scmp.eq.s32.totalorder %s16, 0
    %p37 = por %p35, %p36
    %p38 = scmp.ne.s32.totalorder %s24, %s25
    %p39 = scmp.eq.s32.totalorder %s17, 1
    %p40 = por %p38, %p39
    %p42 = scmp.ne.s32.totalorder %s25, %s41
    %p43 = scmp.eq.s32.totalorder %s17, 0
    %p44 = por %p42, %p43
    %s46 = sadd.s32 %s45, 1
    %p49 = scmp.eq.s32.totalorder %s11, 1
    %p50 = scmp.ne.s32.totalorder %s45, %s47
    %p51 = scmp.eq.s32.totalorder %s11, 0
    %p52 = por %p50, %p51
    %p53 = scmp.ne.s32.totalorder %s45, %s47
    %p54 = scmp.eq.s32.totalorder %s16, 1
    %p55 = por %p53, %p54
    %p56 = scmp.ne.s32.totalorder %s47, %s48
    %p57 = scmp.eq.s32.totalorder %s16, 0
    %p58 = por %p56, %p57
    %p59 = scmp.ne.s32.totalorder %s47, %s48
    %p60 = scmp.eq.s32.totalorder %s17, 1
    %p61 = por %p59, %p60
    %p63 = scmp.ne.s32.totalorder %s48, %s62
    %p64 = scmp.eq.s32.totalorder %s17, 0
    %p65 = por %p63, %p64
    %s67 = sadd.s32 %s66, 1
    %p70 = scmp.eq.s32.totalorder %s11, 1
    %p71 = scmp.ne.s32.totalorder %s66, %s68
    %p72 = scmp.eq.s32.totalorder %s11, 0
    %p73 = por %p71, %p72
    %p74 = scmp.ne.s32.totalorder %s66, %s68
    %p75 = scmp.eq.s32.totalorder %s16, 1
    %p76 = por %p74, %p75
    %p77 = scmp.ne.s32.totalorder %s68, %s69
    %p78 = scmp.eq.s32.totalorder %s16, 0
    %p79 = por %p77, %p78
    %p80 = scmp.ne.s32.totalorder %s68, %s69
    %p81 = scmp.eq.s32.totalorder %s17, 1
    %p82 = por %p80, %p81
    %p84 = scmp.ne.s32.totalorder %s69, %s83
    %p85 = scmp.eq.s32.totalorder %s17, 0
    %p86 = por %p84, %p85
    %s88 = sadd.s32 %s87, 1
    %p91 = scmp.eq.s32.totalorder %s11, 1
    %p92 = scmp.ne.s32.totalorder %s87, %s89
    %p93 = scmp.eq.s32.totalorder %s11, 0
    %p94 = por %p92, %p93
    %p95 = scmp.ne.s32.totalorder %s87, %s89
    %p96 = scmp.eq.s32.totalorder %s16, 1
    %p97 = por %p95, %p96
    %p98 = scmp.ne.s32.totalorder %s89, %s90
    %p99 = scmp.eq.s32.totalorder %s16, 0
    %p100 = por %p98, %p99
    %p101 = scmp.ne.s32.totalorder %s89, %s90
    %p102 = scmp.eq.s32.totalorder %s17, 1
    %p103 = por %p101, %p102
    %p105 = scmp.ne.s32.totalorder %s90, %s104
    %p106 = scmp.eq.s32.totalorder %s17, 0
    %p107 = por %p105, %p106
    %s109 = sadd.s32 %s108, 1
    %p112 = scmp.eq.s32.totalorder %s11, 1
    %p113 = scmp.ne.s32.totalorder %s108, %s110
    %p114 = scmp.eq.s32.totalorder %s11, 0
    %p115 = por %p113, %p114
    %p116 = scmp.ne.s32.totalorder %s108, %s110
    %p117 = scmp.eq.s32.totalorder %s16, 1
    %p118 = por %p116, %p117
    %p119 = scmp.ne.s32.totalorder %s110, %s111
    %p120 = scmp.eq.s32.totalorder %s16, 0
    %p121 = por %p119, %p120
    %p122 = scmp.ne.s32.totalorder %s110, %s111
    %p123 = scmp.eq.s32.totalorder %s17, 1
    %p124 = por %p122, %p123
    %p126 = scmp.ne.s32.totalorder %s111, %s125
    %p127 = scmp.eq.s32.totalorder %s17, 0
    %p128 = por %p126, %p127
    %s129 = ssub.s32 %s11, %s18
    %p130 = scmp.eq.s32.totalorder %s129, 0
    %s132 = sadd.s32 %s131, 1
    %s133 = scalar_select %p130, %s131, %s132
    %p136 = pneg %p130
    %p137 = scmp.eq.s32.totalorder %s11, 1
    %p138 = por %p136, %p137
    %p139 = scmp.ne.s32.totalorder %s131, %s134
    %p140 = scmp.eq.s32.totalorder %s11, 0
    %p141 = por %p139, %p140
    %p142 = scmp.ne.s32.totalorder %s131, %s134
    %p143 = scmp.eq.s32.totalorder %s16, 1
    %p144 = por %p142, %p143
    %p145 = scmp.ne.s32.totalorder %s134, %s135
    %p146 = scmp.eq.s32.totalorder %s16, 0
    %p147 = por %p145, %p146
    %p148 = scmp.ne.s32.totalorder %s134, %s135
    %p149 = scmp.eq.s32.totalorder %s17, 1
    %p150 = por %p148, %p149
    %p152 = scmp.ne.s32.totalorder %s135, %s151
    %p153 = scmp.eq.s32.totalorder %s17, 0
    %p154 = por %p152, %p153
    %p155 = scmp.le.s32.totalorder 1, %s11
    %p156 = scmp.lt.s32.totalorder %s11, 3
    %p157 = pnand %p155, %p156
    %p158 = pneg %p157
    // Predicated region
    $region9: #{double_conv_forward.1} parent=5 // pred_check
      _
    $region10: #{double_conv_forward.1} parent=5 // pred_check_branch
      %160 = sbr.rel (%p157) target = $region12
    $region11: #{double_conv_forward.1} parent=5 // pred_region
      %s161 = ssub.s32 %s11, 1
      // Predicated region
      $region13: #{double_conv_forward.1} parent=11 // pred_check
        %p162 = pneg %p58
      $region14: #{double_conv_forward.1} parent=11 // pred_check_branch
        %164 = sbr.rel (%p162) target = $region16
      $region15: #{double_conv_forward.1} parent=11 // pred_region
        _
      $region16: #{double_conv_forward.1} parent=11 // pred_fallthru
        _
      // Predicated region
      $region17: #{double_conv_forward.1} parent=11 // pred_check
        %p165 = pneg %p79
      $region18: #{double_conv_forward.1} parent=11 // pred_check_branch
        %167 = sbr.rel (%p165) target = $region20
      $region19: #{double_conv_forward.1} parent=11 // pred_region
        _
      $region20: #{double_conv_forward.1} parent=11 // pred_fallthru
        _
      // Predicated region
      $region21: #{double_conv_forward.1} parent=11 // pred_check
        %p168 = pneg %p100
      $region22: #{double_conv_forward.1} parent=11 // pred_check_branch
        %170 = sbr.rel (%p168) target = $region24
      $region23: #{double_conv_forward.1} parent=11 // pred_region
        _
      $region24: #{double_conv_forward.1} parent=11 // pred_fallthru
        _
      // Predicated region
      $region25: #{double_conv_forward.1} parent=11 // pred_check
        %p171 = pneg %p121
      $region26: #{double_conv_forward.1} parent=11 // pred_check_branch
        %173 = sbr.rel (%p171) target = $region28
      $region27: #{double_conv_forward.1} parent=11 // pred_region
        _
      $region28: #{double_conv_forward.1} parent=11 // pred_fallthru
        _
    $region12: #{double_conv_forward.1} parent=5 // pred_fallthru
      _
    %p174 = scmp.lt.s32.totalorder %s11, 2
    // Predicated region
    $region29: #{double_conv_forward.1} parent=5 // pred_check
      %p175 = pneg %p174
    $region30: #{double_conv_forward.1} parent=5 // pred_check_branch
      %177 = sbr.rel (%p175) target = $region32
    $region31: #{double_conv_forward.1} parent=5 // pred_region
      // Predicated region
      $region33: #{double_conv_forward.1} parent=31 // pred_check
        %p178 = pneg %p31
      $region34: #{double_conv_forward.1} parent=31 // pred_check_branch
        %180 = sbr.rel (%p178) target = $region36
      $region35: #{double_conv_forward.1} parent=31 // pred_region
        %p181 = scmp.lt.s32.totalorder %s11, 1
        %s182 = scalar_select %p181, %s11, 1
        %s183 = smul.addr %s182, 32
        %s184 = smul.addr %s183, 8
        %s185 = scalar_lea.vmem %s0, %s184
      $region36: #{double_conv_forward.1} parent=31 // pred_fallthru
        _
    $region32: #{double_conv_forward.1} parent=5 // pred_fallthru
      _
    %p186 = scmp.le.s32.totalorder 1, %s11
    %p187 = scmp.lt.s32.totalorder %s11, 3
    %p188 = pnand %p186, %p187
    %p189 = pneg %p188
    // Predicated region
    $region37: #{double_conv_forward.1} parent=5 // pred_check
      _
    $region38: #{double_conv_forward.1} parent=5 // pred_check_branch
      %191 = sbr.rel (%p188) target = $region40
    $region39: #{double_conv_forward.1} parent=5 // pred_region
      %s192 = ssub.s32 %s11, 1
      %p193 = scmp.lt.s32.totalorder %s16, 1
      %s194 = scalar_select %p193, %s16, 1
      %s195 = smul.addr %s194, 32
      %s196 = smul.addr %s195, 8
      %s197 = scalar_lea.vmem %s0, %s196
      %p198 = pneg %p37
      %p199 = pneg %p34
      %p200 = pneg %p58
      %p201 = pneg %p55
      %p202 = pneg %p79
      %p203 = pneg %p76
      %p204 = pneg %p100
      %p205 = pneg %p97
      %p206 = pneg %p121
      %p207 = pneg %p118
      %p208 = pneg %p147
      %p209 = pneg %p144
      %p210 = scmp.lt.s32.totalorder %s16, 1
      %s211 = scalar_select %p210, %s16, 1
      %s212 = smul.addr %s211, 32
      %s213 = smul.addr %s212, 8
      %s214 = scalar_lea.vmem %s5, %s213
      %p215 = scmp.lt.s32.totalorder %s16, 1
      %s216 = scalar_select %p215, %s16, 1
      %s217 = smul.addr %s216, 32
      %s218 = smul.addr %s217, 8
      %s219 = scalar_lea.vmem %s0, %s218
      %p220 = scmp.lt.s32.totalorder %s16, 1
      %s221 = scalar_select %p220, %s16, 1
      %s222 = smul.addr %s221, 32
      %s223 = smul.addr %s222, 8
      %s224 = scalar_lea.vmem %s5, %s223
      %v225 = vld [vmem:[%s219] sm:$0xff]
      %v226 = vld [vmem:[%s219 + $0x8] sm:$0xff]
      %v227 = vld [vmem:[%s219 + $0x10] sm:$0xff]
      %v228 = vld [vmem:[%s219 + $0x18] sm:$0xff]
      %v229 = vld [vmem:[%s219 + $0x20] sm:$0xff]
      %v230 = vld [vmem:[%s219 + $0x28] sm:$0xff]
      %v231 = vld [vmem:[%s219 + $0x30] sm:$0xff]
      %v232 = vld [vmem:[%s219 + $0x38] sm:$0xff]
      %v233 = vld [vmem:[%s219 + $0x40] sm:$0xff]
      %v234 = vld [vmem:[%s219 + $0x48] sm:$0xff]
      %v235 = vld [vmem:[%s219 + $0x50] sm:$0xff]
      %v236 = vld [vmem:[%s219 + $0x58] sm:$0xff]
      %v237 = vld [vmem:[%s219 + $0x60] sm:$0xff]
      %v238 = vld [vmem:[%s219 + $0x68] sm:$0xff]
      %v239 = vld [vmem:[%s219 + $0x70] sm:$0xff]
      %v240 = vld [vmem:[%s219 + $0x78] sm:$0xff]
      %v241 = vld [vmem:[%s219 + $0x80] sm:$0xff]
      %v242 = vld [vmem:[%s219 + $0x88] sm:$0xff]
      %v243 = vld [vmem:[%s219 + $0x90] sm:$0xff]
      %v244 = vld [vmem:[%s219 + $0x98] sm:$0xff]
      %v245 = vld [vmem:[%s219 + $0xa0] sm:$0xff]
      %v246 = vld [vmem:[%s219 + $0xa8] sm:$0xff]
      %v247 = vld [vmem:[%s219 + $0xb0] sm:$0xff]
      %v248 = vld [vmem:[%s219 + $0xb8] sm:$0xff]
      %v249 = vld [vmem:[%s219 + $0xc0] sm:$0xff]
      %v250 = vld [vmem:[%s219 + $0xc8] sm:$0xff]
      %v251 = vld [vmem:[%s219 + $0xd0] sm:$0xff]
      %v252 = vld [vmem:[%s219 + $0xd8] sm:$0xff]
      %v253 = vld [vmem:[%s219 + $0xe0] sm:$0xff]
      %v254 = vld [vmem:[%s219 + $0xe8] sm:$0xff]
      %v255 = vld [vmem:[%s219 + $0xf0] sm:$0xff]
      %v256 = vld [vmem:[%s219 + $0xf8] sm:$0xff]
      %v257 = vld [vmem:[%s1] sm:$0xff]
      %v258 = vld [vmem:[%s2] sm:$0x1]
      %v260 = vlaneseq
      %v261 = vshrl.u32 %v260, 7
      %v262 = vsub.s32 0, %v261
      %v263 = vrot.slane %v258, %v262
      %vm265 = vcmask 64512
      %v267 = vsel %vm265, %v225, 0
      %v270 = vsel %vm265, %v226, 0
      %v273 = vsel %vm265, %v227, 0
      %v276 = vsel %vm265, %v228, 0
      %v279 = vsel %vm265, %v229, 0
      %v282 = vsel %vm265, %v230, 0
      %v285 = vsel %vm265, %v231, 0
      %v288 = vsel %vm265, %v232, 0
      %v291 = vsel %vm265, %v233, 0
      %v294 = vsel %vm265, %v234, 0
      %v297 = vsel %vm265, %v235, 0
      %v300 = vsel %vm265, %v236, 0
      %v303 = vsel %vm265, %v237, 0
      %v306 = vsel %vm265, %v238, 0
      %v309 = vsel %vm265, %v239, 0
      %v312 = vsel %vm265, %v240, 0
      %v315 = vsel %vm265, %v241, 0
      %v318 = vsel %vm265, %v242, 0
      %v321 = vsel %vm265, %v243, 0
      %v324 = vsel %vm265, %v244, 0
      %v327 = vsel %vm265, %v245, 0
      %v330 = vsel %vm265, %v246, 0
      %v333 = vsel %vm265, %v247, 0
      %v336 = vsel %vm265, %v248, 0
      %v339 = vsel %vm265, %v249, 0
      %v342 = vsel %vm265, %v250, 0
      %v345 = vsel %vm265, %v251, 0
      %v348 = vsel %vm265, %v252, 0
      %v351 = vsel %vm265, %v253, 0
      %v354 = vsel %vm265, %v254, 0
      %v357 = vsel %vm265, %v255, 0
      %v360 = vsel %vm265, %v256, 0
      %362 = vmatprep.subr.mxu0 0.0
      %363 = vmatpush1.msra.mxu0 0.0
      %364 = vmatprep.subr.mxu0 0.0
      %365 = vmatpush1.msra.mxu0 0.0
      %366 = vmatprep.subr.mxu0 0.0
      %367 = vmatpush1.msra.mxu0 0.0
      %368 = vmatprep.subr.mxu0 0.0
      %369 = vmatpush1.msra.mxu0 0.0
      %370 = vmatprep.subr.mxu0 0.0
      %371 = vmatpush1.msra.mxu0 0.0
      %372 = vmatprep.subr.mxu0 0.0
      %373 = vmatpush1.msra.mxu0 0.0
      %374 = vmatprep.subr.mxu0 0.0
      %375 = vmatpush1.msra.mxu0 0.0
      %376 = vmatprep.subr.mxu0 0.0
      %377 = vmatpush1.msra.mxu0 0.0
      %378 = vmatprep.subr.mxu0 0.0
      %379 = vmatpush1.msra.mxu0 0.0
      %380 = vmatprep.subr.mxu0 0.0
      %381 = vmatpush1.msra.mxu0 0.0
      %382 = vmatprep.subr.mxu0 0.0
      %383 = vmatpush1.msra.mxu0 0.0
      %384 = vmatprep.subr.mxu0 0.0
      %385 = vmatpush1.msra.mxu0 0.0
      %386 = vmatprep.subr.mxu0 0.0
      %387 = vmatpush1.msra.mxu0 0.0
      %388 = vmatprep.subr.mxu0 0.0
      %389 = vmatpush1.msra.mxu0 0.0
      %390 = vmatprep.subr.mxu0 0.0
      %391 = vmatpush1.msra.mxu0 0.0
      %392 = vmatprep.subr.mxu0 0.0
      %393 = vmatpush1.msra.mxu0 %v257
      %394 = vmatprep.subr.mxu0 0.0
      %395 = vmatpush2.msra.mxu0 0.0
      %396 = vmatprep.subr.mxu0 0.0
      %397 = vmatpush2.msra.mxu0 0.0
      %398 = vmatprep.subr.mxu0 0.0
      %399 = vmatpush2.msra.mxu0 0.0
      %400 = vmatprep.subr.mxu0 0.0
      %401 = vmatpush2.msra.mxu0 0.0
      %402 = vmatprep.subr.mxu0 0.0
      %403 = vmatpush2.msra.mxu0 0.0
      %404 = vmatprep.subr.mxu0 0.0
      %405 = vmatpush2.msra.mxu0 0.0
      %406 = vmatprep.subr.mxu0 0.0
      %407 = vmatpush2.msra.mxu0 0.0
      %408 = vmatprep.subr.mxu0 0.0
      %409 = vmatpush2.msra.mxu0 0.0
      %410 = vmatprep.subr.mxu0 0.0
      %411 = vmatpush2.msra.mxu0 0.0
      %412 = vmatprep.subr.mxu0 0.0
      %413 = vmatpush2.msra.mxu0 0.0
      %414 = vmatprep.subr.mxu0 0.0
      %415 = vmatpush2.msra.mxu0 0.0
      %416 = vmatprep.subr.mxu0 0.0
      %417 = vmatpush2.msra.mxu0 0.0
      %418 = vmatprep.subr.mxu0 0.0
      %419 = vmatpush2.msra.mxu0 0.0
      %420 = vmatprep.subr.mxu0 0.0
      %421 = vmatpush2.msra.mxu0 0.0
      %422 = vmatprep.subr.mxu0 0.0
      %423 = vmatpush2.msra.mxu0 0.0
      %424 = vmatprep.subr.mxu0 0.0
      %425 = vmatpush2.msra.mxu0 0.0
      %426 = vmatprep.mubr.f32.mxu0 0.0
      %427 = vmatmul.mubr.f32.gmra.mxu0 %v267
      %v428 = vpop.f32.mrf.mxu0
      %v429 = vadd.f32 %v263, %v428
      %v430 = vpop.f32.mrf.mxu0
      %431 = vmatprep.mubr.f32.mxu0 0.0
      %432 = vmatmul.mubr.f32.gmra.mxu0 %v270
      %v433 = vpop.f32.mrf.mxu0
      %v434 = vadd.f32 %v263, %v433
      %v435 = vpop.f32.mrf.mxu0
      %436 = vmatprep.mubr.f32.mxu0 0.0
      %437 = vmatmul.mubr.f32.gmra.mxu0 %v273
      %v438 = vpop.f32.mrf.mxu0
      %v439 = vadd.f32 %v263, %v438
      %v440 = vpop.f32.mrf.mxu0
      %441 = vmatprep.mubr.f32.mxu0 0.0
      %442 = vmatmul.mubr.f32.gmra.mxu0 %v276
      %v443 = vpop.f32.mrf.mxu0
      %v444 = vadd.f32 %v263, %v443
      %v445 = vpop.f32.mrf.mxu0
      %446 = vmatprep.mubr.f32.mxu0 0.0
      %447 = vmatmul.mubr.f32.gmra.mxu0 %v279
      %v448 = vpop.f32.mrf.mxu0
      %v449 = vadd.f32 %v263, %v448
      %v450 = vpop.f32.mrf.mxu0
      %451 = vmatprep.mubr.f32.mxu0 0.0
      %452 = vmatmul.mubr.f32.gmra.mxu0 %v282
      %v453 = vpop.f32.mrf.mxu0
      %v454 = vadd.f32 %v263, %v453
      %v455 = vpop.f32.mrf.mxu0
      %456 = vmatprep.mubr.f32.mxu0 0.0
      %457 = vmatmul.mubr.f32.gmra.mxu0 %v285
      %v458 = vpop.f32.mrf.mxu0
      %v459 = vadd.f32 %v263, %v458
      %v460 = vpop.f32.mrf.mxu0
      %461 = vmatprep.mubr.f32.mxu0 0.0
      %462 = vmatmul.mubr.f32.gmra.mxu0 %v288
      %v463 = vpop.f32.mrf.mxu0
      %v464 = vadd.f32 %v263, %v463
      %v465 = vpop.f32.mrf.mxu0
      %466 = vmatprep.mubr.f32.mxu0 0.0
      %467 = vmatmul.mubr.f32.gmra.mxu0 %v291
      %v468 = vpop.f32.mrf.mxu0
      %v469 = vadd.f32 %v263, %v468
      %v470 = vpop.f32.mrf.mxu0
      %471 = vmatprep.mubr.f32.mxu0 0.0
      %472 = vmatmul.mubr.f32.gmra.mxu0 %v294
      %v473 = vpop.f32.mrf.mxu0
      %v474 = vadd.f32 %v263, %v473
      %v475 = vpop.f32.mrf.mxu0
      %476 = vmatprep.mubr.f32.mxu0 0.0
      %477 = vmatmul.mubr.f32.gmra.mxu0 %v297
      %v478 = vpop.f32.mrf.mxu0
      %v479 = vadd.f32 %v263, %v478
      %v480 = vpop.f32.mrf.mxu0
      %481 = vmatprep.mubr.f32.mxu0 0.0
      %482 = vmatmul.mubr.f32.gmra.mxu0 %v300
      %v483 = vpop.f32.mrf.mxu0
      %v484 = vadd.f32 %v263, %v483
      %v485 = vpop.f32.mrf.mxu0
      %486 = vmatprep.mubr.f32.mxu0 0.0
      %487 = vmatmul.mubr.f32.gmra.mxu0 %v303
      %v488 = vpop.f32.mrf.mxu0
      %v489 = vadd.f32 %v263, %v488
      %v490 = vpop.f32.mrf.mxu0
      %491 = vmatprep.mubr.f32.mxu0 0.0
      %492 = vmatmul.mubr.f32.gmra.mxu0 %v306
      %v493 = vpop.f32.mrf.mxu0
      %v494 = vadd.f32 %v263, %v493
      %v495 = vpop.f32.mrf.mxu0
      %496 = vmatprep.mubr.f32.mxu0 0.0
      %497 = vmatmul.mubr.f32.gmra.mxu0 %v309
      %v498 = vpop.f32.mrf.mxu0
      %v499 = vadd.f32 %v263, %v498
      %v500 = vpop.f32.mrf.mxu0
      %501 = vmatprep.mubr.f32.mxu0 0.0
      %502 = vmatmul.mubr.f32.gmra.mxu0 %v312
      %v503 = vpop.f32.mrf.mxu0
      %v504 = vadd.f32 %v263, %v503
      %v505 = vpop.f32.mrf.mxu0
      %506 = vmatprep.mubr.f32.mxu0 0.0
      %507 = vmatmul.mubr.f32.gmra.mxu0 %v315
      %v508 = vpop.f32.mrf.mxu0
      %v509 = vadd.f32 %v263, %v508
      %v510 = vpop.f32.mrf.mxu0
      %511 = vmatprep.mubr.f32.mxu0 0.0
      %512 = vmatmul.mubr.f32.gmra.mxu0 %v318
      %v513 = vpop.f32.mrf.mxu0
      %v514 = vadd.f32 %v263, %v513
      %v515 = vpop.f32.mrf.mxu0
      %516 = vmatprep.mubr.f32.mxu0 0.0
      %517 = vmatmul.mubr.f32.gmra.mxu0 %v321
      %v518 = vpop.f32.mrf.mxu0
      %v519 = vadd.f32 %v263, %v518
      %v520 = vpop.f32.mrf.mxu0
      %521 = vmatprep.mubr.f32.mxu0 0.0
      %522 = vmatmul.mubr.f32.gmra.mxu0 %v324
      %v523 = vpop.f32.mrf.mxu0
      %v524 = vadd.f32 %v263, %v523
      %v525 = vpop.f32.mrf.mxu0
      %526 = vmatprep.mubr.f32.mxu0 0.0
      %527 = vmatmul.mubr.f32.gmra.mxu0 %v327
      %v528 = vpop.f32.mrf.mxu0
      %v529 = vadd.f32 %v263, %v528
      %v530 = vpop.f32.mrf.mxu0
      %531 = vmatprep.mubr.f32.mxu0 0.0
      %532 = vmatmul.mubr.f32.gmra.mxu0 %v330
      %v533 = vpop.f32.mrf.mxu0
      %v534 = vadd.f32 %v263, %v533
      %v535 = vpop.f32.mrf.mxu0
      %536 = vmatprep.mubr.f32.mxu0 0.0
      %537 = vmatmul.mubr.f32.gmra.mxu0 %v333
      %v538 = vpop.f32.mrf.mxu0
      %v539 = vadd.f32 %v263, %v538
      %v540 = vpop.f32.mrf.mxu0
      %541 = vmatprep.mubr.f32.mxu0 0.0
      %542 = vmatmul.mubr.f32.gmra.mxu0 %v336
      %v543 = vpop.f32.mrf.mxu0
      %v544 = vadd.f32 %v263, %v543
      %v545 = vpop.f32.mrf.mxu0
      %546 = vmatprep.mubr.f32.mxu0 0.0
      %547 = vmatmul.mubr.f32.gmra.mxu0 %v339
      %v548 = vpop.f32.mrf.mxu0
      %v549 = vadd.f32 %v263, %v548
      %v550 = vpop.f32.mrf.mxu0
      %551 = vmatprep.mubr.f32.mxu0 0.0
      %552 = vmatmul.mubr.f32.gmra.mxu0 %v342
      %v553 = vpop.f32.mrf.mxu0
      %v554 = vadd.f32 %v263, %v553
      %v555 = vpop.f32.mrf.mxu0
      %556 = vmatprep.mubr.f32.mxu0 0.0
      %557 = vmatmul.mubr.f32.gmra.mxu0 %v345
      %v558 = vpop.f32.mrf.mxu0
      %v559 = vadd.f32 %v263, %v558
      %v560 = vpop.f32.mrf.mxu0
      %561 = vmatprep.mubr.f32.mxu0 0.0
      %562 = vmatmul.mubr.f32.gmra.mxu0 %v348
      %v563 = vpop.f32.mrf.mxu0
      %v564 = vadd.f32 %v263, %v563
      %v565 = vpop.f32.mrf.mxu0
      %566 = vmatprep.mubr.f32.mxu0 0.0
      %567 = vmatmul.mubr.f32.gmra.mxu0 %v351
      %v568 = vpop.f32.mrf.mxu0
      %v569 = vadd.f32 %v263, %v568
      %v570 = vpop.f32.mrf.mxu0
      %571 = vmatprep.mubr.f32.mxu0 0.0
      %572 = vmatmul.mubr.f32.gmra.mxu0 %v354
      %v573 = vpop.f32.mrf.mxu0
      %v574 = vadd.f32 %v263, %v573
      %v575 = vpop.f32.mrf.mxu0
      %576 = vmatprep.mubr.f32.mxu0 0.0
      %577 = vmatmul.mubr.f32.gmra.mxu0 %v357
      %v578 = vpop.f32.mrf.mxu0
      %v579 = vadd.f32 %v263, %v578
      %v580 = vpop.f32.mrf.mxu0
      %581 = vmatprep.mubr.f32.mxu0 0.0
      %582 = vmatmul.mubr.f32.gmra.mxu0 %v360
      %v583 = vpop.f32.mrf.mxu0
      %v584 = vadd.f32 %v263, %v583
      %v585 = vpop.f32.mrf.mxu0
      %586 = vdwg.mxu0
      %v587 = vmax.f32 %v429, 0.0
      %v588 = vmax.f32 %v434, 0.0
      %v589 = vmax.f32 %v439, 0.0
      %v590 = vmax.f32 %v444, 0.0
      %v591 = vmax.f32 %v449, 0.0
      %v592 = vmax.f32 %v454, 0.0
      %v593 = vmax.f32 %v459, 0.0
      %v594 = vmax.f32 %v464, 0.0
      %v595 = vmax.f32 %v469, 0.0
      %v596 = vmax.f32 %v474, 0.0
      %v597 = vmax.f32 %v479, 0.0
      %v598 = vmax.f32 %v484, 0.0
      %v599 = vmax.f32 %v489, 0.0
      %v600 = vmax.f32 %v494, 0.0
      %v601 = vmax.f32 %v499, 0.0
      %v602 = vmax.f32 %v504, 0.0
      %v603 = vmax.f32 %v509, 0.0
      %v604 = vmax.f32 %v514, 0.0
      %v605 = vmax.f32 %v519, 0.0
      %v606 = vmax.f32 %v524, 0.0
      %v607 = vmax.f32 %v529, 0.0
      %v608 = vmax.f32 %v534, 0.0
      %v609 = vmax.f32 %v539, 0.0
      %v610 = vmax.f32 %v544, 0.0
      %v611 = vmax.f32 %v549, 0.0
      %v612 = vmax.f32 %v554, 0.0
      %v613 = vmax.f32 %v559, 0.0
      %v614 = vmax.f32 %v564, 0.0
      %v615 = vmax.f32 %v569, 0.0
      %v616 = vmax.f32 %v574, 0.0
      %v617 = vmax.f32 %v579, 0.0
      %v618 = vmax.f32 %v584, 0.0
      %vm619 = vcmask 31744
      %620 = vst.msk [vmem:[#allocation2] sm:$0xff] %vm619, 0.0
      %621 = vst.msk [vmem:[#allocation2 + $0x8] sm:$0xff] %vm619, 0.0
      %vm622 = vcmask 25600
      %623 = vst.msk [vmem:[#allocation2 + $0x10] sm:$0x3] %vm622, 0.0
      %624 = vst.msk [vmem:[#allocation2 + $0x18] sm:$0xff] %vm619, 0.0
      %625 = vst.msk [vmem:[#allocation2 + $0x20] sm:$0xff] %vm619, 0.0
      %626 = vst.msk [vmem:[#allocation2 + $0x28] sm:$0x3] %vm622, 0.0
      %627 = vst.msk [vmem:[#allocation2 + $0x30] sm:$0xff] %vm619, 0.0
      %628 = vst.msk [vmem:[#allocation2 + $0x38] sm:$0xff] %vm619, 0.0
      %629 = vst.msk [vmem:[#allocation2 + $0x40] sm:$0x3] %vm622, 0.0
      %630 = vst.msk [vmem:[#allocation2 + $0x48] sm:$0xff] %vm619, 0.0
      %631 = vst.msk [vmem:[#allocation2 + $0x50] sm:$0xff] %vm619, 0.0
      %632 = vst.msk [vmem:[#allocation2 + $0x58] sm:$0x3] %vm622, 0.0
      %633 = vst.msk [vmem:[#allocation2 + $0x60] sm:$0xff] %vm619, 0.0
      %634 = vst.msk [vmem:[#allocation2 + $0x68] sm:$0xff] %vm619, 0.0
      %635 = vst.msk [vmem:[#allocation2 + $0x70] sm:$0x3] %vm622, 0.0
      %636 = vst.msk [vmem:[#allocation2 + $0x78] sm:$0xff] %vm619, 0.0
      %637 = vst.msk [vmem:[#allocation2 + $0x80] sm:$0xff] %vm619, 0.0
      %638 = vst.msk [vmem:[#allocation2 + $0x88] sm:$0x3] %vm622, 0.0
      %639 = vst.msk [vmem:[#allocation2 + $0x90] sm:$0xff] %vm619, 0.0
      %640 = vst.msk [vmem:[#allocation2 + $0x98] sm:$0xff] %vm619, 0.0
      %641 = vst.msk [vmem:[#allocation2 + $0xa0] sm:$0x3] %vm622, 0.0
      %642 = vst.msk [vmem:[#allocation2 + $0xa8] sm:$0xff] %vm619, 0.0
      %643 = vst.msk [vmem:[#allocation2 + $0xb0] sm:$0xff] %vm619, 0.0
      %644 = vst.msk [vmem:[#allocation2 + $0xb8] sm:$0x3] %vm622, 0.0
      %645 = vst.msk [vmem:[#allocation2 + $0xc0] sm:$0xff] %vm619, 0.0
      %646 = vst.msk [vmem:[#allocation2 + $0xc8] sm:$0xff] %vm619, 0.0
      %647 = vst.msk [vmem:[#allocation2 + $0xd0] sm:$0x3] %vm622, 0.0
      %648 = vst.msk [vmem:[#allocation2 + $0xd8] sm:$0xff] %vm619, 0.0
      %649 = vst.msk [vmem:[#allocation2 + $0xe0] sm:$0xff] %vm619, 0.0
      %650 = vst.msk [vmem:[#allocation2 + $0xe8] sm:$0x3] %vm622, 0.0
      %651 = vst.msk [vmem:[#allocation2 + $0xf0] sm:$0xff] %vm619, 0.0
      %652 = vst.msk [vmem:[#allocation2 + $0xf8] sm:$0xff] %vm619, 0.0
      %653 = vst.msk [vmem:[#allocation2 + $0x100] sm:$0x3] %vm622, 0.0
      %654 = vst.msk [vmem:[#allocation2 + $0x108] sm:$0xff] %vm619, 0.0
      %655 = vst.msk [vmem:[#allocation2 + $0x110] sm:$0xff] %vm619, 0.0
      %656 = vst.msk [vmem:[#allocation2 + $0x118] sm:$0x3] %vm622, 0.0
      %657 = vst.msk [vmem:[#allocation2 + $0x120] sm:$0xff] %vm619, 0.0
      %658 = vst.msk [vmem:[#allocation2 + $0x128] sm:$0xff] %vm619, 0.0
      %659 = vst.msk [vmem:[#allocation2 + $0x130] sm:$0x3] %vm622, 0.0
      %660 = vst.msk [vmem:[#allocation2 + $0x138] sm:$0xff] %vm619, 0.0
      %661 = vst.msk [vmem:[#allocation2 + $0x140] sm:$0xff] %vm619, 0.0
      %662 = vst.msk [vmem:[#allocation2 + $0x148] sm:$0x3] %vm622, 0.0
      %663 = vst.msk [vmem:[#allocation2 + $0x150] sm:$0xff] %vm619, 0.0
      %664 = vst.msk [vmem:[#allocation2 + $0x158] sm:$0xff] %vm619, 0.0
      %665 = vst.msk [vmem:[#allocation2 + $0x160] sm:$0x3] %vm622, 0.0
      %666 = vst.msk [vmem:[#allocation2 + $0x168] sm:$0xff] %vm619, 0.0
      %667 = vst.msk [vmem:[#allocation2 + $0x170] sm:$0xff] %vm619, 0.0
      %668 = vst.msk [vmem:[#allocation2 + $0x178] sm:$0x3] %vm622, 0.0
      %669 = vst.msk [vmem:[#allocation2 + $0x180] sm:$0xff] %vm619, 0.0
      %670 = vst.msk [vmem:[#allocation2 + $0x188] sm:$0xff] %vm619, 0.0
      %671 = vst.msk [vmem:[#allocation2 + $0x190] sm:$0x3] %vm622, 0.0
      %672 = vst.msk [vmem:[#allocation2 + $0x198] sm:$0xff] %vm619, 0.0
      %673 = vst.msk [vmem:[#allocation2 + $0x1a0] sm:$0xff] %vm619, 0.0
      %674 = vst.msk [vmem:[#allocation2 + $0x1a8] sm:$0x3] %vm622, 0.0
      %s675 = scalar_lea.vmem [#allocation2], 24
      %676 = vst.msk [vmem:[%s675 + $0x1] sm:$0xff] %vm619, %v587
      %677 = vst.msk [vmem:[%s675 + $0x9] sm:$0xff] %vm619, %v588
      %678 = vst.msk [vmem:[%s675 + $0x19] sm:$0xff] %vm619, %v589
      %679 = vst.msk [vmem:[%s675 + $0x21] sm:$0xff] %vm619, %v590
      %680 = vst.msk [vmem:[%s675 + $0x31] sm:$0xff] %vm619, %v591
      %681 = vst.msk [vmem:[%s675 + $0x39] sm:$0xff] %vm619, %v592
      %682 = vst.msk [vmem:[%s675 + $0x49] sm:$0xff] %vm619, %v593
      %683 = vst.msk [vmem:[%s675 + $0x51] sm:$0xff] %vm619, %v594
      %684 = vst.msk [vmem:[%s675 + $0x61] sm:$0xff] %vm619, %v595
      %685 = vst.msk [vmem:[%s675 + $0x69] sm:$0xff] %vm619, %v596
      %686 = vst.msk [vmem:[%s675 + $0x79] sm:$0xff] %vm619, %v597
      %687 = vst.msk [vmem:[%s675 + $0x81] sm:$0xff] %vm619, %v598
      %688 = vst.msk [vmem:[%s675 + $0x91] sm:$0xff] %vm619, %v599
      %689 = vst.msk [vmem:[%s675 + $0x99] sm:$0xff] %vm619, %v600
      %690 = vst.msk [vmem:[%s675 + $0xa9] sm:$0xff] %vm619, %v601
      %691 = vst.msk [vmem:[%s675 + $0xb1] sm:$0xff] %vm619, %v602
      %692 = vst.msk [vmem:[%s675 + $0xc1] sm:$0xff] %vm619, %v603
      %693 = vst.msk [vmem:[%s675 + $0xc9] sm:$0xff] %vm619, %v604
      %694 = vst.msk [vmem:[%s675 + $0xd9] sm:$0xff] %vm619, %v605
      %695 = vst.msk [vmem:[%s675 + $0xe1] sm:$0xff] %vm619, %v606
      %696 = vst.msk [vmem:[%s675 + $0xf1] sm:$0xff] %vm619, %v607
      %697 = vst.msk [vmem:[%s675 + $0xf9] sm:$0xff] %vm619, %v608
      %698 = vst.msk [vmem:[%s675 + $0x109] sm:$0xff] %vm619, %v609
      %699 = vst.msk [vmem:[%s675 + $0x111] sm:$0xff] %vm619, %v610
      %700 = vst.msk [vmem:[%s675 + $0x121] sm:$0xff] %vm619, %v611
      %701 = vst.msk [vmem:[%s675 + $0x129] sm:$0xff] %vm619, %v612
      %702 = vst.msk [vmem:[%s675 + $0x139] sm:$0xff] %vm619, %v613
      %703 = vst.msk [vmem:[%s675 + $0x141] sm:$0xff] %vm619, %v614
      %704 = vst.msk [vmem:[%s675 + $0x151] sm:$0xff] %vm619, %v615
      %705 = vst.msk [vmem:[%s675 + $0x159] sm:$0xff] %vm619, %v616
      %706 = vst.msk [vmem:[%s675 + $0x169] sm:$0xff] %vm619, %v617
      %707 = vst.msk [vmem:[%s675 + $0x171] sm:$0xff] %vm619, %v618
      %v708 = vld [vmem:[%s3] sm:$0xf]
      %v709 = vld [vmem:[%s3 + $0x4] sm:$0xf]
      %v710 = vld [vmem:[%s3 + $0x8] sm:$0xf]
      %v711 = vld [vmem:[%s3 + $0xc] sm:$0xf]
      %v712 = vld [vmem:[%s3 + $0x10] sm:$0xf]
      %v713 = vld [vmem:[%s3 + $0x14] sm:$0xf]
      %v714 = vld [vmem:[%s3 + $0x18] sm:$0xf]
      %v715 = vld [vmem:[%s3 + $0x1c] sm:$0xf]
      %v716 = vld [vmem:[%s3 + $0x20] sm:$0xf]
      %v717 = vld [vmem:[%s4] sm:$0x1]
      %v718 = vld [vmem:[#allocation2] sm:$0xff]
      %v719 = vld [vmem:[#allocation2 + $0x8] sm:$0xff]
      %v720 = vld [vmem:[#allocation2 + $0x18] sm:$0xff]
      %v721 = vld [vmem:[#allocation2 + $0x20] sm:$0xff]
      %v722 = vld [vmem:[#allocation2 + $0x30] sm:$0xff]
      %v723 = vld [vmem:[#allocation2 + $0x38] sm:$0xff]
      %v724 = vld [vmem:[#allocation2 + $0x48] sm:$0xff]
      %v725 = vld [vmem:[#allocation2 + $0x50] sm:$0xff]
      %v726 = vld [vmem:[#allocation2 + $0x60] sm:$0xff]
      %v727 = vld [vmem:[#allocation2 + $0x68] sm:$0xff]
      %v728 = vld [vmem:[#allocation2 + $0x78] sm:$0xff]
      %v729 = vld [vmem:[#allocation2 + $0x80] sm:$0xff]
      %v730 = vld [vmem:[#allocation2 + $0x90] sm:$0xff]
      %v731 = vld [vmem:[#allocation2 + $0x98] sm:$0xff]
      %v732 = vld [vmem:[#allocation2 + $0xa8] sm:$0xff]
      %v733 = vld [vmem:[#allocation2 + $0xb0] sm:$0xff]
      %v734 = vld [vmem:[#allocation2 + $0xc0] sm:$0xff]
      %v735 = vld [vmem:[#allocation2 + $0xc8] sm:$0xff]
      %v736 = vld [vmem:[#allocation2 + $0xd8] sm:$0xff]
      %v737 = vld [vmem:[#allocation2 + $0xe0] sm:$0xff]
      %v738 = vld [vmem:[#allocation2 + $0xf0] sm:$0xff]
      %v739 = vld [vmem:[#allocation2 + $0xf8] sm:$0xff]
      %v740 = vld [vmem:[#allocation2 + $0x108] sm:$0xff]
      %v741 = vld [vmem:[#allocation2 + $0x110] sm:$0xff]
      %v742 = vld [vmem:[#allocation2 + $0x120] sm:$0xff]
      %v743 = vld [vmem:[#allocation2 + $0x128] sm:$0xff]
      %v744 = vld [vmem:[#allocation2 + $0x138] sm:$0xff]
      %v745 = vld [vmem:[#allocation2 + $0x140] sm:$0xff]
      %v746 = vld [vmem:[#allocation2 + $0x150] sm:$0xff]
      %v747 = vld [vmem:[#allocation2 + $0x158] sm:$0xff]
      %v748 = vld [vmem:[#allocation2 + $0x168] sm:$0xff]
      %v749 = vld [vmem:[#allocation2 + $0x170] sm:$0xff]
      %v750 = vld [vmem:[#allocation2 + $0x180] sm:$0xff]
      %v751 = vld [vmem:[#allocation2 + $0x188] sm:$0xff]
      %v752 = vld [vmem:[#allocation2 + $0x198] sm:$0xff]
      %v753 = vld [vmem:[#allocation2 + $0x1a0] sm:$0xff]
      %v755 = vsel %vm619, %v720, 0
      %v758 = vsel %vm619, %v721, 0
      %v761 = vsel %vm619, %v722, 0
      %v764 = vsel %vm619, %v723, 0
      %v767 = vsel %vm619, %v724, 0
      %v770 = vsel %vm619, %v725, 0
      %v773 = vsel %vm619, %v726, 0
      %v776 = vsel %vm619, %v727, 0
      %v779 = vsel %vm619, %v728, 0
      %v782 = vsel %vm619, %v729, 0
      %v785 = vsel %vm619, %v730, 0
      %v788 = vsel %vm619, %v731, 0
      %v791 = vsel %vm619, %v732, 0
      %v794 = vsel %vm619, %v733, 0
      %v797 = vsel %vm619, %v734, 0
      %v800 = vsel %vm619, %v735, 0
      %v803 = vsel %vm619, %v736, 0
      %v806 = vsel %vm619, %v737, 0
      %v809 = vsel %vm619, %v738, 0
      %v812 = vsel %vm619, %v739, 0
      %v815 = vsel %vm619, %v740, 0
      %v818 = vsel %vm619, %v741, 0
      %v821 = vsel %vm619, %v742, 0
      %v824 = vsel %vm619, %v743, 0
      %v827 = vsel %vm619, %v744, 0
      %v830 = vsel %vm619, %v745, 0
      %v833 = vsel %vm619, %v746, 0
      %v836 = vsel %vm619, %v747, 0
      %v839 = vsel %vm619, %v748, 0
      %v842 = vsel %vm619, %v749, 0
      %v845 = vsel %vm619, %v750, 0
      %v848 = vsel %vm619, %v751, 0
      %vm850 = vcmask 1043456
      %v852 = vsel %vm850, %v711, 0
      %854 = vmatprep.subr.mxu0 0.0
      %855 = vmatpush1.msra.mxu0 0.0
      %856 = vmatprep.subr.mxu0 0.0
      %857 = vmatpush1.msra.mxu0 0.0
      %858 = vmatprep.subr.mxu0 0.0
      %859 = vmatpush1.msra.mxu0 0.0
      %860 = vmatprep.subr.mxu0 0.0
      %861 = vmatpush1.msra.mxu0 0.0
      %862 = vmatprep.subr.mxu0 0.0
      %863 = vmatpush1.msra.mxu0 0.0
      %864 = vmatprep.subr.mxu0 0.0
      %865 = vmatpush1.msra.mxu0 0.0
      %866 = vmatprep.subr.mxu0 0.0
      %867 = vmatpush1.msra.mxu0 0.0
      %868 = vmatprep.subr.mxu0 0.0
      %869 = vmatpush1.msra.mxu0 0.0
      %870 = vmatprep.subr.mxu0 0.0
      %871 = vmatpush1.msra.mxu0 0.0
      %872 = vmatprep.subr.mxu0 0.0
      %873 = vmatpush1.msra.mxu0 0.0
      %874 = vmatprep.subr.mxu0 0.0
      %875 = vmatpush1.msra.mxu0 0.0
      %876 = vmatprep.subr.mxu0 0.0
      %877 = vmatpush1.msra.mxu0 0.0
      %878 = vmatprep.subr.mxu0 0.0
      %879 = vmatpush1.msra.mxu0 0.0
      %880 = vmatprep.subr.mxu0 0.0
      %881 = vmatpush1.msra.mxu0 0.0
      %882 = vmatprep.subr.mxu0 0.0
      %883 = vmatpush1.msra.mxu0 0.0
      %884 = vmatprep.subr.mxu0 0.0
      %885 = vmatpush1.msra.mxu0 %v852
      %886 = vmatprep.subr.mxu0 0.0
      %887 = vmatpush2.msra.mxu0 0.0
      %888 = vmatprep.subr.mxu0 0.0
      %889 = vmatpush2.msra.mxu0 0.0
      %890 = vmatprep.subr.mxu0 0.0
      %891 = vmatpush2.msra.mxu0 0.0
      %892 = vmatprep.subr.mxu0 0.0
      %893 = vmatpush2.msra.mxu0 0.0
      %894 = vmatprep.subr.mxu0 0.0
      %895 = vmatpush2.msra.mxu0 0.0
      %896 = vmatprep.subr.mxu0 0.0
      %897 = vmatpush2.msra.mxu0 0.0
      %898 = vmatprep.subr.mxu0 0.0
      %899 = vmatpush2.msra.mxu0 0.0
      %900 = vmatprep.subr.mxu0 0.0
      %901 = vmatpush2.msra.mxu0 0.0
      %902 = vmatprep.subr.mxu0 0.0
      %903 = vmatpush2.msra.mxu0 0.0
      %904 = vmatprep.subr.mxu0 0.0
      %905 = vmatpush2.msra.mxu0 0.0
      %906 = vmatprep.subr.mxu0 0.0
      %907 = vmatpush2.msra.mxu0 0.0
      %908 = vmatprep.subr.mxu0 0.0
      %909 = vmatpush2.msra.mxu0 0.0
      %910 = vmatprep.subr.mxu0 0.0
      %911 = vmatpush2.msra.mxu0 0.0
      %912 = vmatprep.subr.mxu0 0.0
      %913 = vmatpush2.msra.mxu0 0.0
      %914 = vmatprep.subr.mxu0 0.0
      %915 = vmatpush2.msra.mxu0 0.0
      %916 = vmatprep.subr.mxu0 0.0
      %917 = vmatpush2.msra.mxu0 0.0
      %918 = vmatprep.mubr.f32.mxu0 0.0
      %919 = vmatmul.mubr.f32.gmra.mxu0 %v755
      %v920 = vpop.f32.mrf.mxu0
      %v921 = vadd.f32 0.0, %v920
      %v922 = vpop.f32.mrf.mxu0
      %923 = vmatprep.mubr.f32.mxu0 0.0
      %924 = vmatmul.mubr.f32.gmra.mxu0 %v758
      %v925 = vpop.f32.mrf.mxu0
      %v926 = vadd.f32 0.0, %v925
      %v927 = vpop.f32.mrf.mxu0
      %928 = vmatprep.mubr.f32.mxu0 0.0
      %929 = vmatmul.mubr.f32.gmra.mxu0 %v761
      %v930 = vpop.f32.mrf.mxu0
      %v931 = vadd.f32 0.0, %v930
      %v932 = vpop.f32.mrf.mxu0
      %933 = vmatprep.mubr.f32.mxu0 0.0
      %934 = vmatmul.mubr.f32.gmra.mxu0 %v764
      %v935 = vpop.f32.mrf.mxu0
      %v936 = vadd.f32 0.0, %v935
      %v937 = vpop.f32.mrf.mxu0
      %938 = vmatprep.mubr.f32.mxu0 0.0
      %939 = vmatmul.mubr.f32.gmra.mxu0 %v767
      %v940 = vpop.f32.mrf.mxu0
      %v941 = vadd.f32 0.0, %v940
      %v942 = vpop.f32.mrf.mxu0
      %943 = vmatprep.mubr.f32.mxu0 0.0
      %944 = vmatmul.mubr.f32.gmra.mxu0 %v770
      %v945 = vpop.f32.mrf.mxu0
      %v946 = vadd.f32 0.0, %v945
      %v947 = vpop.f32.mrf.mxu0
      %948 = vmatprep.mubr.f32.mxu0 0.0
      %949 = vmatmul.mubr.f32.gmra.mxu0 %v773
      %v950 = vpop.f32.mrf.mxu0
      %v951 = vadd.f32 0.0, %v950
      %v952 = vpop.f32.mrf.mxu0
      %953 = vmatprep.mubr.f32.mxu0 0.0
      %954 = vmatmul.mubr.f32.gmra.mxu0 %v776
      %v955 = vpop.f32.mrf.mxu0
      %v956 = vadd.f32 0.0, %v955
      %v957 = vpop.f32.mrf.mxu0
      %958 = vmatprep.mubr.f32.mxu0 0.0
      %959 = vmatmul.mubr.f32.gmra.mxu0 %v779
      %v960 = vpop.f32.mrf.mxu0
      %v961 = vadd.f32 0.0, %v960
      %v962 = vpop.f32.mrf.mxu0
      %963 = vmatprep.mubr.f32.mxu0 0.0
      %964 = vmatmul.mubr.f32.gmra.mxu0 %v782
      %v965 = vpop.f32.mrf.mxu0
      %v966 = vadd.f32 0.0, %v965
      %v967 = vpop.f32.mrf.mxu0
      %968 = vmatprep.mubr.f32.mxu0 0.0
      %969 = vmatmul.mubr.f32.gmra.mxu0 %v785
      %v970 = vpop.f32.mrf.mxu0
      %v971 = vadd.f32 0.0, %v970
      %v972 = vpop.f32.mrf.mxu0
      %973 = vmatprep.mubr.f32.mxu0 0.0
      %974 = vmatmul.mubr.f32.gmra.mxu0 %v788
      %v975 = vpop.f32.mrf.mxu0
      %v976 = vadd.f32 0.0, %v975
      %v977 = vpop.f32.mrf.mxu0
      %978 = vmatprep.mubr.f32.mxu0 0.0
      %979 = vmatmul.mubr.f32.gmra.mxu0 %v791
      %v980 = vpop.f32.mrf.mxu0
      %v981 = vadd.f32 0.0, %v980
      %v982 = vpop.f32.mrf.mxu0
      %983 = vmatprep.mubr.f32.mxu0 0.0
      %984 = vmatmul.mubr.f32.gmra.mxu0 %v794
      %v985 = vpop.f32.mrf.mxu0
      %v986 = vadd.f32 0.0, %v985
      %v987 = vpop.f32.mrf.mxu0
      %988 = vmatprep.mubr.f32.mxu0 0.0
      %989 = vmatmul.mubr.f32.gmra.mxu0 %v797
      %v990 = vpop.f32.mrf.mxu0
      %v991 = vadd.f32 0.0, %v990
      %v992 = vpop.f32.mrf.mxu0
      %993 = vmatprep.mubr.f32.mxu0 0.0
      %994 = vmatmul.mubr.f32.gmra.mxu0 %v800
      %v995 = vpop.f32.mrf.mxu0
      %v996 = vadd.f32 0.0, %v995
      %v997 = vpop.f32.mrf.mxu0
      %998 = vmatprep.mubr.f32.mxu0 0.0
      %999 = vmatmul.mubr.f32.gmra.mxu0 %v803
      %v1000 = vpop.f32.mrf.mxu0
      %v1001 = vadd.f32 0.0, %v1000
      %v1002 = vpop.f32.mrf.mxu0
      %1003 = vmatprep.mubr.f32.mxu0 0.0
      %1004 = vmatmul.mubr.f32.gmra.mxu0 %v806
      %v1005 = vpop.f32.mrf.mxu0
      %v1006 = vadd.f32 0.0, %v1005
      %v1007 = vpop.f32.mrf.mxu0
      %1008 = vmatprep.mubr.f32.mxu0 0.0
      %1009 = vmatmul.mubr.f32.gmra.mxu0 %v809
      %v1010 = vpop.f32.mrf.mxu0
      %v1011 = vadd.f32 0.0, %v1010
      %v1012 = vpop.f32.mrf.mxu0
      %1013 = vmatprep.mubr.f32.mxu0 0.0
      %1014 = vmatmul.mubr.f32.gmra.mxu0 %v812
      %v1015 = vpop.f32.mrf.mxu0
      %v1016 = vadd.f32 0.0, %v1015
      %v1017 = vpop.f32.mrf.mxu0
      %1018 = vmatprep.mubr.f32.mxu0 0.0
      %1019 = vmatmul.mubr.f32.gmra.mxu0 %v815
      %v1020 = vpop.f32.mrf.mxu0
      %v1021 = vadd.f32 0.0, %v1020
      %v1022 = vpop.f32.mrf.mxu0
      %1023 = vmatprep.mubr.f32.mxu0 0.0
      %1024 = vmatmul.mubr.f32.gmra.mxu0 %v818
      %v1025 = vpop.f32.mrf.mxu0
      %v1026 = vadd.f32 0.0, %v1025
      %v1027 = vpop.f32.mrf.mxu0
      %1028 = vmatprep.mubr.f32.mxu0 0.0
      %1029 = vmatmul.mubr.f32.gmra.mxu0 %v821
      %v1030 = vpop.f32.mrf.mxu0
      %v1031 = vadd.f32 0.0, %v1030
      %v1032 = vpop.f32.mrf.mxu0
      %1033 = vmatprep.mubr.f32.mxu0 0.0
      %1034 = vmatmul.mubr.f32.gmra.mxu0 %v824
      %v1035 = vpop.f32.mrf.mxu0
      %v1036 = vadd.f32 0.0, %v1035
      %v1037 = vpop.f32.mrf.mxu0
      %1038 = vmatprep.mubr.f32.mxu0 0.0
      %1039 = vmatmul.mubr.f32.gmra.mxu0 %v827
      %v1040 = vpop.f32.mrf.mxu0
      %v1041 = vadd.f32 0.0, %v1040
      %v1042 = vpop.f32.mrf.mxu0
      %1043 = vmatprep.mubr.f32.mxu0 0.0
      %1044 = vmatmul.mubr.f32.gmra.mxu0 %v830
      %v1045 = vpop.f32.mrf.mxu0
      %v1046 = vadd.f32 0.0, %v1045
      %v1047 = vpop.f32.mrf.mxu0
      %1048 = vmatprep.mubr.f32.mxu0 0.0
      %1049 = vmatmul.mubr.f32.gmra.mxu0 %v833
      %v1050 = vpop.f32.mrf.mxu0
      %v1051 = vadd.f32 0.0, %v1050
      %v1052 = vpop.f32.mrf.mxu0
      %1053 = vmatprep.mubr.f32.mxu0 0.0
      %1054 = vmatmul.mubr.f32.gmra.mxu0 %v836
      %v1055 = vpop.f32.mrf.mxu0
      %v1056 = vadd.f32 0.0, %v1055
      %v1057 = vpop.f32.mrf.mxu0
      %1058 = vmatprep.mubr.f32.mxu0 0.0
      %1059 = vmatmul.mubr.f32.gmra.mxu0 %v839
      %v1060 = vpop.f32.mrf.mxu0
      %v1061 = vadd.f32 0.0, %v1060
      %v1062 = vpop.f32.mrf.mxu0
      %1063 = vmatprep.mubr.f32.mxu0 0.0
      %1064 = vmatmul.mubr.f32.gmra.mxu0 %v842
      %v1065 = vpop.f32.mrf.mxu0
      %v1066 = vadd.f32 0.0, %v1065
      %v1067 = vpop.f32.mrf.mxu0
      %1068 = vmatprep.mubr.f32.mxu0 0.0
      %1069 = vmatmul.mubr.f32.gmra.mxu0 %v845
      %v1070 = vpop.f32.mrf.mxu0
      %v1071 = vadd.f32 0.0, %v1070
      %v1072 = vpop.f32.mrf.mxu0
      %1073 = vmatprep.mubr.f32.mxu0 0.0
      %1074 = vmatmul.mubr.f32.gmra.mxu0 %v848
      %v1075 = vpop.f32.mrf.mxu0
      %v1076 = vadd.f32 0.0, %v1075
      %v1077 = vpop.f32.mrf.mxu0
      %1078 = vdwg.mxu0
      %v1080 = vsel %vm619, %v718, 0
      %v1083 = vsel %vm619, %v719, 0
      %v1086 = vsel %vm850, %v708, 0
      %1088 = vmatprep.subr.mxu0 0.0
      %1089 = vmatpush1.msra.mxu0 0.0
      %1090 = vmatprep.subr.mxu0 0.0
      %1091 = vmatpush1.msra.mxu0 0.0
      %1092 = vmatprep.subr.mxu0 0.0
      %1093 = vmatpush1.msra.mxu0 0.0
      %1094 = vmatprep.subr.mxu0 0.0
      %1095 = vmatpush1.msra.mxu0 0.0
      %1096 = vmatprep.subr.mxu0 0.0
      %1097 = vmatpush1.msra.mxu0 0.0
      %1098 = vmatprep.subr.mxu0 0.0
      %1099 = vmatpush1.msra.mxu0 0.0
      %1100 = vmatprep.subr.mxu0 0.0
      %1101 = vmatpush1.msra.mxu0 0.0
      %1102 = vmatprep.subr.mxu0 0.0
      %1103 = vmatpush1.msra.mxu0 0.0
      %1104 = vmatprep.subr.mxu0 0.0
      %1105 = vmatpush1.msra.mxu0 0.0
      %1106 = vmatprep.subr.mxu0 0.0
      %1107 = vmatpush1.msra.mxu0 0.0
      %1108 = vmatprep.subr.mxu0 0.0
      %1109 = vmatpush1.msra.mxu0 0.0
      %1110 = vmatprep.subr.mxu0 0.0
      %1111 = vmatpush1.msra.mxu0 0.0
      %1112 = vmatprep.subr.mxu0 0.0
      %1113 = vmatpush1.msra.mxu0 0.0
      %1114 = vmatprep.subr.mxu0 0.0
      %1115 = vmatpush1.msra.mxu0 0.0
      %1116 = vmatprep.subr.mxu0 0.0
      %1117 = vmatpush1.msra.mxu0 0.0
      %1118 = vmatprep.subr.mxu0 0.0
      %1119 = vmatpush1.msra.mxu0 %v1086
      %1120 = vmatprep.subr.mxu0 0.0
      %1121 = vmatpush2.msra.mxu0 0.0
      %1122 = vmatprep.subr.mxu0 0.0
      %1123 = vmatpush2.msra.mxu0 0.0
      %1124 = vmatprep.subr.mxu0 0.0
      %1125 = vmatpush2.msra.mxu0 0.0
      %1126 = vmatprep.subr.mxu0 0.0
      %1127 = vmatpush2.msra.mxu0 0.0
      %1128 = vmatprep.subr.mxu0 0.0
      %1129 = vmatpush2.msra.mxu0 0.0
      %1130 = vmatprep.subr.mxu0 0.0
      %1131 = vmatpush2.msra.mxu0 0.0
      %1132 = vmatprep.subr.mxu0 0.0
      %1133 = vmatpush2.msra.mxu0 0.0
      %1134 = vmatprep.subr.mxu0 0.0
      %1135 = vmatpush2.msra.mxu0 0.0
      %1136 = vmatprep.subr.mxu0 0.0
      %1137 = vmatpush2.msra.mxu0 0.0
      %1138 = vmatprep.subr.mxu0 0.0
      %1139 = vmatpush2.msra.mxu0 0.0
      %1140 = vmatprep.subr.mxu0 0.0
      %1141 = vmatpush2.msra.mxu0 0.0
      %1142 = vmatprep.subr.mxu0 0.0
      %1143 = vmatpush2.msra.mxu0 0.0
      %1144 = vmatprep.subr.mxu0 0.0
      %1145 = vmatpush2.msra.mxu0 0.0
      %1146 = vmatprep.subr.mxu0 0.0
      %1147 = vmatpush2.msra.mxu0 0.0
      %1148 = vmatprep.subr.mxu0 0.0
      %1149 = vmatpush2.msra.mxu0 0.0
      %1150 = vmatprep.subr.mxu0 0.0
      %1151 = vmatpush2.msra.mxu0 0.0
      %1152 = vmatprep.mubr.f32.mxu0 0.0
      %1153 = vmatmul.mubr.f32.gmra.mxu0 %v1080
      %v1154 = vpop.f32.mrf.mxu0
      %v1155 = vadd.f32 %v921, %v1154
      %v1156 = vpop.f32.mrf.mxu0
      %1157 = vmatprep.mubr.f32.mxu0 0.0
      %1158 = vmatmul.mubr.f32.gmra.mxu0 %v1083
      %v1159 = vpop.f32.mrf.mxu0
      %v1160 = vadd.f32 %v926, %v1159
      %v1161 = vpop.f32.mrf.mxu0
      %1162 = vmatprep.mubr.f32.mxu0 0.0
      %1163 = vmatmul.mubr.f32.gmra.mxu0 %v755
      %v1164 = vpop.f32.mrf.mxu0
      %v1165 = vadd.f32 %v931, %v1164
      %v1166 = vpop.f32.mrf.mxu0
      %1167 = vmatprep.mubr.f32.mxu0 0.0
      %1168 = vmatmul.mubr.f32.gmra.mxu0 %v758
      %v1169 = vpop.f32.mrf.mxu0
      %v1170 = vadd.f32 %v936, %v1169
      %v1171 = vpop.f32.mrf.mxu0
      %1172 = vmatprep.mubr.f32.mxu0 0.0
      %1173 = vmatmul.mubr.f32.gmra.mxu0 %v761
      %v1174 = vpop.f32.mrf.mxu0
      %v1175 = vadd.f32 %v941, %v1174
      %v1176 = vpop.f32.mrf.mxu0
      %1177 = vmatprep.mubr.f32.mxu0 0.0
      %1178 = vmatmul.mubr.f32.gmra.mxu0 %v764
      %v1179 = vpop.f32.mrf.mxu0
      %v1180 = vadd.f32 %v946, %v1179
      %v1181 = vpop.f32.mrf.mxu0
      %1182 = vmatprep.mubr.f32.mxu0 0.0
      %1183 = vmatmul.mubr.f32.gmra.mxu0 %v767
      %v1184 = vpop.f32.mrf.mxu0
      %v1185 = vadd.f32 %v951, %v1184
      %v1186 = vpop.f32.mrf.mxu0
      %1187 = vmatprep.mubr.f32.mxu0 0.0
      %1188 = vmatmul.mubr.f32.gmra.mxu0 %v770
      %v1189 = vpop.f32.mrf.mxu0
      %v1190 = vadd.f32 %v956, %v1189
      %v1191 = vpop.f32.mrf.mxu0
      %1192 = vmatprep.mubr.f32.mxu0 0.0
      %1193 = vmatmul.mubr.f32.gmra.mxu0 %v773
      %v1194 = vpop.f32.mrf.mxu0
      %v1195 = vadd.f32 %v961, %v1194
      %v1196 = vpop.f32.mrf.mxu0
      %1197 = vmatprep.mubr.f32.mxu0 0.0
      %1198 = vmatmul.mubr.f32.gmra.mxu0 %v776
      %v1199 = vpop.f32.mrf.mxu0
      %v1200 = vadd.f32 %v966, %v1199
      %v1201 = vpop.f32.mrf.mxu0
      %1202 = vmatprep.mubr.f32.mxu0 0.0
      %1203 = vmatmul.mubr.f32.gmra.mxu0 %v779
      %v1204 = vpop.f32.mrf.mxu0
      %v1205 = vadd.f32 %v971, %v1204
      %v1206 = vpop.f32.mrf.mxu0
      %1207 = vmatprep.mubr.f32.mxu0 0.0
      %1208 = vmatmul.mubr.f32.gmra.mxu0 %v782
      %v1209 = vpop.f32.mrf.mxu0
      %v1210 = vadd.f32 %v976, %v1209
      %v1211 = vpop.f32.mrf.mxu0
      %1212 = vmatprep.mubr.f32.mxu0 0.0
      %1213 = vmatmul.mubr.f32.gmra.mxu0 %v785
      %v1214 = vpop.f32.mrf.mxu0
      %v1215 = vadd.f32 %v981, %v1214
      %v1216 = vpop.f32.mrf.mxu0
      %1217 = vmatprep.mubr.f32.mxu0 0.0
      %1218 = vmatmul.mubr.f32.gmra.mxu0 %v788
      %v1219 = vpop.f32.mrf.mxu0
      %v1220 = vadd.f32 %v986, %v1219
      %v1221 = vpop.f32.mrf.mxu0
      %1222 = vmatprep.mubr.f32.mxu0 0.0
      %1223 = vmatmul.mubr.f32.gmra.mxu0 %v791
      %v1224 = vpop.f32.mrf.mxu0
      %v1225 = vadd.f32 %v991, %v1224
      %v1226 = vpop.f32.mrf.mxu0
      %1227 = vmatprep.mubr.f32.mxu0 0.0
      %1228 = vmatmul.mubr.f32.gmra.mxu0 %v794
      %v1229 = vpop.f32.mrf.mxu0
      %v1230 = vadd.f32 %v996, %v1229
      %v1231 = vpop.f32.mrf.mxu0
      %1232 = vmatprep.mubr.f32.mxu0 0.0
      %1233 = vmatmul.mubr.f32.gmra.mxu0 %v797
      %v1234 = vpop.f32.mrf.mxu0
      %v1235 = vadd.f32 %v1001, %v1234
      %v1236 = vpop.f32.mrf.mxu0
      %1237 = vmatprep.mubr.f32.mxu0 0.0
      %1238 = vmatmul.mubr.f32.gmra.mxu0 %v800
      %v1239 = vpop.f32.mrf.mxu0
      %v1240 = vadd.f32 %v1006, %v1239
      %v1241 = vpop.f32.mrf.mxu0
      %1242 = vmatprep.mubr.f32.mxu0 0.0
      %1243 = vmatmul.mubr.f32.gmra.mxu0 %v803
      %v1244 = vpop.f32.mrf.mxu0
      %v1245 = vadd.f32 %v1011, %v1244
      %v1246 = vpop.f32.mrf.mxu0
      %1247 = vmatprep.mubr.f32.mxu0 0.0
      %1248 = vmatmul.mubr.f32.gmra.mxu0 %v806
      %v1249 = vpop.f32.mrf.mxu0
      %v1250 = vadd.f32 %v1016, %v1249
      %v1251 = vpop.f32.mrf.mxu0
      %1252 = vmatprep.mubr.f32.mxu0 0.0
      %1253 = vmatmul.mubr.f32.gmra.mxu0 %v809
      %v1254 = vpop.f32.mrf.mxu0
      %v1255 = vadd.f32 %v1021, %v1254
      %v1256 = vpop.f32.mrf.mxu0
      %1257 = vmatprep.mubr.f32.mxu0 0.0
      %1258 = vmatmul.mubr.f32.gmra.mxu0 %v812
      %v1259 = vpop.f32.mrf.mxu0
      %v1260 = vadd.f32 %v1026, %v1259
      %v1261 = vpop.f32.mrf.mxu0
      %1262 = vmatprep.mubr.f32.mxu0 0.0
      %1263 = vmatmul.mubr.f32.gmra.mxu0 %v815
      %v1264 = vpop.f32.mrf.mxu0
      %v1265 = vadd.f32 %v1031, %v1264
      %v1266 = vpop.f32.mrf.mxu0
      %1267 = vmatprep.mubr.f32.mxu0 0.0
      %1268 = vmatmul.mubr.f32.gmra.mxu0 %v818
      %v1269 = vpop.f32.mrf.mxu0
      %v1270 = vadd.f32 %v1036, %v1269
      %v1271 = vpop.f32.mrf.mxu0
      %1272 = vmatprep.mubr.f32.mxu0 0.0
      %1273 = vmatmul.mubr.f32.gmra.mxu0 %v821
      %v1274 = vpop.f32.mrf.mxu0
      %v1275 = vadd.f32 %v1041, %v1274
      %v1276 = vpop.f32.mrf.mxu0
      %1277 = vmatprep.mubr.f32.mxu0 0.0
      %1278 = vmatmul.mubr.f32.gmra.mxu0 %v824
      %v1279 = vpop.f32.mrf.mxu0
      %v1280 = vadd.f32 %v1046, %v1279
      %v1281 = vpop.f32.mrf.mxu0
      %1282 = vmatprep.mubr.f32.mxu0 0.0
      %1283 = vmatmul.mubr.f32.gmra.mxu0 %v827
      %v1284 = vpop.f32.mrf.mxu0
      %v1285 = vadd.f32 %v1051, %v1284
      %v1286 = vpop.f32.mrf.mxu0
      %1287 = vmatprep.mubr.f32.mxu0 0.0
      %1288 = vmatmul.mubr.f32.gmra.mxu0 %v830
      %v1289 = vpop.f32.mrf.mxu0
      %v1290 = vadd.f32 %v1056, %v1289
      %v1291 = vpop.f32.mrf.mxu0
      %1292 = vmatprep.mubr.f32.mxu0 0.0
      %1293 = vmatmul.mubr.f32.gmra.mxu0 %v833
      %v1294 = vpop.f32.mrf.mxu0
      %v1295 = vadd.f32 %v1061, %v1294
      %v1296 = vpop.f32.mrf.mxu0
      %1297 = vmatprep.mubr.f32.mxu0 0.0
      %1298 = vmatmul.mubr.f32.gmra.mxu0 %v836
      %v1299 = vpop.f32.mrf.mxu0
      %v1300 = vadd.f32 %v1066, %v1299
      %v1301 = vpop.f32.mrf.mxu0
      %1302 = vmatprep.mubr.f32.mxu0 0.0
      %1303 = vmatmul.mubr.f32.gmra.mxu0 %v839
      %v1304 = vpop.f32.mrf.mxu0
      %v1305 = vadd.f32 %v1071, %v1304
      %v1306 = vpop.f32.mrf.mxu0
      %1307 = vmatprep.mubr.f32.mxu0 0.0
      %1308 = vmatmul.mubr.f32.gmra.mxu0 %v842
      %v1309 = vpop.f32.mrf.mxu0
      %v1310 = vadd.f32 %v1076, %v1309
      %v1311 = vpop.f32.mrf.mxu0
      %1312 = vdwg.mxu0
      %v1314 = vsel %vm619, %v752, 0
      %v1317 = vsel %vm619, %v753, 0
      %v1320 = vsel %vm850, %v714, 0
      %1322 = vmatprep.subr.mxu0 0.0
      %1323 = vmatpush1.msra.mxu0 0.0
      %1324 = vmatprep.subr.mxu0 0.0
      %1325 = vmatpush1.msra.mxu0 0.0
      %1326 = vmatprep.subr.mxu0 0.0
      %1327 = vmatpush1.msra.mxu0 0.0
      %1328 = vmatprep.subr.mxu0 0.0
      %1329 = vmatpush1.msra.mxu0 0.0
      %1330 = vmatprep.subr.mxu0 0.0
      %1331 = vmatpush1.msra.mxu0 0.0
      %1332 = vmatprep.subr.mxu0 0.0
      %1333 = vmatpush1.msra.mxu0 0.0
      %1334 = vmatprep.subr.mxu0 0.0
      %1335 = vmatpush1.msra.mxu0 0.0
      %1336 = vmatprep.subr.mxu0 0.0
      %1337 = vmatpush1.msra.mxu0 0.0
      %1338 = vmatprep.subr.mxu0 0.0
      %1339 = vmatpush1.msra.mxu0 0.0
      %1340 = vmatprep.subr.mxu0 0.0
      %1341 = vmatpush1.msra.mxu0 0.0
      %1342 = vmatprep.subr.mxu0 0.0
      %1343 = vmatpush1.msra.mxu0 0.0
      %1344 = vmatprep.subr.mxu0 0.0
      %1345 = vmatpush1.msra.mxu0 0.0
      %1346 = vmatprep.subr.mxu0 0.0
      %1347 = vmatpush1.msra.mxu0 0.0
      %1348 = vmatprep.subr.mxu0 0.0
      %1349 = vmatpush1.msra.mxu0 0.0
      %1350 = vmatprep.subr.mxu0 0.0
      %1351 = vmatpush1.msra.mxu0 0.0
      %1352 = vmatprep.subr.mxu0 0.0
      %1353 = vmatpush1.msra.mxu0 %v1320
      %1354 = vmatprep.subr.mxu0 0.0
      %1355 = vmatpush2.msra.mxu0 0.0
      %1356 = vmatprep.subr.mxu0 0.0
      %1357 = vmatpush2.msra.mxu0 0.0
      %1358 = vmatprep.subr.mxu0 0.0
      %1359 = vmatpush2.msra.mxu0 0.0
      %1360 = vmatprep.subr.mxu0 0.0
      %1361 = vmatpush2.msra.mxu0 0.0
      %1362 = vmatprep.subr.mxu0 0.0
      %1363 = vmatpush2.msra.mxu0 0.0
      %1364 = vmatprep.subr.mxu0 0.0
      %1365 = vmatpush2.msra.mxu0 0.0
      %1366 = vmatprep.subr.mxu0 0.0
      %1367 = vmatpush2.msra.mxu0 0.0
      %1368 = vmatprep.subr.mxu0 0.0
      %1369 = vmatpush2.msra.mxu0 0.0
      %1370 = vmatprep.subr.mxu0 0.0
      %1371 = vmatpush2.msra.mxu0 0.0
      %1372 = vmatprep.subr.mxu0 0.0
      %1373 = vmatpush2.msra.mxu0 0.0
      %1374 = vmatprep.subr.mxu0 0.0
      %1375 = vmatpush2.msra.mxu0 0.0
      %1376 = vmatprep.subr.mxu0 0.0
      %1377 = vmatpush2.msra.mxu0 0.0
      %1378 = vmatprep.subr.mxu0 0.0
      %1379 = vmatpush2.msra.mxu0 0.0
      %1380 = vmatprep.subr.mxu0 0.0
      %1381 = vmatpush2.msra.mxu0 0.0
      %1382 = vmatprep.subr.mxu0 0.0
      %1383 = vmatpush2.msra.mxu0 0.0
      %1384 = vmatprep.subr.mxu0 0.0
      %1385 = vmatpush2.msra.mxu0 0.0
      %1386 = vmatprep.mubr.f32.mxu0 0.0
      %1387 = vmatmul.mubr.f32.gmra.mxu0 %v761
      %v1388 = vpop.f32.mrf.mxu0
      %v1389 = vadd.f32 0.0, %v1388
      %v1390 = vpop.f32.mrf.mxu0
      %1391 = vmatprep.mubr.f32.mxu0 0.0
      %1392 = vmatmul.mubr.f32.gmra.mxu0 %v764
      %v1393 = vpop.f32.mrf.mxu0
      %v1394 = vadd.f32 0.0, %v1393
      %v1395 = vpop.f32.mrf.mxu0
      %1396 = vmatprep.mubr.f32.mxu0 0.0
      %1397 = vmatmul.mubr.f32.gmra.mxu0 %v767
      %v1398 = vpop.f32.mrf.mxu0
      %v1399 = vadd.f32 0.0, %v1398
      %v1400 = vpop.f32.mrf.mxu0
      %1401 = vmatprep.mubr.f32.mxu0 0.0
      %1402 = vmatmul.mubr.f32.gmra.mxu0 %v770
      %v1403 = vpop.f32.mrf.mxu0
      %v1404 = vadd.f32 0.0, %v1403
      %v1405 = vpop.f32.mrf.mxu0
      %1406 = vmatprep.mubr.f32.mxu0 0.0
      %1407 = vmatmul.mubr.f32.gmra.mxu0 %v773
      %v1408 = vpop.f32.mrf.mxu0
      %v1409 = vadd.f32 0.0, %v1408
      %v1410 = vpop.f32.mrf.mxu0
      %1411 = vmatprep.mubr.f32.mxu0 0.0
      %1412 = vmatmul.mubr.f32.gmra.mxu0 %v776
      %v1413 = vpop.f32.mrf.mxu0
      %v1414 = vadd.f32 0.0, %v1413
      %v1415 = vpop.f32.mrf.mxu0
      %1416 = vmatprep.mubr.f32.mxu0 0.0
      %1417 = vmatmul.mubr.f32.gmra.mxu0 %v779
      %v1418 = vpop.f32.mrf.mxu0
      %v1419 = vadd.f32 0.0, %v1418
      %v1420 = vpop.f32.mrf.mxu0
      %1421 = vmatprep.mubr.f32.mxu0 0.0
      %1422 = vmatmul.mubr.f32.gmra.mxu0 %v782
      %v1423 = vpop.f32.mrf.mxu0
      %v1424 = vadd.f32 0.0, %v1423
      %v1425 = vpop.f32.mrf.mxu0
      %1426 = vmatprep.mubr.f32.mxu0 0.0
      %1427 = vmatmul.mubr.f32.gmra.mxu0 %v785
      %v1428 = vpop.f32.mrf.mxu0
      %v1429 = vadd.f32 0.0, %v1428
      %v1430 = vpop.f32.mrf.mxu0
      %1431 = vmatprep.mubr.f32.mxu0 0.0
      %1432 = vmatmul.mubr.f32.gmra.mxu0 %v788
      %v1433 = vpop.f32.mrf.mxu0
      %v1434 = vadd.f32 0.0, %v1433
      %v1435 = vpop.f32.mrf.mxu0
      %1436 = vmatprep.mubr.f32.mxu0 0.0
      %1437 = vmatmul.mubr.f32.gmra.mxu0 %v791
      %v1438 = vpop.f32.mrf.mxu0
      %v1439 = vadd.f32 0.0, %v1438
      %v1440 = vpop.f32.mrf.mxu0
      %1441 = vmatprep.mubr.f32.mxu0 0.0
      %1442 = vmatmul.mubr.f32.gmra.mxu0 %v794
      %v1443 = vpop.f32.mrf.mxu0
      %v1444 = vadd.f32 0.0, %v1443
      %v1445 = vpop.f32.mrf.mxu0
      %1446 = vmatprep.mubr.f32.mxu0 0.0
      %1447 = vmatmul.mubr.f32.gmra.mxu0 %v797
      %v1448 = vpop.f32.mrf.mxu0
      %v1449 = vadd.f32 0.0, %v1448
      %v1450 = vpop.f32.mrf.mxu0
      %1451 = vmatprep.mubr.f32.mxu0 0.0
      %1452 = vmatmul.mubr.f32.gmra.mxu0 %v800
      %v1453 = vpop.f32.mrf.mxu0
      %v1454 = vadd.f32 0.0, %v1453
      %v1455 = vpop.f32.mrf.mxu0
      %1456 = vmatprep.mubr.f32.mxu0 0.0
      %1457 = vmatmul.mubr.f32.gmra.mxu0 %v803
      %v1458 = vpop.f32.mrf.mxu0
      %v1459 = vadd.f32 0.0, %v1458
      %v1460 = vpop.f32.mrf.mxu0
      %1461 = vmatprep.mubr.f32.mxu0 0.0
      %1462 = vmatmul.mubr.f32.gmra.mxu0 %v806
      %v1463 = vpop.f32.mrf.mxu0
      %v1464 = vadd.f32 0.0, %v1463
      %v1465 = vpop.f32.mrf.mxu0
      %1466 = vmatprep.mubr.f32.mxu0 0.0
      %1467 = vmatmul.mubr.f32.gmra.mxu0 %v809
      %v1468 = vpop.f32.mrf.mxu0
      %v1469 = vadd.f32 0.0, %v1468
      %v1470 = vpop.f32.mrf.mxu0
      %1471 = vmatprep.mubr.f32.mxu0 0.0
      %1472 = vmatmul.mubr.f32.gmra.mxu0 %v812
      %v1473 = vpop.f32.mrf.mxu0
      %v1474 = vadd.f32 0.0, %v1473
      %v1475 = vpop.f32.mrf.mxu0
      %1476 = vmatprep.mubr.f32.mxu0 0.0
      %1477 = vmatmul.mubr.f32.gmra.mxu0 %v815
      %v1478 = vpop.f32.mrf.mxu0
      %v1479 = vadd.f32 0.0, %v1478
      %v1480 = vpop.f32.mrf.mxu0
      %1481 = vmatprep.mubr.f32.mxu0 0.0
      %1482 = vmatmul.mubr.f32.gmra.mxu0 %v818
      %v1483 = vpop.f32.mrf.mxu0
      %v1484 = vadd.f32 0.0, %v1483
      %v1485 = vpop.f32.mrf.mxu0
      %1486 = vmatprep.mubr.f32.mxu0 0.0
      %1487 = vmatmul.mubr.f32.gmra.mxu0 %v821
      %v1488 = vpop.f32.mrf.mxu0
      %v1489 = vadd.f32 0.0, %v1488
      %v1490 = vpop.f32.mrf.mxu0
      %1491 = vmatprep.mubr.f32.mxu0 0.0
      %1492 = vmatmul.mubr.f32.gmra.mxu0 %v824
      %v1493 = vpop.f32.mrf.mxu0
      %v1494 = vadd.f32 0.0, %v1493
      %v1495 = vpop.f32.mrf.mxu0
      %1496 = vmatprep.mubr.f32.mxu0 0.0
      %1497 = vmatmul.mubr.f32.gmra.mxu0 %v827
      %v1498 = vpop.f32.mrf.mxu0
      %v1499 = vadd.f32 0.0, %v1498
      %v1500 = vpop.f32.mrf.mxu0
      %1501 = vmatprep.mubr.f32.mxu0 0.0
      %1502 = vmatmul.mubr.f32.gmra.mxu0 %v830
      %v1503 = vpop.f32.mrf.mxu0
      %v1504 = vadd.f32 0.0, %v1503
      %v1505 = vpop.f32.mrf.mxu0
      %1506 = vmatprep.mubr.f32.mxu0 0.0
      %1507 = vmatmul.mubr.f32.gmra.mxu0 %v833
      %v1508 = vpop.f32.mrf.mxu0
      %v1509 = vadd.f32 0.0, %v1508
      %v1510 = vpop.f32.mrf.mxu0
      %1511 = vmatprep.mubr.f32.mxu0 0.0
      %1512 = vmatmul.mubr.f32.gmra.mxu0 %v836
      %v1513 = vpop.f32.mrf.mxu0
      %v1514 = vadd.f32 0.0, %v1513
      %v1515 = vpop.f32.mrf.mxu0
      %1516 = vmatprep.mubr.f32.mxu0 0.0
      %1517 = vmatmul.mubr.f32.gmra.mxu0 %v839
      %v1518 = vpop.f32.mrf.mxu0
      %v1519 = vadd.f32 0.0, %v1518
      %v1520 = vpop.f32.mrf.mxu0
      %1521 = vmatprep.mubr.f32.mxu0 0.0
      %1522 = vmatmul.mubr.f32.gmra.mxu0 %v842
      %v1523 = vpop.f32.mrf.mxu0
      %v1524 = vadd.f32 0.0, %v1523
      %v1525 = vpop.f32.mrf.mxu0
      %1526 = vmatprep.mubr.f32.mxu0 0.0
      %1527 = vmatmul.mubr.f32.gmra.mxu0 %v845
      %v1528 = vpop.f32.mrf.mxu0
      %v1529 = vadd.f32 0.0, %v1528
      %v1530 = vpop.f32.mrf.mxu0
      %1531 = vmatprep.mubr.f32.mxu0 0.0
      %1532 = vmatmul.mubr.f32.gmra.mxu0 %v848
      %v1533 = vpop.f32.mrf.mxu0
      %v1534 = vadd.f32 0.0, %v1533
      %v1535 = vpop.f32.mrf.mxu0
      %1536 = vmatprep.mubr.f32.mxu0 0.0
      %1537 = vmatmul.mubr.f32.gmra.mxu0 %v1314
      %v1538 = vpop.f32.mrf.mxu0
      %v1539 = vadd.f32 0.0, %v1538
      %v1540 = vpop.f32.mrf.mxu0
      %1541 = vmatprep.mubr.f32.mxu0 0.0
      %1542 = vmatmul.mubr.f32.gmra.mxu0 %v1317
      %v1543 = vpop.f32.mrf.mxu0
      %v1544 = vadd.f32 0.0, %v1543
      %v1545 = vpop.f32.mrf.mxu0
      %1546 = vdwg.mxu0
      %v1547 = vadd.f32 %v1155, %v1389
      %v1548 = vadd.f32 %v1160, %v1394
      %v1549 = vadd.f32 %v1165, %v1399
      %v1550 = vadd.f32 %v1170, %v1404
      %v1551 = vadd.f32 %v1175, %v1409
      %v1552 = vadd.f32 %v1180, %v1414
      %v1553 = vadd.f32 %v1185, %v1419
      %v1554 = vadd.f32 %v1190, %v1424
      %v1555 = vadd.f32 %v1195, %v1429
      %v1556 = vadd.f32 %v1200, %v1434
      %v1557 = vadd.f32 %v1205, %v1439
      %v1558 = vadd.f32 %v1210, %v1444
      %v1559 = vadd.f32 %v1215, %v1449
      %v1560 = vadd.f32 %v1220, %v1454
      %v1561 = vadd.f32 %v1225, %v1459
      %v1562 = vadd.f32 %v1230, %v1464
      %v1563 = vadd.f32 %v1235, %v1469
      %v1564 = vadd.f32 %v1240, %v1474
      %v1565 = vadd.f32 %v1245, %v1479
      %v1566 = vadd.f32 %v1250, %v1484
      %v1567 = vadd.f32 %v1255, %v1489
      %v1568 = vadd.f32 %v1260, %v1494
      %v1569 = vadd.f32 %v1265, %v1499
      %v1570 = vadd.f32 %v1270, %v1504
      %v1571 = vadd.f32 %v1275, %v1509
      %v1572 = vadd.f32 %v1280, %v1514
      %v1573 = vadd.f32 %v1285, %v1519
      %v1574 = vadd.f32 %v1290, %v1524
      %v1575 = vadd.f32 %v1295, %v1529
      %v1576 = vadd.f32 %v1300, %v1534
      %v1577 = vadd.f32 %v1305, %v1539
      %v1578 = vadd.f32 %v1310, %v1544
      %v1579 = vld [vmem:[#allocation2 + $0x1] sm:$0xff]
      %v1580 = vld [vmem:[#allocation2 + $0x9] sm:$0xff]
      %v1581 = vld [vmem:[#allocation2 + $0x19] sm:$0xff]
      %v1582 = vld [vmem:[#allocation2 + $0x21] sm:$0xff]
      %v1583 = vld [vmem:[#allocation2 + $0x31] sm:$0xff]
      %v1584 = vld [vmem:[#allocation2 + $0x39] sm:$0xff]
      %v1585 = vld [vmem:[#allocation2 + $0x49] sm:$0xff]
      %v1586 = vld [vmem:[#allocation2 + $0x51] sm:$0xff]
      %v1587 = vld [vmem:[#allocation2 + $0x61] sm:$0xff]
      %v1588 = vld [vmem:[#allocation2 + $0x69] sm:$0xff]
      %v1589 = vld [vmem:[#allocation2 + $0x79] sm:$0xff]
      %v1590 = vld [vmem:[#allocation2 + $0x81] sm:$0xff]
      %v1591 = vld [vmem:[#allocation2 + $0x91] sm:$0xff]
      %v1592 = vld [vmem:[#allocation2 + $0x99] sm:$0xff]
      %v1593 = vld [vmem:[#allocation2 + $0xa9] sm:$0xff]
      %v1594 = vld [vmem:[#allocation2 + $0xb1] sm:$0xff]
      %v1595 = vld [vmem:[#allocation2 + $0xc1] sm:$0xff]
      %v1596 = vld [vmem:[#allocation2 + $0xc9] sm:$0xff]
      %v1597 = vld [vmem:[#allocation2 + $0xd9] sm:$0xff]
      %v1598 = vld [vmem:[#allocation2 + $0xe1] sm:$0xff]
      %v1599 = vld [vmem:[#allocation2 + $0xf1] sm:$0xff]
      %v1600 = vld [vmem:[#allocation2 + $0xf9] sm:$0xff]
      %v1601 = vld [vmem:[#allocation2 + $0x109] sm:$0xff]
      %v1602 = vld [vmem:[#allocation2 + $0x111] sm:$0xff]
      %v1603 = vld [vmem:[#allocation2 + $0x121] sm:$0xff]
      %v1604 = vld [vmem:[#allocation2 + $0x129] sm:$0xff]
      %v1605 = vld [vmem:[#allocation2 + $0x139] sm:$0xff]
      %v1606 = vld [vmem:[#allocation2 + $0x141] sm:$0xff]
      %v1607 = vld [vmem:[#allocation2 + $0x151] sm:$0xff]
      %v1608 = vld [vmem:[#allocation2 + $0x159] sm:$0xff]
      %v1609 = vld [vmem:[#allocation2 + $0x169] sm:$0xff]
      %v1610 = vld [vmem:[#allocation2 + $0x171] sm:$0xff]
      %v1611 = vld [vmem:[#allocation2 + $0x181] sm:$0xff]
      %v1612 = vld [vmem:[#allocation2 + $0x189] sm:$0xff]
      %v1613 = vld [vmem:[#allocation2 + $0x199] sm:$0xff]
      %v1614 = vld [vmem:[#allocation2 + $0x1a1] sm:$0xff]
      %v1616 = vsel %vm619, %v1579, 0
      %v1619 = vsel %vm619, %v1580, 0
      %v1622 = vsel %vm619, %v1581, 0
      %v1625 = vsel %vm619, %v1582, 0
      %v1628 = vsel %vm619, %v1583, 0
      %v1631 = vsel %vm619, %v1584, 0
      %v1634 = vsel %vm619, %v1585, 0
      %v1637 = vsel %vm619, %v1586, 0
      %v1640 = vsel %vm619, %v1587, 0
      %v1643 = vsel %vm619, %v1588, 0
      %v1646 = vsel %vm619, %v1589, 0
      %v1649 = vsel %vm619, %v1590, 0
      %v1652 = vsel %vm619, %v1591, 0
      %v1655 = vsel %vm619, %v1592, 0
      %v1658 = vsel %vm619, %v1593, 0
      %v1661 = vsel %vm619, %v1594, 0
      %v1664 = vsel %vm619, %v1595, 0
      %v1667 = vsel %vm619, %v1596, 0
      %v1670 = vsel %vm619, %v1597, 0
      %v1673 = vsel %vm619, %v1598, 0
      %v1676 = vsel %vm619, %v1599, 0
      %v1679 = vsel %vm619, %v1600, 0
      %v1682 = vsel %vm619, %v1601, 0
      %v1685 = vsel %vm619, %v1602, 0
      %v1688 = vsel %vm619, %v1603, 0
      %v1691 = vsel %vm619, %v1604, 0
      %v1694 = vsel %vm619, %v1605, 0
      %v1697 = vsel %vm619, %v1606, 0
      %v1700 = vsel %vm619, %v1607, 0
      %v1703 = vsel %vm619, %v1608, 0
      %v1706 = vsel %vm619, %v1609, 0
      %v1709 = vsel %vm619, %v1610, 0
      %v1712 = vsel %vm850, %v709, 0
      %1714 = vmatprep.subr.mxu0 0.0
      %1715 = vmatpush1.msra.mxu0 0.0
      %1716 = vmatprep.subr.mxu0 0.0
      %1717 = vmatpush1.msra.mxu0 0.0
      %1718 = vmatprep.subr.mxu0 0.0
      %1719 = vmatpush1.msra.mxu0 0.0
      %1720 = vmatprep.subr.mxu0 0.0
      %1721 = vmatpush1.msra.mxu0 0.0
      %1722 = vmatprep.subr.mxu0 0.0
      %1723 = vmatpush1.msra.mxu0 0.0
      %1724 = vmatprep.subr.mxu0 0.0
      %1725 = vmatpush1.msra.mxu0 0.0
      %1726 = vmatprep.subr.mxu0 0.0
      %1727 = vmatpush1.msra.mxu0 0.0
      %1728 = vmatprep.subr.mxu0 0.0
      %1729 = vmatpush1.msra.mxu0 0.0
      %1730 = vmatprep.subr.mxu0 0.0
      %1731 = vmatpush1.msra.mxu0 0.0
      %1732 = vmatprep.subr.mxu0 0.0
      %1733 = vmatpush1.msra.mxu0 0.0
      %1734 = vmatprep.subr.mxu0 0.0
      %1735 = vmatpush1.msra.mxu0 0.0
      %1736 = vmatprep.subr.mxu0 0.0
      %1737 = vmatpush1.msra.mxu0 0.0
      %1738 = vmatprep.subr.mxu0 0.0
      %1739 = vmatpush1.msra.mxu0 0.0
      %1740 = vmatprep.subr.mxu0 0.0
      %1741 = vmatpush1.msra.mxu0 0.0
      %1742 = vmatprep.subr.mxu0 0.0
      %1743 = vmatpush1.msra.mxu0 0.0
      %1744 = vmatprep.subr.mxu0 0.0
      %1745 = vmatpush1.msra.mxu0 %v1712
      %1746 = vmatprep.subr.mxu0 0.0
      %1747 = vmatpush2.msra.mxu0 0.0
      %1748 = vmatprep.subr.mxu0 0.0
      %1749 = vmatpush2.msra.mxu0 0.0
      %1750 = vmatprep.subr.mxu0 0.0
      %1751 = vmatpush2.msra.mxu0 0.0
      %1752 = vmatprep.subr.mxu0 0.0
      %1753 = vmatpush2.msra.mxu0 0.0
      %1754 = vmatprep.subr.mxu0 0.0
      %1755 = vmatpush2.msra.mxu0 0.0
      %1756 = vmatprep.subr.mxu0 0.0
      %1757 = vmatpush2.msra.mxu0 0.0
      %1758 = vmatprep.subr.mxu0 0.0
      %1759 = vmatpush2.msra.mxu0 0.0
      %1760 = vmatprep.subr.mxu0 0.0
      %1761 = vmatpush2.msra.mxu0 0.0
      %1762 = vmatprep.subr.mxu0 0.0
      %1763 = vmatpush2.msra.mxu0 0.0
      %1764 = vmatprep.subr.mxu0 0.0
      %1765 = vmatpush2.msra.mxu0 0.0
      %1766 = vmatprep.subr.mxu0 0.0
      %1767 = vmatpush2.msra.mxu0 0.0
      %1768 = vmatprep.subr.mxu0 0.0
      %1769 = vmatpush2.msra.mxu0 0.0
      %1770 = vmatprep.subr.mxu0 0.0
      %1771 = vmatpush2.msra.mxu0 0.0
      %1772 = vmatprep.subr.mxu0 0.0
      %1773 = vmatpush2.msra.mxu0 0.0
      %1774 = vmatprep.subr.mxu0 0.0
      %1775 = vmatpush2.msra.mxu0 0.0
      %1776 = vmatprep.subr.mxu0 0.0
      %1777 = vmatpush2.msra.mxu0 0.0
      %1778 = vmatprep.mubr.f32.mxu0 0.0
      %1779 = vmatmul.mubr.f32.gmra.mxu0 %v1616
      %v1780 = vpop.f32.mrf.mxu0
      %v1781 = vadd.f32 0.0, %v1780
      %v1782 = vpop.f32.mrf.mxu0
      %1783 = vmatprep.mubr.f32.mxu0 0.0
      %1784 = vmatmul.mubr.f32.gmra.mxu0 %v1619
      %v1785 = vpop.f32.mrf.mxu0
      %v1786 = vadd.f32 0.0, %v1785
      %v1787 = vpop.f32.mrf.mxu0
      %1788 = vmatprep.mubr.f32.mxu0 0.0
      %1789 = vmatmul.mubr.f32.gmra.mxu0 %v1622
      %v1790 = vpop.f32.mrf.mxu0
      %v1791 = vadd.f32 0.0, %v1790
      %v1792 = vpop.f32.mrf.mxu0
      %1793 = vmatprep.mubr.f32.mxu0 0.0
      %1794 = vmatmul.mubr.f32.gmra.mxu0 %v1625
      %v1795 = vpop.f32.mrf.mxu0
      %v1796 = vadd.f32 0.0, %v1795
      %v1797 = vpop.f32.mrf.mxu0
      %1798 = vmatprep.mubr.f32.mxu0 0.0
      %1799 = vmatmul.mubr.f32.gmra.mxu0 %v1628
      %v1800 = vpop.f32.mrf.mxu0
      %v1801 = vadd.f32 0.0, %v1800
      %v1802 = vpop.f32.mrf.mxu0
      %1803 = vmatprep.mubr.f32.mxu0 0.0
      %1804 = vmatmul.mubr.f32.gmra.mxu0 %v1631
      %v1805 = vpop.f32.mrf.mxu0
      %v1806 = vadd.f32 0.0, %v1805
      %v1807 = vpop.f32.mrf.mxu0
      %1808 = vmatprep.mubr.f32.mxu0 0.0
      %1809 = vmatmul.mubr.f32.gmra.mxu0 %v1634
      %v1810 = vpop.f32.mrf.mxu0
      %v1811 = vadd.f32 0.0, %v1810
      %v1812 = vpop.f32.mrf.mxu0
      %1813 = vmatprep.mubr.f32.mxu0 0.0
      %1814 = vmatmul.mubr.f32.gmra.mxu0 %v1637
      %v1815 = vpop.f32.mrf.mxu0
      %v1816 = vadd.f32 0.0, %v1815
      %v1817 = vpop.f32.mrf.mxu0
      %1818 = vmatprep.mubr.f32.mxu0 0.0
      %1819 = vmatmul.mubr.f32.gmra.mxu0 %v1640
      %v1820 = vpop.f32.mrf.mxu0
      %v1821 = vadd.f32 0.0, %v1820
      %v1822 = vpop.f32.mrf.mxu0
      %1823 = vmatprep.mubr.f32.mxu0 0.0
      %1824 = vmatmul.mubr.f32.gmra.mxu0 %v1643
      %v1825 = vpop.f32.mrf.mxu0
      %v1826 = vadd.f32 0.0, %v1825
      %v1827 = vpop.f32.mrf.mxu0
      %1828 = vmatprep.mubr.f32.mxu0 0.0
      %1829 = vmatmul.mubr.f32.gmra.mxu0 %v1646
      %v1830 = vpop.f32.mrf.mxu0
      %v1831 = vadd.f32 0.0, %v1830
      %v1832 = vpop.f32.mrf.mxu0
      %1833 = vmatprep.mubr.f32.mxu0 0.0
      %1834 = vmatmul.mubr.f32.gmra.mxu0 %v1649
      %v1835 = vpop.f32.mrf.mxu0
      %v1836 = vadd.f32 0.0, %v1835
      %v1837 = vpop.f32.mrf.mxu0
      %1838 = vmatprep.mubr.f32.mxu0 0.0
      %1839 = vmatmul.mubr.f32.gmra.mxu0 %v1652
      %v1840 = vpop.f32.mrf.mxu0
      %v1841 = vadd.f32 0.0, %v1840
      %v1842 = vpop.f32.mrf.mxu0
      %1843 = vmatprep.mubr.f32.mxu0 0.0
      %1844 = vmatmul.mubr.f32.gmra.mxu0 %v1655
      %v1845 = vpop.f32.mrf.mxu0
      %v1846 = vadd.f32 0.0, %v1845
      %v1847 = vpop.f32.mrf.mxu0
      %1848 = vmatprep.mubr.f32.mxu0 0.0
      %1849 = vmatmul.mubr.f32.gmra.mxu0 %v1658
      %v1850 = vpop.f32.mrf.mxu0
      %v1851 = vadd.f32 0.0, %v1850
      %v1852 = vpop.f32.mrf.mxu0
      %1853 = vmatprep.mubr.f32.mxu0 0.0
      %1854 = vmatmul.mubr.f32.gmra.mxu0 %v1661
      %v1855 = vpop.f32.mrf.mxu0
      %v1856 = vadd.f32 0.0, %v1855
      %v1857 = vpop.f32.mrf.mxu0
      %1858 = vmatprep.mubr.f32.mxu0 0.0
      %1859 = vmatmul.mubr.f32.gmra.mxu0 %v1664
      %v1860 = vpop.f32.mrf.mxu0
      %v1861 = vadd.f32 0.0, %v1860
      %v1862 = vpop.f32.mrf.mxu0
      %1863 = vmatprep.mubr.f32.mxu0 0.0
      %1864 = vmatmul.mubr.f32.gmra.mxu0 %v1667
      %v1865 = vpop.f32.mrf.mxu0
      %v1866 = vadd.f32 0.0, %v1865
      %v1867 = vpop.f32.mrf.mxu0
      %1868 = vmatprep.mubr.f32.mxu0 0.0
      %1869 = vmatmul.mubr.f32.gmra.mxu0 %v1670
      %v1870 = vpop.f32.mrf.mxu0
      %v1871 = vadd.f32 0.0, %v1870
      %v1872 = vpop.f32.mrf.mxu0
      %1873 = vmatprep.mubr.f32.mxu0 0.0
      %1874 = vmatmul.mubr.f32.gmra.mxu0 %v1673
      %v1875 = vpop.f32.mrf.mxu0
      %v1876 = vadd.f32 0.0, %v1875
      %v1877 = vpop.f32.mrf.mxu0
      %1878 = vmatprep.mubr.f32.mxu0 0.0
      %1879 = vmatmul.mubr.f32.gmra.mxu0 %v1676
      %v1880 = vpop.f32.mrf.mxu0
      %v1881 = vadd.f32 0.0, %v1880
      %v1882 = vpop.f32.mrf.mxu0
      %1883 = vmatprep.mubr.f32.mxu0 0.0
      %1884 = vmatmul.mubr.f32.gmra.mxu0 %v1679
      %v1885 = vpop.f32.mrf.mxu0
      %v1886 = vadd.f32 0.0, %v1885
      %v1887 = vpop.f32.mrf.mxu0
      %1888 = vmatprep.mubr.f32.mxu0 0.0
      %1889 = vmatmul.mubr.f32.gmra.mxu0 %v1682
      %v1890 = vpop.f32.mrf.mxu0
      %v1891 = vadd.f32 0.0, %v1890
      %v1892 = vpop.f32.mrf.mxu0
      %1893 = vmatprep.mubr.f32.mxu0 0.0
      %1894 = vmatmul.mubr.f32.gmra.mxu0 %v1685
      %v1895 = vpop.f32.mrf.mxu0
      %v1896 = vadd.f32 0.0, %v1895
      %v1897 = vpop.f32.mrf.mxu0
      %1898 = vmatprep.mubr.f32.mxu0 0.0
      %1899 = vmatmul.mubr.f32.gmra.mxu0 %v1688
      %v1900 = vpop.f32.mrf.mxu0
      %v1901 = vadd.f32 0.0, %v1900
      %v1902 = vpop.f32.mrf.mxu0
      %1903 = vmatprep.mubr.f32.mxu0 0.0
      %1904 = vmatmul.mubr.f32.gmra.mxu0 %v1691
      %v1905 = vpop.f32.mrf.mxu0
      %v1906 = vadd.f32 0.0, %v1905
      %v1907 = vpop.f32.mrf.mxu0
      %1908 = vmatprep.mubr.f32.mxu0 0.0
      %1909 = vmatmul.mubr.f32.gmra.mxu0 %v1694
      %v1910 = vpop.f32.mrf.mxu0
      %v1911 = vadd.f32 0.0, %v1910
      %v1912 = vpop.f32.mrf.mxu0
      %1913 = vmatprep.mubr.f32.mxu0 0.0
      %1914 = vmatmul.mubr.f32.gmra.mxu0 %v1697
      %v1915 = vpop.f32.mrf.mxu0
      %v1916 = vadd.f32 0.0, %v1915
      %v1917 = vpop.f32.mrf.mxu0
      %1918 = vmatprep.mubr.f32.mxu0 0.0
      %1919 = vmatmul.mubr.f32.gmra.mxu0 %v1700
      %v1920 = vpop.f32.mrf.mxu0
      %v1921 = vadd.f32 0.0, %v1920
      %v1922 = vpop.f32.mrf.mxu0
      %1923 = vmatprep.mubr.f32.mxu0 0.0
      %1924 = vmatmul.mubr.f32.gmra.mxu0 %v1703
      %v1925 = vpop.f32.mrf.mxu0
      %v1926 = vadd.f32 0.0, %v1925
      %v1927 = vpop.f32.mrf.mxu0
      %1928 = vmatprep.mubr.f32.mxu0 0.0
      %1929 = vmatmul.mubr.f32.gmra.mxu0 %v1706
      %v1930 = vpop.f32.mrf.mxu0
      %v1931 = vadd.f32 0.0, %v1930
      %v1932 = vpop.f32.mrf.mxu0
      %1933 = vmatprep.mubr.f32.mxu0 0.0
      %1934 = vmatmul.mubr.f32.gmra.mxu0 %v1709
      %v1935 = vpop.f32.mrf.mxu0
      %v1936 = vadd.f32 0.0, %v1935
      %v1937 = vpop.f32.mrf.mxu0
      %1938 = vdwg.mxu0
      %v1939 = vadd.f32 %v1547, %v1781
      %v1940 = vadd.f32 %v1548, %v1786
      %v1941 = vadd.f32 %v1549, %v1791
      %v1942 = vadd.f32 %v1550, %v1796
      %v1943 = vadd.f32 %v1551, %v1801
      %v1944 = vadd.f32 %v1552, %v1806
      %v1945 = vadd.f32 %v1553, %v1811
      %v1946 = vadd.f32 %v1554, %v1816
      %v1947 = vadd.f32 %v1555, %v1821
      %v1948 = vadd.f32 %v1556, %v1826
      %v1949 = vadd.f32 %v1557, %v1831
      %v1950 = vadd.f32 %v1558, %v1836
      %v1951 = vadd.f32 %v1559, %v1841
      %v1952 = vadd.f32 %v1560, %v1846
      %v1953 = vadd.f32 %v1561, %v1851
      %v1954 = vadd.f32 %v1562, %v1856
      %v1955 = vadd.f32 %v1563, %v1861
      %v1956 = vadd.f32 %v1564, %v1866
      %v1957 = vadd.f32 %v1565, %v1871
      %v1958 = vadd.f32 %v1566, %v1876
      %v1959 = vadd.f32 %v1567, %v1881
      %v1960 = vadd.f32 %v1568, %v1886
      %v1961 = vadd.f32 %v1569, %v1891
      %v1962 = vadd.f32 %v1570, %v1896
      %v1963 = vadd.f32 %v1571, %v1901
      %v1964 = vadd.f32 %v1572, %v1906
      %v1965 = vadd.f32 %v1573, %v1911
      %v1966 = vadd.f32 %v1574, %v1916
      %v1967 = vadd.f32 %v1575, %v1921
      %v1968 = vadd.f32 %v1576, %v1926
      %v1969 = vadd.f32 %v1577, %v1931
      %v1970 = vadd.f32 %v1578, %v1936
      %v1972 = vsel %vm619, %v1611, 0
      %v1975 = vsel %vm619, %v1612, 0
      %v1978 = vsel %vm850, %v712, 0
      %1980 = vmatprep.subr.mxu0 0.0
      %1981 = vmatpush1.msra.mxu0 0.0
      %1982 = vmatprep.subr.mxu0 0.0
      %1983 = vmatpush1.msra.mxu0 0.0
      %1984 = vmatprep.subr.mxu0 0.0
      %1985 = vmatpush1.msra.mxu0 0.0
      %1986 = vmatprep.subr.mxu0 0.0
      %1987 = vmatpush1.msra.mxu0 0.0
      %1988 = vmatprep.subr.mxu0 0.0
      %1989 = vmatpush1.msra.mxu0 0.0
      %1990 = vmatprep.subr.mxu0 0.0
      %1991 = vmatpush1.msra.mxu0 0.0
      %1992 = vmatprep.subr.mxu0 0.0
      %1993 = vmatpush1.msra.mxu0 0.0
      %1994 = vmatprep.subr.mxu0 0.0
      %1995 = vmatpush1.msra.mxu0 0.0
      %1996 = vmatprep.subr.mxu0 0.0
      %1997 = vmatpush1.msra.mxu0 0.0
      %1998 = vmatprep.subr.mxu0 0.0
      %1999 = vmatpush1.msra.mxu0 0.0
      %2000 = vmatprep.subr.mxu0 0.0
      %2001 = vmatpush1.msra.mxu0 0.0
      %2002 = vmatprep.subr.mxu0 0.0
      %2003 = vmatpush1.msra.mxu0 0.0
      %2004 = vmatprep.subr.mxu0 0.0
      %2005 = vmatpush1.msra.mxu0 0.0
      %2006 = vmatprep.subr.mxu0 0.0
      %2007 = vmatpush1.msra.mxu0 0.0
      %2008 = vmatprep.subr.mxu0 0.0
      %2009 = vmatpush1.msra.mxu0 0.0
      %2010 = vmatprep.subr.mxu0 0.0
      %2011 = vmatpush1.msra.mxu0 %v1978
      %2012 = vmatprep.subr.mxu0 0.0
      %2013 = vmatpush2.msra.mxu0 0.0
      %2014 = vmatprep.subr.mxu0 0.0
      %2015 = vmatpush2.msra.mxu0 0.0
      %2016 = vmatprep.subr.mxu0 0.0
      %2017 = vmatpush2.msra.mxu0 0.0
      %2018 = vmatprep.subr.mxu0 0.0
      %2019 = vmatpush2.msra.mxu0 0.0
      %2020 = vmatprep.subr.mxu0 0.0
      %2021 = vmatpush2.msra.mxu0 0.0
      %2022 = vmatprep.subr.mxu0 0.0
      %2023 = vmatpush2.msra.mxu0 0.0
      %2024 = vmatprep.subr.mxu0 0.0
      %2025 = vmatpush2.msra.mxu0 0.0
      %2026 = vmatprep.subr.mxu0 0.0
      %2027 = vmatpush2.msra.mxu0 0.0
      %2028 = vmatprep.subr.mxu0 0.0
      %2029 = vmatpush2.msra.mxu0 0.0
      %2030 = vmatprep.subr.mxu0 0.0
      %2031 = vmatpush2.msra.mxu0 0.0
      %2032 = vmatprep.subr.mxu0 0.0
      %2033 = vmatpush2.msra.mxu0 0.0
      %2034 = vmatprep.subr.mxu0 0.0
      %2035 = vmatpush2.msra.mxu0 0.0
      %2036 = vmatprep.subr.mxu0 0.0
      %2037 = vmatpush2.msra.mxu0 0.0
      %2038 = vmatprep.subr.mxu0 0.0
      %2039 = vmatpush2.msra.mxu0 0.0
      %2040 = vmatprep.subr.mxu0 0.0
      %2041 = vmatpush2.msra.mxu0 0.0
      %2042 = vmatprep.subr.mxu0 0.0
      %2043 = vmatpush2.msra.mxu0 0.0
      %2044 = vmatprep.mubr.f32.mxu0 0.0
      %2045 = vmatmul.mubr.f32.gmra.mxu0 %v1622
      %v2046 = vpop.f32.mrf.mxu0
      %v2047 = vadd.f32 0.0, %v2046
      %v2048 = vpop.f32.mrf.mxu0
      %2049 = vmatprep.mubr.f32.mxu0 0.0
      %2050 = vmatmul.mubr.f32.gmra.mxu0 %v1625
      %v2051 = vpop.f32.mrf.mxu0
      %v2052 = vadd.f32 0.0, %v2051
      %v2053 = vpop.f32.mrf.mxu0
      %2054 = vmatprep.mubr.f32.mxu0 0.0
      %2055 = vmatmul.mubr.f32.gmra.mxu0 %v1628
      %v2056 = vpop.f32.mrf.mxu0
      %v2057 = vadd.f32 0.0, %v2056
      %v2058 = vpop.f32.mrf.mxu0
      %2059 = vmatprep.mubr.f32.mxu0 0.0
      %2060 = vmatmul.mubr.f32.gmra.mxu0 %v1631
      %v2061 = vpop.f32.mrf.mxu0
      %v2062 = vadd.f32 0.0, %v2061
      %v2063 = vpop.f32.mrf.mxu0
      %2064 = vmatprep.mubr.f32.mxu0 0.0
      %2065 = vmatmul.mubr.f32.gmra.mxu0 %v1634
      %v2066 = vpop.f32.mrf.mxu0
      %v2067 = vadd.f32 0.0, %v2066
      %v2068 = vpop.f32.mrf.mxu0
      %2069 = vmatprep.mubr.f32.mxu0 0.0
      %2070 = vmatmul.mubr.f32.gmra.mxu0 %v1637
      %v2071 = vpop.f32.mrf.mxu0
      %v2072 = vadd.f32 0.0, %v2071
      %v2073 = vpop.f32.mrf.mxu0
      %2074 = vmatprep.mubr.f32.mxu0 0.0
      %2075 = vmatmul.mubr.f32.gmra.mxu0 %v1640
      %v2076 = vpop.f32.mrf.mxu0
      %v2077 = vadd.f32 0.0, %v2076
      %v2078 = vpop.f32.mrf.mxu0
      %2079 = vmatprep.mubr.f32.mxu0 0.0
      %2080 = vmatmul.mubr.f32.gmra.mxu0 %v1643
      %v2081 = vpop.f32.mrf.mxu0
      %v2082 = vadd.f32 0.0, %v2081
      %v2083 = vpop.f32.mrf.mxu0
      %2084 = vmatprep.mubr.f32.mxu0 0.0
      %2085 = vmatmul.mubr.f32.gmra.mxu0 %v1646
      %v2086 = vpop.f32.mrf.mxu0
      %v2087 = vadd.f32 0.0, %v2086
      %v2088 = vpop.f32.mrf.mxu0
      %2089 = vmatprep.mubr.f32.mxu0 0.0
      %2090 = vmatmul.mubr.f32.gmra.mxu0 %v1649
      %v2091 = vpop.f32.mrf.mxu0
      %v2092 = vadd.f32 0.0, %v2091
      %v2093 = vpop.f32.mrf.mxu0
      %2094 = vmatprep.mubr.f32.mxu0 0.0
      %2095 = vmatmul.mubr.f32.gmra.mxu0 %v1652
      %v2096 = vpop.f32.mrf.mxu0
      %v2097 = vadd.f32 0.0, %v2096
      %v2098 = vpop.f32.mrf.mxu0
      %2099 = vmatprep.mubr.f32.mxu0 0.0
      %2100 = vmatmul.mubr.f32.gmra.mxu0 %v1655
      %v2101 = vpop.f32.mrf.mxu0
      %v2102 = vadd.f32 0.0, %v2101
      %v2103 = vpop.f32.mrf.mxu0
      %2104 = vmatprep.mubr.f32.mxu0 0.0
      %2105 = vmatmul.mubr.f32.gmra.mxu0 %v1658
      %v2106 = vpop.f32.mrf.mxu0
      %v2107 = vadd.f32 0.0, %v2106
      %v2108 = vpop.f32.mrf.mxu0
      %2109 = vmatprep.mubr.f32.mxu0 0.0
      %2110 = vmatmul.mubr.f32.gmra.mxu0 %v1661
      %v2111 = vpop.f32.mrf.mxu0
      %v2112 = vadd.f32 0.0, %v2111
      %v2113 = vpop.f32.mrf.mxu0
      %2114 = vmatprep.mubr.f32.mxu0 0.0
      %2115 = vmatmul.mubr.f32.gmra.mxu0 %v1664
      %v2116 = vpop.f32.mrf.mxu0
      %v2117 = vadd.f32 0.0, %v2116
      %v2118 = vpop.f32.mrf.mxu0
      %2119 = vmatprep.mubr.f32.mxu0 0.0
      %2120 = vmatmul.mubr.f32.gmra.mxu0 %v1667
      %v2121 = vpop.f32.mrf.mxu0
      %v2122 = vadd.f32 0.0, %v2121
      %v2123 = vpop.f32.mrf.mxu0
      %2124 = vmatprep.mubr.f32.mxu0 0.0
      %2125 = vmatmul.mubr.f32.gmra.mxu0 %v1670
      %v2126 = vpop.f32.mrf.mxu0
      %v2127 = vadd.f32 0.0, %v2126
      %v2128 = vpop.f32.mrf.mxu0
      %2129 = vmatprep.mubr.f32.mxu0 0.0
      %2130 = vmatmul.mubr.f32.gmra.mxu0 %v1673
      %v2131 = vpop.f32.mrf.mxu0
      %v2132 = vadd.f32 0.0, %v2131
      %v2133 = vpop.f32.mrf.mxu0
      %2134 = vmatprep.mubr.f32.mxu0 0.0
      %2135 = vmatmul.mubr.f32.gmra.mxu0 %v1676
      %v2136 = vpop.f32.mrf.mxu0
      %v2137 = vadd.f32 0.0, %v2136
      %v2138 = vpop.f32.mrf.mxu0
      %2139 = vmatprep.mubr.f32.mxu0 0.0
      %2140 = vmatmul.mubr.f32.gmra.mxu0 %v1679
      %v2141 = vpop.f32.mrf.mxu0
      %v2142 = vadd.f32 0.0, %v2141
      %v2143 = vpop.f32.mrf.mxu0
      %2144 = vmatprep.mubr.f32.mxu0 0.0
      %2145 = vmatmul.mubr.f32.gmra.mxu0 %v1682
      %v2146 = vpop.f32.mrf.mxu0
      %v2147 = vadd.f32 0.0, %v2146
      %v2148 = vpop.f32.mrf.mxu0
      %2149 = vmatprep.mubr.f32.mxu0 0.0
      %2150 = vmatmul.mubr.f32.gmra.mxu0 %v1685
      %v2151 = vpop.f32.mrf.mxu0
      %v2152 = vadd.f32 0.0, %v2151
      %v2153 = vpop.f32.mrf.mxu0
      %2154 = vmatprep.mubr.f32.mxu0 0.0
      %2155 = vmatmul.mubr.f32.gmra.mxu0 %v1688
      %v2156 = vpop.f32.mrf.mxu0
      %v2157 = vadd.f32 0.0, %v2156
      %v2158 = vpop.f32.mrf.mxu0
      %2159 = vmatprep.mubr.f32.mxu0 0.0
      %2160 = vmatmul.mubr.f32.gmra.mxu0 %v1691
      %v2161 = vpop.f32.mrf.mxu0
      %v2162 = vadd.f32 0.0, %v2161
      %v2163 = vpop.f32.mrf.mxu0
      %2164 = vmatprep.mubr.f32.mxu0 0.0
      %2165 = vmatmul.mubr.f32.gmra.mxu0 %v1694
      %v2166 = vpop.f32.mrf.mxu0
      %v2167 = vadd.f32 0.0, %v2166
      %v2168 = vpop.f32.mrf.mxu0
      %2169 = vmatprep.mubr.f32.mxu0 0.0
      %2170 = vmatmul.mubr.f32.gmra.mxu0 %v1697
      %v2171 = vpop.f32.mrf.mxu0
      %v2172 = vadd.f32 0.0, %v2171
      %v2173 = vpop.f32.mrf.mxu0
      %2174 = vmatprep.mubr.f32.mxu0 0.0
      %2175 = vmatmul.mubr.f32.gmra.mxu0 %v1700
      %v2176 = vpop.f32.mrf.mxu0
      %v2177 = vadd.f32 0.0, %v2176
      %v2178 = vpop.f32.mrf.mxu0
      %2179 = vmatprep.mubr.f32.mxu0 0.0
      %2180 = vmatmul.mubr.f32.gmra.mxu0 %v1703
      %v2181 = vpop.f32.mrf.mxu0
      %v2182 = vadd.f32 0.0, %v2181
      %v2183 = vpop.f32.mrf.mxu0
      %2184 = vmatprep.mubr.f32.mxu0 0.0
      %2185 = vmatmul.mubr.f32.gmra.mxu0 %v1706
      %v2186 = vpop.f32.mrf.mxu0
      %v2187 = vadd.f32 0.0, %v2186
      %v2188 = vpop.f32.mrf.mxu0
      %2189 = vmatprep.mubr.f32.mxu0 0.0
      %2190 = vmatmul.mubr.f32.gmra.mxu0 %v1709
      %v2191 = vpop.f32.mrf.mxu0
      %v2192 = vadd.f32 0.0, %v2191
      %v2193 = vpop.f32.mrf.mxu0
      %2194 = vmatprep.mubr.f32.mxu0 0.0
      %2195 = vmatmul.mubr.f32.gmra.mxu0 %v1972
      %v2196 = vpop.f32.mrf.mxu0
      %v2197 = vadd.f32 0.0, %v2196
      %v2198 = vpop.f32.mrf.mxu0
      %2199 = vmatprep.mubr.f32.mxu0 0.0
      %2200 = vmatmul.mubr.f32.gmra.mxu0 %v1975
      %v2201 = vpop.f32.mrf.mxu0
      %v2202 = vadd.f32 0.0, %v2201
      %v2203 = vpop.f32.mrf.mxu0
      %2204 = vdwg.mxu0
      %v2205 = vadd.f32 %v1939, %v2047
      %v2206 = vadd.f32 %v1940, %v2052
      %v2207 = vadd.f32 %v1941, %v2057
      %v2208 = vadd.f32 %v1942, %v2062
      %v2209 = vadd.f32 %v1943, %v2067
      %v2210 = vadd.f32 %v1944, %v2072
      %v2211 = vadd.f32 %v1945, %v2077
      %v2212 = vadd.f32 %v1946, %v2082
      %v2213 = vadd.f32 %v1947, %v2087
      %v2214 = vadd.f32 %v1948, %v2092
      %v2215 = vadd.f32 %v1949, %v2097
      %v2216 = vadd.f32 %v1950, %v2102
      %v2217 = vadd.f32 %v1951, %v2107
      %v2218 = vadd.f32 %v1952, %v2112
      %v2219 = vadd.f32 %v1953, %v2117
      %v2220 = vadd.f32 %v1954, %v2122
      %v2221 = vadd.f32 %v1955, %v2127
      %v2222 = vadd.f32 %v1956, %v2132
      %v2223 = vadd.f32 %v1957, %v2137
      %v2224 = vadd.f32 %v1958, %v2142
      %v2225 = vadd.f32 %v1959, %v2147
      %v2226 = vadd.f32 %v1960, %v2152
      %v2227 = vadd.f32 %v1961, %v2157
      %v2228 = vadd.f32 %v1962, %v2162
      %v2229 = vadd.f32 %v1963, %v2167
      %v2230 = vadd.f32 %v1964, %v2172
      %v2231 = vadd.f32 %v1965, %v2177
      %v2232 = vadd.f32 %v1966, %v2182
      %v2233 = vadd.f32 %v1967, %v2187
      %v2234 = vadd.f32 %v1968, %v2192
      %v2235 = vadd.f32 %v1969, %v2197
      %v2236 = vadd.f32 %v1970, %v2202
      %v2238 = vsel %vm619, %v1613, 0
      %v2241 = vsel %vm619, %v1614, 0
      %v2244 = vsel %vm850, %v715, 0
      %2246 = vmatprep.subr.mxu0 0.0
      %2247 = vmatpush1.msra.mxu0 0.0
      %2248 = vmatprep.subr.mxu0 0.0
      %2249 = vmatpush1.msra.mxu0 0.0
      %2250 = vmatprep.subr.mxu0 0.0
      %2251 = vmatpush1.msra.mxu0 0.0
      %2252 = vmatprep.subr.mxu0 0.0
      %2253 = vmatpush1.msra.mxu0 0.0
      %2254 = vmatprep.subr.mxu0 0.0
      %2255 = vmatpush1.msra.mxu0 0.0
      %2256 = vmatprep.subr.mxu0 0.0
      %2257 = vmatpush1.msra.mxu0 0.0
      %2258 = vmatprep.subr.mxu0 0.0
      %2259 = vmatpush1.msra.mxu0 0.0
      %2260 = vmatprep.subr.mxu0 0.0
      %2261 = vmatpush1.msra.mxu0 0.0
      %2262 = vmatprep.subr.mxu0 0.0
      %2263 = vmatpush1.msra.mxu0 0.0
      %2264 = vmatprep.subr.mxu0 0.0
      %2265 = vmatpush1.msra.mxu0 0.0
      %2266 = vmatprep.subr.mxu0 0.0
      %2267 = vmatpush1.msra.mxu0 0.0
      %2268 = vmatprep.subr.mxu0 0.0
      %2269 = vmatpush1.msra.mxu0 0.0
      %2270 = vmatprep.subr.mxu0 0.0
      %2271 = vmatpush1.msra.mxu0 0.0
      %2272 = vmatprep.subr.mxu0 0.0
      %2273 = vmatpush1.msra.mxu0 0.0
      %2274 = vmatprep.subr.mxu0 0.0
      %2275 = vmatpush1.msra.mxu0 0.0
      %2276 = vmatprep.subr.mxu0 0.0
      %2277 = vmatpush1.msra.mxu0 %v2244
      %2278 = vmatprep.subr.mxu0 0.0
      %2279 = vmatpush2.msra.mxu0 0.0
      %2280 = vmatprep.subr.mxu0 0.0
      %2281 = vmatpush2.msra.mxu0 0.0
      %2282 = vmatprep.subr.mxu0 0.0
      %2283 = vmatpush2.msra.mxu0 0.0
      %2284 = vmatprep.subr.mxu0 0.0
      %2285 = vmatpush2.msra.mxu0 0.0
      %2286 = vmatprep.subr.mxu0 0.0
      %2287 = vmatpush2.msra.mxu0 0.0
      %2288 = vmatprep.subr.mxu0 0.0
      %2289 = vmatpush2.msra.mxu0 0.0
      %2290 = vmatprep.subr.mxu0 0.0
      %2291 = vmatpush2.msra.mxu0 0.0
      %2292 = vmatprep.subr.mxu0 0.0
      %2293 = vmatpush2.msra.mxu0 0.0
      %2294 = vmatprep.subr.mxu0 0.0
      %2295 = vmatpush2.msra.mxu0 0.0
      %2296 = vmatprep.subr.mxu0 0.0
      %2297 = vmatpush2.msra.mxu0 0.0
      %2298 = vmatprep.subr.mxu0 0.0
      %2299 = vmatpush2.msra.mxu0 0.0
      %2300 = vmatprep.subr.mxu0 0.0
      %2301 = vmatpush2.msra.mxu0 0.0
      %2302 = vmatprep.subr.mxu0 0.0
      %2303 = vmatpush2.msra.mxu0 0.0
      %2304 = vmatprep.subr.mxu0 0.0
      %2305 = vmatpush2.msra.mxu0 0.0
      %2306 = vmatprep.subr.mxu0 0.0
      %2307 = vmatpush2.msra.mxu0 0.0
      %2308 = vmatprep.subr.mxu0 0.0
      %2309 = vmatpush2.msra.mxu0 0.0
      %2310 = vmatprep.mubr.f32.mxu0 0.0
      %2311 = vmatmul.mubr.f32.gmra.mxu0 %v1628
      %v2312 = vpop.f32.mrf.mxu0
      %v2313 = vadd.f32 0.0, %v2312
      %v2314 = vpop.f32.mrf.mxu0
      %2315 = vmatprep.mubr.f32.mxu0 0.0
      %2316 = vmatmul.mubr.f32.gmra.mxu0 %v1631
      %v2317 = vpop.f32.mrf.mxu0
      %v2318 = vadd.f32 0.0, %v2317
      %v2319 = vpop.f32.mrf.mxu0
      %2320 = vmatprep.mubr.f32.mxu0 0.0
      %2321 = vmatmul.mubr.f32.gmra.mxu0 %v1634
      %v2322 = vpop.f32.mrf.mxu0
      %v2323 = vadd.f32 0.0, %v2322
      %v2324 = vpop.f32.mrf.mxu0
      %2325 = vmatprep.mubr.f32.mxu0 0.0
      %2326 = vmatmul.mubr.f32.gmra.mxu0 %v1637
      %v2327 = vpop.f32.mrf.mxu0
      %v2328 = vadd.f32 0.0, %v2327
      %v2329 = vpop.f32.mrf.mxu0
      %2330 = vmatprep.mubr.f32.mxu0 0.0
      %2331 = vmatmul.mubr.f32.gmra.mxu0 %v1640
      %v2332 = vpop.f32.mrf.mxu0
      %v2333 = vadd.f32 0.0, %v2332
      %v2334 = vpop.f32.mrf.mxu0
      %2335 = vmatprep.mubr.f32.mxu0 0.0
      %2336 = vmatmul.mubr.f32.gmra.mxu0 %v1643
      %v2337 = vpop.f32.mrf.mxu0
      %v2338 = vadd.f32 0.0, %v2337
      %v2339 = vpop.f32.mrf.mxu0
      %2340 = vmatprep.mubr.f32.mxu0 0.0
      %2341 = vmatmul.mubr.f32.gmra.mxu0 %v1646
      %v2342 = vpop.f32.mrf.mxu0
      %v2343 = vadd.f32 0.0, %v2342
      %v2344 = vpop.f32.mrf.mxu0
      %2345 = vmatprep.mubr.f32.mxu0 0.0
      %2346 = vmatmul.mubr.f32.gmra.mxu0 %v1649
      %v2347 = vpop.f32.mrf.mxu0
      %v2348 = vadd.f32 0.0, %v2347
      %v2349 = vpop.f32.mrf.mxu0
      %2350 = vmatprep.mubr.f32.mxu0 0.0
      %2351 = vmatmul.mubr.f32.gmra.mxu0 %v1652
      %v2352 = vpop.f32.mrf.mxu0
      %v2353 = vadd.f32 0.0, %v2352
      %v2354 = vpop.f32.mrf.mxu0
      %2355 = vmatprep.mubr.f32.mxu0 0.0
      %2356 = vmatmul.mubr.f32.gmra.mxu0 %v1655
      %v2357 = vpop.f32.mrf.mxu0
      %v2358 = vadd.f32 0.0, %v2357
      %v2359 = vpop.f32.mrf.mxu0
      %2360 = vmatprep.mubr.f32.mxu0 0.0
      %2361 = vmatmul.mubr.f32.gmra.mxu0 %v1658
      %v2362 = vpop.f32.mrf.mxu0
      %v2363 = vadd.f32 0.0, %v2362
      %v2364 = vpop.f32.mrf.mxu0
      %2365 = vmatprep.mubr.f32.mxu0 0.0
      %2366 = vmatmul.mubr.f32.gmra.mxu0 %v1661
      %v2367 = vpop.f32.mrf.mxu0
      %v2368 = vadd.f32 0.0, %v2367
      %v2369 = vpop.f32.mrf.mxu0
      %2370 = vmatprep.mubr.f32.mxu0 0.0
      %2371 = vmatmul.mubr.f32.gmra.mxu0 %v1664
      %v2372 = vpop.f32.mrf.mxu0
      %v2373 = vadd.f32 0.0, %v2372
      %v2374 = vpop.f32.mrf.mxu0
      %2375 = vmatprep.mubr.f32.mxu0 0.0
      %2376 = vmatmul.mubr.f32.gmra.mxu0 %v1667
      %v2377 = vpop.f32.mrf.mxu0
      %v2378 = vadd.f32 0.0, %v2377
      %v2379 = vpop.f32.mrf.mxu0
      %2380 = vmatprep.mubr.f32.mxu0 0.0
      %2381 = vmatmul.mubr.f32.gmra.mxu0 %v1670
      %v2382 = vpop.f32.mrf.mxu0
      %v2383 = vadd.f32 0.0, %v2382
      %v2384 = vpop.f32.mrf.mxu0
      %2385 = vmatprep.mubr.f32.mxu0 0.0
      %2386 = vmatmul.mubr.f32.gmra.mxu0 %v1673
      %v2387 = vpop.f32.mrf.mxu0
      %v2388 = vadd.f32 0.0, %v2387
      %v2389 = vpop.f32.mrf.mxu0
      %2390 = vmatprep.mubr.f32.mxu0 0.0
      %2391 = vmatmul.mubr.f32.gmra.mxu0 %v1676
      %v2392 = vpop.f32.mrf.mxu0
      %v2393 = vadd.f32 0.0, %v2392
      %v2394 = vpop.f32.mrf.mxu0
      %2395 = vmatprep.mubr.f32.mxu0 0.0
      %2396 = vmatmul.mubr.f32.gmra.mxu0 %v1679
      %v2397 = vpop.f32.mrf.mxu0
      %v2398 = vadd.f32 0.0, %v2397
      %v2399 = vpop.f32.mrf.mxu0
      %2400 = vmatprep.mubr.f32.mxu0 0.0
      %2401 = vmatmul.mubr.f32.gmra.mxu0 %v1682
      %v2402 = vpop.f32.mrf.mxu0
      %v2403 = vadd.f32 0.0, %v2402
      %v2404 = vpop.f32.mrf.mxu0
      %2405 = vmatprep.mubr.f32.mxu0 0.0
      %2406 = vmatmul.mubr.f32.gmra.mxu0 %v1685
      %v2407 = vpop.f32.mrf.mxu0
      %v2408 = vadd.f32 0.0, %v2407
      %v2409 = vpop.f32.mrf.mxu0
      %2410 = vmatprep.mubr.f32.mxu0 0.0
      %2411 = vmatmul.mubr.f32.gmra.mxu0 %v1688
      %v2412 = vpop.f32.mrf.mxu0
      %v2413 = vadd.f32 0.0, %v2412
      %v2414 = vpop.f32.mrf.mxu0
      %2415 = vmatprep.mubr.f32.mxu0 0.0
      %2416 = vmatmul.mubr.f32.gmra.mxu0 %v1691
      %v2417 = vpop.f32.mrf.mxu0
      %v2418 = vadd.f32 0.0, %v2417
      %v2419 = vpop.f32.mrf.mxu0
      %2420 = vmatprep.mubr.f32.mxu0 0.0
      %2421 = vmatmul.mubr.f32.gmra.mxu0 %v1694
      %v2422 = vpop.f32.mrf.mxu0
      %v2423 = vadd.f32 0.0, %v2422
      %v2424 = vpop.f32.mrf.mxu0
      %2425 = vmatprep.mubr.f32.mxu0 0.0
      %2426 = vmatmul.mubr.f32.gmra.mxu0 %v1697
      %v2427 = vpop.f32.mrf.mxu0
      %v2428 = vadd.f32 0.0, %v2427
      %v2429 = vpop.f32.mrf.mxu0
      %2430 = vmatprep.mubr.f32.mxu0 0.0
      %2431 = vmatmul.mubr.f32.gmra.mxu0 %v1700
      %v2432 = vpop.f32.mrf.mxu0
      %v2433 = vadd.f32 0.0, %v2432
      %v2434 = vpop.f32.mrf.mxu0
      %2435 = vmatprep.mubr.f32.mxu0 0.0
      %2436 = vmatmul.mubr.f32.gmra.mxu0 %v1703
      %v2437 = vpop.f32.mrf.mxu0
      %v2438 = vadd.f32 0.0, %v2437
      %v2439 = vpop.f32.mrf.mxu0
      %2440 = vmatprep.mubr.f32.mxu0 0.0
      %2441 = vmatmul.mubr.f32.gmra.mxu0 %v1706
      %v2442 = vpop.f32.mrf.mxu0
      %v2443 = vadd.f32 0.0, %v2442
      %v2444 = vpop.f32.mrf.mxu0
      %2445 = vmatprep.mubr.f32.mxu0 0.0
      %2446 = vmatmul.mubr.f32.gmra.mxu0 %v1709
      %v2447 = vpop.f32.mrf.mxu0
      %v2448 = vadd.f32 0.0, %v2447
      %v2449 = vpop.f32.mrf.mxu0
      %2450 = vmatprep.mubr.f32.mxu0 0.0
      %2451 = vmatmul.mubr.f32.gmra.mxu0 %v1972
      %v2452 = vpop.f32.mrf.mxu0
      %v2453 = vadd.f32 0.0, %v2452
      %v2454 = vpop.f32.mrf.mxu0
      %2455 = vmatprep.mubr.f32.mxu0 0.0
      %2456 = vmatmul.mubr.f32.gmra.mxu0 %v1975
      %v2457 = vpop.f32.mrf.mxu0
      %v2458 = vadd.f32 0.0, %v2457
      %v2459 = vpop.f32.mrf.mxu0
      %2460 = vmatprep.mubr.f32.mxu0 0.0
      %2461 = vmatmul.mubr.f32.gmra.mxu0 %v2238
      %v2462 = vpop.f32.mrf.mxu0
      %v2463 = vadd.f32 0.0, %v2462
      %v2464 = vpop.f32.mrf.mxu0
      %2465 = vmatprep.mubr.f32.mxu0 0.0
      %2466 = vmatmul.mubr.f32.gmra.mxu0 %v2241
      %v2467 = vpop.f32.mrf.mxu0
      %v2468 = vadd.f32 0.0, %v2467
      %v2469 = vpop.f32.mrf.mxu0
      %2470 = vdwg.mxu0
      %v2471 = vadd.f32 %v2205, %v2313
      %v2472 = vadd.f32 %v2206, %v2318
      %v2473 = vadd.f32 %v2207, %v2323
      %v2474 = vadd.f32 %v2208, %v2328
      %v2475 = vadd.f32 %v2209, %v2333
      %v2476 = vadd.f32 %v2210, %v2338
      %v2477 = vadd.f32 %v2211, %v2343
      %v2478 = vadd.f32 %v2212, %v2348
      %v2479 = vadd.f32 %v2213, %v2353
      %v2480 = vadd.f32 %v2214, %v2358
      %v2481 = vadd.f32 %v2215, %v2363
      %v2482 = vadd.f32 %v2216, %v2368
      %v2483 = vadd.f32 %v2217, %v2373
      %v2484 = vadd.f32 %v2218, %v2378
      %v2485 = vadd.f32 %v2219, %v2383
      %v2486 = vadd.f32 %v2220, %v2388
      %v2487 = vadd.f32 %v2221, %v2393
      %v2488 = vadd.f32 %v2222, %v2398
      %v2489 = vadd.f32 %v2223, %v2403
      %v2490 = vadd.f32 %v2224, %v2408
      %v2491 = vadd.f32 %v2225, %v2413
      %v2492 = vadd.f32 %v2226, %v2418
      %v2493 = vadd.f32 %v2227, %v2423
      %v2494 = vadd.f32 %v2228, %v2428
      %v2495 = vadd.f32 %v2229, %v2433
      %v2496 = vadd.f32 %v2230, %v2438
      %v2497 = vadd.f32 %v2231, %v2443
      %v2498 = vadd.f32 %v2232, %v2448
      %v2499 = vadd.f32 %v2233, %v2453
      %v2500 = vadd.f32 %v2234, %v2458
      %v2501 = vadd.f32 %v2235, %v2463
      %v2502 = vadd.f32 %v2236, %v2468
      %v2503 = vld [vmem:[#allocation2 + $0x2] sm:$0xff]
      %v2504 = vld [vmem:[#allocation2 + $0xa] sm:$0xff]
      %v2505 = vld [vmem:[#allocation2 + $0x1a] sm:$0xff]
      %v2506 = vld [vmem:[#allocation2 + $0x22] sm:$0xff]
      %v2507 = vld [vmem:[#allocation2 + $0x32] sm:$0xff]
      %v2508 = vld [vmem:[#allocation2 + $0x3a] sm:$0xff]
      %v2509 = vld [vmem:[#allocation2 + $0x4a] sm:$0xff]
      %v2510 = vld [vmem:[#allocation2 + $0x52] sm:$0xff]
      %v2511 = vld [vmem:[#allocation2 + $0x62] sm:$0xff]
      %v2512 = vld [vmem:[#allocation2 + $0x6a] sm:$0xff]
      %v2513 = vld [vmem:[#allocation2 + $0x7a] sm:$0xff]
      %v2514 = vld [vmem:[#allocation2 + $0x82] sm:$0xff]
      %v2515 = vld [vmem:[#allocation2 + $0x92] sm:$0xff]
      %v2516 = vld [vmem:[#allocation2 + $0x9a] sm:$0xff]
      %v2517 = vld [vmem:[#allocation2 + $0xaa] sm:$0xff]
      %v2518 = vld [vmem:[#allocation2 + $0xb2] sm:$0xff]
      %v2519 = vld [vmem:[#allocation2 + $0xc2] sm:$0xff]
      %v2520 = vld [vmem:[#allocation2 + $0xca] sm:$0xff]
      %v2521 = vld [vmem:[#allocation2 + $0xda] sm:$0xff]
      %v2522 = vld [vmem:[#allocation2 + $0xe2] sm:$0xff]
      %v2523 = vld [vmem:[#allocation2 + $0xf2] sm:$0xff]
      %v2524 = vld [vmem:[#allocation2 + $0xfa] sm:$0xff]
      %v2525 = vld [vmem:[#allocation2 + $0x10a] sm:$0xff]
      %v2526 = vld [vmem:[#allocation2 + $0x112] sm:$0xff]
      %v2527 = vld [vmem:[#allocation2 + $0x122] sm:$0xff]
      %v2528 = vld [vmem:[#allocation2 + $0x12a] sm:$0xff]
      %v2529 = vld [vmem:[#allocation2 + $0x13a] sm:$0xff]
      %v2530 = vld [vmem:[#allocation2 + $0x142] sm:$0xff]
      %v2531 = vld [vmem:[#allocation2 + $0x152] sm:$0xff]
      %v2532 = vld [vmem:[#allocation2 + $0x15a] sm:$0xff]
      %v2533 = vld [vmem:[#allocation2 + $0x16a] sm:$0xff]
      %v2534 = vld [vmem:[#allocation2 + $0x172] sm:$0xff]
      %v2535 = vld [vmem:[#allocation2 + $0x182] sm:$0xff]
      %v2536 = vld [vmem:[#allocation2 + $0x18a] sm:$0xff]
      %v2537 = vld [vmem:[#allocation2 + $0x19a] sm:$0xff]
      %v2538 = vld [vmem:[#allocation2 + $0x1a2] sm:$0xff]
      %v2540 = vsel %vm619, %v2503, 0
      %v2543 = vsel %vm619, %v2504, 0
      %v2546 = vsel %vm619, %v2505, 0
      %v2549 = vsel %vm619, %v2506, 0
      %v2552 = vsel %vm619, %v2507, 0
      %v2555 = vsel %vm619, %v2508, 0
      %v2558 = vsel %vm619, %v2509, 0
      %v2561 = vsel %vm619, %v2510, 0
      %v2564 = vsel %vm619, %v2511, 0
      %v2567 = vsel %vm619, %v2512, 0
      %v2570 = vsel %vm619, %v2513, 0
      %v2573 = vsel %vm619, %v2514, 0
      %v2576 = vsel %vm619, %v2515, 0
      %v2579 = vsel %vm619, %v2516, 0
      %v2582 = vsel %vm619, %v2517, 0
      %v2585 = vsel %vm619, %v2518, 0
      %v2588 = vsel %vm619, %v2519, 0
      %v2591 = vsel %vm619, %v2520, 0
      %v2594 = vsel %vm619, %v2521, 0
      %v2597 = vsel %vm619, %v2522, 0
      %v2600 = vsel %vm619, %v2523, 0
      %v2603 = vsel %vm619, %v2524, 0
      %v2606 = vsel %vm619, %v2525, 0
      %v2609 = vsel %vm619, %v2526, 0
      %v2612 = vsel %vm619, %v2527, 0
      %v2615 = vsel %vm619, %v2528, 0
      %v2618 = vsel %vm619, %v2529, 0
      %v2621 = vsel %vm619, %v2530, 0
      %v2624 = vsel %vm619, %v2531, 0
      %v2627 = vsel %vm619, %v2532, 0
      %v2630 = vsel %vm619, %v2533, 0
      %v2633 = vsel %vm619, %v2534, 0
      %v2636 = vsel %vm850, %v710, 0
      %2638 = vmatprep.subr.mxu0 0.0
      %2639 = vmatpush1.msra.mxu0 0.0
      %2640 = vmatprep.subr.mxu0 0.0
      %2641 = vmatpush1.msra.mxu0 0.0
      %2642 = vmatprep.subr.mxu0 0.0
      %2643 = vmatpush1.msra.mxu0 0.0
      %2644 = vmatprep.subr.mxu0 0.0
      %2645 = vmatpush1.msra.mxu0 0.0
      %2646 = vmatprep.subr.mxu0 0.0
      %2647 = vmatpush1.msra.mxu0 0.0
      %2648 = vmatprep.subr.mxu0 0.0
      %2649 = vmatpush1.msra.mxu0 0.0
      %2650 = vmatprep.subr.mxu0 0.0
      %2651 = vmatpush1.msra.mxu0 0.0
      %2652 = vmatprep.subr.mxu0 0.0
      %2653 = vmatpush1.msra.mxu0 0.0
      %2654 = vmatprep.subr.mxu0 0.0
      %2655 = vmatpush1.msra.mxu0 0.0
      %2656 = vmatprep.subr.mxu0 0.0
      %2657 = vmatpush1.msra.mxu0 0.0
      %2658 = vmatprep.subr.mxu0 0.0
      %2659 = vmatpush1.msra.mxu0 0.0
      %2660 = vmatprep.subr.mxu0 0.0
      %2661 = vmatpush1.msra.mxu0 0.0
      %2662 = vmatprep.subr.mxu0 0.0
      %2663 = vmatpush1.msra.mxu0 0.0
      %2664 = vmatprep.subr.mxu0 0.0
      %2665 = vmatpush1.msra.mxu0 0.0
      %2666 = vmatprep.subr.mxu0 0.0
      %2667 = vmatpush1.msra.mxu0 0.0
      %2668 = vmatprep.subr.mxu0 0.0
      %2669 = vmatpush1.msra.mxu0 %v2636
      %2670 = vmatprep.subr.mxu0 0.0
      %2671 = vmatpush2.msra.mxu0 0.0
      %2672 = vmatprep.subr.mxu0 0.0
      %2673 = vmatpush2.msra.mxu0 0.0
      %2674 = vmatprep.subr.mxu0 0.0
      %2675 = vmatpush2.msra.mxu0 0.0
      %2676 = vmatprep.subr.mxu0 0.0
      %2677 = vmatpush2.msra.mxu0 0.0
      %2678 = vmatprep.subr.mxu0 0.0
      %2679 = vmatpush2.msra.mxu0 0.0
      %2680 = vmatprep.subr.mxu0 0.0
      %2681 = vmatpush2.msra.mxu0 0.0
      %2682 = vmatprep.subr.mxu0 0.0
      %2683 = vmatpush2.msra.mxu0 0.0
      %2684 = vmatprep.subr.mxu0 0.0
      %2685 = vmatpush2.msra.mxu0 0.0
      %2686 = vmatprep.subr.mxu0 0.0
      %2687 = vmatpush2.msra.mxu0 0.0
      %2688 = vmatprep.subr.mxu0 0.0
      %2689 = vmatpush2.msra.mxu0 0.0
      %2690 = vmatprep.subr.mxu0 0.0
      %2691 = vmatpush2.msra.mxu0 0.0
      %2692 = vmatprep.subr.mxu0 0.0
      %2693 = vmatpush2.msra.mxu0 0.0
      %2694 = vmatprep.subr.mxu0 0.0
      %2695 = vmatpush2.msra.mxu0 0.0
      %2696 = vmatprep.subr.mxu0 0.0
      %2697 = vmatpush2.msra.mxu0 0.0
      %2698 = vmatprep.subr.mxu0 0.0
      %2699 = vmatpush2.msra.mxu0 0.0
      %2700 = vmatprep.subr.mxu0 0.0
      %2701 = vmatpush2.msra.mxu0 0.0
      %2702 = vmatprep.mubr.f32.mxu0 0.0
      %2703 = vmatmul.mubr.f32.gmra.mxu0 %v2540
      %v2704 = vpop.f32.mrf.mxu0
      %v2705 = vadd.f32 0.0, %v2704
      %v2706 = vpop.f32.mrf.mxu0
      %2707 = vmatprep.mubr.f32.mxu0 0.0
      %2708 = vmatmul.mubr.f32.gmra.mxu0 %v2543
      %v2709 = vpop.f32.mrf.mxu0
      %v2710 = vadd.f32 0.0, %v2709
      %v2711 = vpop.f32.mrf.mxu0
      %2712 = vmatprep.mubr.f32.mxu0 0.0
      %2713 = vmatmul.mubr.f32.gmra.mxu0 %v2546
      %v2714 = vpop.f32.mrf.mxu0
      %v2715 = vadd.f32 0.0, %v2714
      %v2716 = vpop.f32.mrf.mxu0
      %2717 = vmatprep.mubr.f32.mxu0 0.0
      %2718 = vmatmul.mubr.f32.gmra.mxu0 %v2549
      %v2719 = vpop.f32.mrf.mxu0
      %v2720 = vadd.f32 0.0, %v2719
      %v2721 = vpop.f32.mrf.mxu0
      %2722 = vmatprep.mubr.f32.mxu0 0.0
      %2723 = vmatmul.mubr.f32.gmra.mxu0 %v2552
      %v2724 = vpop.f32.mrf.mxu0
      %v2725 = vadd.f32 0.0, %v2724
      %v2726 = vpop.f32.mrf.mxu0
      %2727 = vmatprep.mubr.f32.mxu0 0.0
      %2728 = vmatmul.mubr.f32.gmra.mxu0 %v2555
      %v2729 = vpop.f32.mrf.mxu0
      %v2730 = vadd.f32 0.0, %v2729
      %v2731 = vpop.f32.mrf.mxu0
      %2732 = vmatprep.mubr.f32.mxu0 0.0
      %2733 = vmatmul.mubr.f32.gmra.mxu0 %v2558
      %v2734 = vpop.f32.mrf.mxu0
      %v2735 = vadd.f32 0.0, %v2734
      %v2736 = vpop.f32.mrf.mxu0
      %2737 = vmatprep.mubr.f32.mxu0 0.0
      %2738 = vmatmul.mubr.f32.gmra.mxu0 %v2561
      %v2739 = vpop.f32.mrf.mxu0
      %v2740 = vadd.f32 0.0, %v2739
      %v2741 = vpop.f32.mrf.mxu0
      %2742 = vmatprep.mubr.f32.mxu0 0.0
      %2743 = vmatmul.mubr.f32.gmra.mxu0 %v2564
      %v2744 = vpop.f32.mrf.mxu0
      %v2745 = vadd.f32 0.0, %v2744
      %v2746 = vpop.f32.mrf.mxu0
      %2747 = vmatprep.mubr.f32.mxu0 0.0
      %2748 = vmatmul.mubr.f32.gmra.mxu0 %v2567
      %v2749 = vpop.f32.mrf.mxu0
      %v2750 = vadd.f32 0.0, %v2749
      %v2751 = vpop.f32.mrf.mxu0
      %2752 = vmatprep.mubr.f32.mxu0 0.0
      %2753 = vmatmul.mubr.f32.gmra.mxu0 %v2570
      %v2754 = vpop.f32.mrf.mxu0
      %v2755 = vadd.f32 0.0, %v2754
      %v2756 = vpop.f32.mrf.mxu0
      %2757 = vmatprep.mubr.f32.mxu0 0.0
      %2758 = vmatmul.mubr.f32.gmra.mxu0 %v2573
      %v2759 = vpop.f32.mrf.mxu0
      %v2760 = vadd.f32 0.0, %v2759
      %v2761 = vpop.f32.mrf.mxu0
      %2762 = vmatprep.mubr.f32.mxu0 0.0
      %2763 = vmatmul.mubr.f32.gmra.mxu0 %v2576
      %v2764 = vpop.f32.mrf.mxu0
      %v2765 = vadd.f32 0.0, %v2764
      %v2766 = vpop.f32.mrf.mxu0
      %2767 = vmatprep.mubr.f32.mxu0 0.0
      %2768 = vmatmul.mubr.f32.gmra.mxu0 %v2579
      %v2769 = vpop.f32.mrf.mxu0
      %v2770 = vadd.f32 0.0, %v2769
      %v2771 = vpop.f32.mrf.mxu0
      %2772 = vmatprep.mubr.f32.mxu0 0.0
      %2773 = vmatmul.mubr.f32.gmra.mxu0 %v2582
      %v2774 = vpop.f32.mrf.mxu0
      %v2775 = vadd.f32 0.0, %v2774
      %v2776 = vpop.f32.mrf.mxu0
      %2777 = vmatprep.mubr.f32.mxu0 0.0
      %2778 = vmatmul.mubr.f32.gmra.mxu0 %v2585
      %v2779 = vpop.f32.mrf.mxu0
      %v2780 = vadd.f32 0.0, %v2779
      %v2781 = vpop.f32.mrf.mxu0
      %2782 = vmatprep.mubr.f32.mxu0 0.0
      %2783 = vmatmul.mubr.f32.gmra.mxu0 %v2588
      %v2784 = vpop.f32.mrf.mxu0
      %v2785 = vadd.f32 0.0, %v2784
      %v2786 = vpop.f32.mrf.mxu0
      %2787 = vmatprep.mubr.f32.mxu0 0.0
      %2788 = vmatmul.mubr.f32.gmra.mxu0 %v2591
      %v2789 = vpop.f32.mrf.mxu0
      %v2790 = vadd.f32 0.0, %v2789
      %v2791 = vpop.f32.mrf.mxu0
      %2792 = vmatprep.mubr.f32.mxu0 0.0
      %2793 = vmatmul.mubr.f32.gmra.mxu0 %v2594
      %v2794 = vpop.f32.mrf.mxu0
      %v2795 = vadd.f32 0.0, %v2794
      %v2796 = vpop.f32.mrf.mxu0
      %2797 = vmatprep.mubr.f32.mxu0 0.0
      %2798 = vmatmul.mubr.f32.gmra.mxu0 %v2597
      %v2799 = vpop.f32.mrf.mxu0
      %v2800 = vadd.f32 0.0, %v2799
      %v2801 = vpop.f32.mrf.mxu0
      %2802 = vmatprep.mubr.f32.mxu0 0.0
      %2803 = vmatmul.mubr.f32.gmra.mxu0 %v2600
      %v2804 = vpop.f32.mrf.mxu0
      %v2805 = vadd.f32 0.0, %v2804
      %v2806 = vpop.f32.mrf.mxu0
      %2807 = vmatprep.mubr.f32.mxu0 0.0
      %2808 = vmatmul.mubr.f32.gmra.mxu0 %v2603
      %v2809 = vpop.f32.mrf.mxu0
      %v2810 = vadd.f32 0.0, %v2809
      %v2811 = vpop.f32.mrf.mxu0
      %2812 = vmatprep.mubr.f32.mxu0 0.0
      %2813 = vmatmul.mubr.f32.gmra.mxu0 %v2606
      %v2814 = vpop.f32.mrf.mxu0
      %v2815 = vadd.f32 0.0, %v2814
      %v2816 = vpop.f32.mrf.mxu0
      %2817 = vmatprep.mubr.f32.mxu0 0.0
      %2818 = vmatmul.mubr.f32.gmra.mxu0 %v2609
      %v2819 = vpop.f32.mrf.mxu0
      %v2820 = vadd.f32 0.0, %v2819
      %v2821 = vpop.f32.mrf.mxu0
      %2822 = vmatprep.mubr.f32.mxu0 0.0
      %2823 = vmatmul.mubr.f32.gmra.mxu0 %v2612
      %v2824 = vpop.f32.mrf.mxu0
      %v2825 = vadd.f32 0.0, %v2824
      %v2826 = vpop.f32.mrf.mxu0
      %2827 = vmatprep.mubr.f32.mxu0 0.0
      %2828 = vmatmul.mubr.f32.gmra.mxu0 %v2615
      %v2829 = vpop.f32.mrf.mxu0
      %v2830 = vadd.f32 0.0, %v2829
      %v2831 = vpop.f32.mrf.mxu0
      %2832 = vmatprep.mubr.f32.mxu0 0.0
      %2833 = vmatmul.mubr.f32.gmra.mxu0 %v2618
      %v2834 = vpop.f32.mrf.mxu0
      %v2835 = vadd.f32 0.0, %v2834
      %v2836 = vpop.f32.mrf.mxu0
      %2837 = vmatprep.mubr.f32.mxu0 0.0
      %2838 = vmatmul.mubr.f32.gmra.mxu0 %v2621
      %v2839 = vpop.f32.mrf.mxu0
      %v2840 = vadd.f32 0.0, %v2839
      %v2841 = vpop.f32.mrf.mxu0
      %2842 = vmatprep.mubr.f32.mxu0 0.0
      %2843 = vmatmul.mubr.f32.gmra.mxu0 %v2624
      %v2844 = vpop.f32.mrf.mxu0
      %v2845 = vadd.f32 0.0, %v2844
      %v2846 = vpop.f32.mrf.mxu0
      %2847 = vmatprep.mubr.f32.mxu0 0.0
      %2848 = vmatmul.mubr.f32.gmra.mxu0 %v2627
      %v2849 = vpop.f32.mrf.mxu0
      %v2850 = vadd.f32 0.0, %v2849
      %v2851 = vpop.f32.mrf.mxu0
      %2852 = vmatprep.mubr.f32.mxu0 0.0
      %2853 = vmatmul.mubr.f32.gmra.mxu0 %v2630
      %v2854 = vpop.f32.mrf.mxu0
      %v2855 = vadd.f32 0.0, %v2854
      %v2856 = vpop.f32.mrf.mxu0
      %2857 = vmatprep.mubr.f32.mxu0 0.0
      %2858 = vmatmul.mubr.f32.gmra.mxu0 %v2633
      %v2859 = vpop.f32.mrf.mxu0
      %v2860 = vadd.f32 0.0, %v2859
      %v2861 = vpop.f32.mrf.mxu0
      %2862 = vdwg.mxu0
      %v2863 = vadd.f32 %v2471, %v2705
      %v2864 = vadd.f32 %v2472, %v2710
      %v2865 = vadd.f32 %v2473, %v2715
      %v2866 = vadd.f32 %v2474, %v2720
      %v2867 = vadd.f32 %v2475, %v2725
      %v2868 = vadd.f32 %v2476, %v2730
      %v2869 = vadd.f32 %v2477, %v2735
      %v2870 = vadd.f32 %v2478, %v2740
      %v2871 = vadd.f32 %v2479, %v2745
      %v2872 = vadd.f32 %v2480, %v2750
      %v2873 = vadd.f32 %v2481, %v2755
      %v2874 = vadd.f32 %v2482, %v2760
      %v2875 = vadd.f32 %v2483, %v2765
      %v2876 = vadd.f32 %v2484, %v2770
      %v2877 = vadd.f32 %v2485, %v2775
      %v2878 = vadd.f32 %v2486, %v2780
      %v2879 = vadd.f32 %v2487, %v2785
      %v2880 = vadd.f32 %v2488, %v2790
      %v2881 = vadd.f32 %v2489, %v2795
      %v2882 = vadd.f32 %v2490, %v2800
      %v2883 = vadd.f32 %v2491, %v2805
      %v2884 = vadd.f32 %v2492, %v2810
      %v2885 = vadd.f32 %v2493, %v2815
      %v2886 = vadd.f32 %v2494, %v2820
      %v2887 = vadd.f32 %v2495, %v2825
      %v2888 = vadd.f32 %v2496, %v2830
      %v2889 = vadd.f32 %v2497, %v2835
      %v2890 = vadd.f32 %v2498, %v2840
      %v2891 = vadd.f32 %v2499, %v2845
      %v2892 = vadd.f32 %v2500, %v2850
      %v2893 = vadd.f32 %v2501, %v2855
      %v2894 = vadd.f32 %v2502, %v2860
      %v2896 = vsel %vm619, %v2535, 0
      %v2899 = vsel %vm619, %v2536, 0
      %v2902 = vsel %vm850, %v713, 0
      %2904 = vmatprep.subr.mxu0 0.0
      %2905 = vmatpush1.msra.mxu0 0.0
      %2906 = vmatprep.subr.mxu0 0.0
      %2907 = vmatpush1.msra.mxu0 0.0
      %2908 = vmatprep.subr.mxu0 0.0
      %2909 = vmatpush1.msra.mxu0 0.0
      %2910 = vmatprep.subr.mxu0 0.0
      %2911 = vmatpush1.msra.mxu0 0.0
      %2912 = vmatprep.subr.mxu0 0.0
      %2913 = vmatpush1.msra.mxu0 0.0
      %2914 = vmatprep.subr.mxu0 0.0
      %2915 = vmatpush1.msra.mxu0 0.0
      %2916 = vmatprep.subr.mxu0 0.0
      %2917 = vmatpush1.msra.mxu0 0.0
      %2918 = vmatprep.subr.mxu0 0.0
      %2919 = vmatpush1.msra.mxu0 0.0
      %2920 = vmatprep.subr.mxu0 0.0
      %2921 = vmatpush1.msra.mxu0 0.0
      %2922 = vmatprep.subr.mxu0 0.0
      %2923 = vmatpush1.msra.mxu0 0.0
      %2924 = vmatprep.subr.mxu0 0.0
      %2925 = vmatpush1.msra.mxu0 0.0
      %2926 = vmatprep.subr.mxu0 0.0
      %2927 = vmatpush1.msra.mxu0 0.0
      %2928 = vmatprep.subr.mxu0 0.0
      %2929 = vmatpush1.msra.mxu0 0.0
      %2930 = vmatprep.subr.mxu0 0.0
      %2931 = vmatpush1.msra.mxu0 0.0
      %2932 = vmatprep.subr.mxu0 0.0
      %2933 = vmatpush1.msra.mxu0 0.0
      %2934 = vmatprep.subr.mxu0 0.0
      %2935 = vmatpush1.msra.mxu0 %v2902
      %2936 = vmatprep.subr.mxu0 0.0
      %2937 = vmatpush2.msra.mxu0 0.0
      %2938 = vmatprep.subr.mxu0 0.0
      %2939 = vmatpush2.msra.mxu0 0.0
      %2940 = vmatprep.subr.mxu0 0.0
      %2941 = vmatpush2.msra.mxu0 0.0
      %2942 = vmatprep.subr.mxu0 0.0
      %2943 = vmatpush2.msra.mxu0 0.0
      %2944 = vmatprep.subr.mxu0 0.0
      %2945 = vmatpush2.msra.mxu0 0.0
      %2946 = vmatprep.subr.mxu0 0.0
      %2947 = vmatpush2.msra.mxu0 0.0
      %2948 = vmatprep.subr.mxu0 0.0
      %2949 = vmatpush2.msra.mxu0 0.0
      %2950 = vmatprep.subr.mxu0 0.0
      %2951 = vmatpush2.msra.mxu0 0.0
      %2952 = vmatprep.subr.mxu0 0.0
      %2953 = vmatpush2.msra.mxu0 0.0
      %2954 = vmatprep.subr.mxu0 0.0
      %2955 = vmatpush2.msra.mxu0 0.0
      %2956 = vmatprep.subr.mxu0 0.0
      %2957 = vmatpush2.msra.mxu0 0.0
      %2958 = vmatprep.subr.mxu0 0.0
      %2959 = vmatpush2.msra.mxu0 0.0
      %2960 = vmatprep.subr.mxu0 0.0
      %2961 = vmatpush2.msra.mxu0 0.0
      %2962 = vmatprep.subr.mxu0 0.0
      %2963 = vmatpush2.msra.mxu0 0.0
      %2964 = vmatprep.subr.mxu0 0.0
      %2965 = vmatpush2.msra.mxu0 0.0
      %2966 = vmatprep.subr.mxu0 0.0
      %2967 = vmatpush2.msra.mxu0 0.0
      %2968 = vmatprep.mubr.f32.mxu0 0.0
      %2969 = vmatmul.mubr.f32.gmra.mxu0 %v2546
      %v2970 = vpop.f32.mrf.mxu0
      %v2971 = vadd.f32 0.0, %v2970
      %v2972 = vpop.f32.mrf.mxu0
      %2973 = vmatprep.mubr.f32.mxu0 0.0
      %2974 = vmatmul.mubr.f32.gmra.mxu0 %v2549
      %v2975 = vpop.f32.mrf.mxu0
      %v2976 = vadd.f32 0.0, %v2975
      %v2977 = vpop.f32.mrf.mxu0
      %2978 = vmatprep.mubr.f32.mxu0 0.0
      %2979 = vmatmul.mubr.f32.gmra.mxu0 %v2552
      %v2980 = vpop.f32.mrf.mxu0
      %v2981 = vadd.f32 0.0, %v2980
      %v2982 = vpop.f32.mrf.mxu0
      %2983 = vmatprep.mubr.f32.mxu0 0.0
      %2984 = vmatmul.mubr.f32.gmra.mxu0 %v2555
      %v2985 = vpop.f32.mrf.mxu0
      %v2986 = vadd.f32 0.0, %v2985
      %v2987 = vpop.f32.mrf.mxu0
      %2988 = vmatprep.mubr.f32.mxu0 0.0
      %2989 = vmatmul.mubr.f32.gmra.mxu0 %v2558
      %v2990 = vpop.f32.mrf.mxu0
      %v2991 = vadd.f32 0.0, %v2990
      %v2992 = vpop.f32.mrf.mxu0
      %2993 = vmatprep.mubr.f32.mxu0 0.0
      %2994 = vmatmul.mubr.f32.gmra.mxu0 %v2561
      %v2995 = vpop.f32.mrf.mxu0
      %v2996 = vadd.f32 0.0, %v2995
      %v2997 = vpop.f32.mrf.mxu0
      %2998 = vmatprep.mubr.f32.mxu0 0.0
      %2999 = vmatmul.mubr.f32.gmra.mxu0 %v2564
      %v3000 = vpop.f32.mrf.mxu0
      %v3001 = vadd.f32 0.0, %v3000
      %v3002 = vpop.f32.mrf.mxu0
      %3003 = vmatprep.mubr.f32.mxu0 0.0
      %3004 = vmatmul.mubr.f32.gmra.mxu0 %v2567
      %v3005 = vpop.f32.mrf.mxu0
      %v3006 = vadd.f32 0.0, %v3005
      %v3007 = vpop.f32.mrf.mxu0
      %3008 = vmatprep.mubr.f32.mxu0 0.0
      %3009 = vmatmul.mubr.f32.gmra.mxu0 %v2570
      %v3010 = vpop.f32.mrf.mxu0
      %v3011 = vadd.f32 0.0, %v3010
      %v3012 = vpop.f32.mrf.mxu0
      %3013 = vmatprep.mubr.f32.mxu0 0.0
      %3014 = vmatmul.mubr.f32.gmra.mxu0 %v2573
      %v3015 = vpop.f32.mrf.mxu0
      %v3016 = vadd.f32 0.0, %v3015
      %v3017 = vpop.f32.mrf.mxu0
      %3018 = vmatprep.mubr.f32.mxu0 0.0
      %3019 = vmatmul.mubr.f32.gmra.mxu0 %v2576
      %v3020 = vpop.f32.mrf.mxu0
      %v3021 = vadd.f32 0.0, %v3020
      %v3022 = vpop.f32.mrf.mxu0
      %3023 = vmatprep.mubr.f32.mxu0 0.0
      %3024 = vmatmul.mubr.f32.gmra.mxu0 %v2579
      %v3025 = vpop.f32.mrf.mxu0
      %v3026 = vadd.f32 0.0, %v3025
      %v3027 = vpop.f32.mrf.mxu0
      %3028 = vmatprep.mubr.f32.mxu0 0.0
      %3029 = vmatmul.mubr.f32.gmra.mxu0 %v2582
      %v3030 = vpop.f32.mrf.mxu0
      %v3031 = vadd.f32 0.0, %v3030
      %v3032 = vpop.f32.mrf.mxu0
      %3033 = vmatprep.mubr.f32.mxu0 0.0
      %3034 = vmatmul.mubr.f32.gmra.mxu0 %v2585
      %v3035 = vpop.f32.mrf.mxu0
      %v3036 = vadd.f32 0.0, %v3035
      %v3037 = vpop.f32.mrf.mxu0
      %3038 = vmatprep.mubr.f32.mxu0 0.0
      %3039 = vmatmul.mubr.f32.gmra.mxu0 %v2588
      %v3040 = vpop.f32.mrf.mxu0
      %v3041 = vadd.f32 0.0, %v3040
      %v3042 = vpop.f32.mrf.mxu0
      %3043 = vmatprep.mubr.f32.mxu0 0.0
      %3044 = vmatmul.mubr.f32.gmra.mxu0 %v2591
      %v3045 = vpop.f32.mrf.mxu0
      %v3046 = vadd.f32 0.0, %v3045
      %v3047 = vpop.f32.mrf.mxu0
      %3048 = vmatprep.mubr.f32.mxu0 0.0
      %3049 = vmatmul.mubr.f32.gmra.mxu0 %v2594
      %v3050 = vpop.f32.mrf.mxu0
      %v3051 = vadd.f32 0.0, %v3050
      %v3052 = vpop.f32.mrf.mxu0
      %3053 = vmatprep.mubr.f32.mxu0 0.0
      %3054 = vmatmul.mubr.f32.gmra.mxu0 %v2597
      %v3055 = vpop.f32.mrf.mxu0
      %v3056 = vadd.f32 0.0, %v3055
      %v3057 = vpop.f32.mrf.mxu0
      %3058 = vmatprep.mubr.f32.mxu0 0.0
      %3059 = vmatmul.mubr.f32.gmra.mxu0 %v2600
      %v3060 = vpop.f32.mrf.mxu0
      %v3061 = vadd.f32 0.0, %v3060
      %v3062 = vpop.f32.mrf.mxu0
      %3063 = vmatprep.mubr.f32.mxu0 0.0
      %3064 = vmatmul.mubr.f32.gmra.mxu0 %v2603
      %v3065 = vpop.f32.mrf.mxu0
      %v3066 = vadd.f32 0.0, %v3065
      %v3067 = vpop.f32.mrf.mxu0
      %3068 = vmatprep.mubr.f32.mxu0 0.0
      %3069 = vmatmul.mubr.f32.gmra.mxu0 %v2606
      %v3070 = vpop.f32.mrf.mxu0
      %v3071 = vadd.f32 0.0, %v3070
      %v3072 = vpop.f32.mrf.mxu0
      %3073 = vmatprep.mubr.f32.mxu0 0.0
      %3074 = vmatmul.mubr.f32.gmra.mxu0 %v2609
      %v3075 = vpop.f32.mrf.mxu0
      %v3076 = vadd.f32 0.0, %v3075
      %v3077 = vpop.f32.mrf.mxu0
      %3078 = vmatprep.mubr.f32.mxu0 0.0
      %3079 = vmatmul.mubr.f32.gmra.mxu0 %v2612
      %v3080 = vpop.f32.mrf.mxu0
      %v3081 = vadd.f32 0.0, %v3080
      %v3082 = vpop.f32.mrf.mxu0
      %3083 = vmatprep.mubr.f32.mxu0 0.0
      %3084 = vmatmul.mubr.f32.gmra.mxu0 %v2615
      %v3085 = vpop.f32.mrf.mxu0
      %v3086 = vadd.f32 0.0, %v3085
      %v3087 = vpop.f32.mrf.mxu0
      %3088 = vmatprep.mubr.f32.mxu0 0.0
      %3089 = vmatmul.mubr.f32.gmra.mxu0 %v2618
      %v3090 = vpop.f32.mrf.mxu0
      %v3091 = vadd.f32 0.0, %v3090
      %v3092 = vpop.f32.mrf.mxu0
      %3093 = vmatprep.mubr.f32.mxu0 0.0
      %3094 = vmatmul.mubr.f32.gmra.mxu0 %v2621
      %v3095 = vpop.f32.mrf.mxu0
      %v3096 = vadd.f32 0.0, %v3095
      %v3097 = vpop.f32.mrf.mxu0
      %3098 = vmatprep.mubr.f32.mxu0 0.0
      %3099 = vmatmul.mubr.f32.gmra.mxu0 %v2624
      %v3100 = vpop.f32.mrf.mxu0
      %v3101 = vadd.f32 0.0, %v3100
      %v3102 = vpop.f32.mrf.mxu0
      %3103 = vmatprep.mubr.f32.mxu0 0.0
      %3104 = vmatmul.mubr.f32.gmra.mxu0 %v2627
      %v3105 = vpop.f32.mrf.mxu0
      %v3106 = vadd.f32 0.0, %v3105
      %v3107 = vpop.f32.mrf.mxu0
      %3108 = vmatprep.mubr.f32.mxu0 0.0
      %3109 = vmatmul.mubr.f32.gmra.mxu0 %v2630
      %v3110 = vpop.f32.mrf.mxu0
      %v3111 = vadd.f32 0.0, %v3110
      %v3112 = vpop.f32.mrf.mxu0
      %3113 = vmatprep.mubr.f32.mxu0 0.0
      %3114 = vmatmul.mubr.f32.gmra.mxu0 %v2633
      %v3115 = vpop.f32.mrf.mxu0
      %v3116 = vadd.f32 0.0, %v3115
      %v3117 = vpop.f32.mrf.mxu0
      %3118 = vmatprep.mubr.f32.mxu0 0.0
      %3119 = vmatmul.mubr.f32.gmra.mxu0 %v2896
      %v3120 = vpop.f32.mrf.mxu0
      %v3121 = vadd.f32 0.0, %v3120
      %v3122 = vpop.f32.mrf.mxu0
      %3123 = vmatprep.mubr.f32.mxu0 0.0
      %3124 = vmatmul.mubr.f32.gmra.mxu0 %v2899
      %v3125 = vpop.f32.mrf.mxu0
      %v3126 = vadd.f32 0.0, %v3125
      %v3127 = vpop.f32.mrf.mxu0
      %3128 = vdwg.mxu0
      %v3129 = vadd.f32 %v2863, %v2971
      %v3130 = vadd.f32 %v2864, %v2976
      %v3131 = vadd.f32 %v2865, %v2981
      %v3132 = vadd.f32 %v2866, %v2986
      %v3133 = vadd.f32 %v2867, %v2991
      %v3134 = vadd.f32 %v2868, %v2996
      %v3135 = vadd.f32 %v2869, %v3001
      %v3136 = vadd.f32 %v2870, %v3006
      %v3137 = vadd.f32 %v2871, %v3011
      %v3138 = vadd.f32 %v2872, %v3016
      %v3139 = vadd.f32 %v2873, %v3021
      %v3140 = vadd.f32 %v2874, %v3026
      %v3141 = vadd.f32 %v2875, %v3031
      %v3142 = vadd.f32 %v2876, %v3036
      %v3143 = vadd.f32 %v2877, %v3041
      %v3144 = vadd.f32 %v2878, %v3046
      %v3145 = vadd.f32 %v2879, %v3051
      %v3146 = vadd.f32 %v2880, %v3056
      %v3147 = vadd.f32 %v2881, %v3061
      %v3148 = vadd.f32 %v2882, %v3066
      %v3149 = vadd.f32 %v2883, %v3071
      %v3150 = vadd.f32 %v2884, %v3076
      %v3151 = vadd.f32 %v2885, %v3081
      %v3152 = vadd.f32 %v2886, %v3086
      %v3153 = vadd.f32 %v2887, %v3091
      %v3154 = vadd.f32 %v2888, %v3096
      %v3155 = vadd.f32 %v2889, %v3101
      %v3156 = vadd.f32 %v2890, %v3106
      %v3157 = vadd.f32 %v2891, %v3111
      %v3158 = vadd.f32 %v2892, %v3116
      %v3159 = vadd.f32 %v2893, %v3121
      %v3160 = vadd.f32 %v2894, %v3126
      %v3162 = vsel %vm619, %v2537, 0
      %v3165 = vsel %vm619, %v2538, 0
      %v3168 = vsel %vm850, %v716, 0
      %3170 = vmatprep.subr.mxu0 0.0
      %3171 = vmatpush1.msra.mxu0 0.0
      %3172 = vmatprep.subr.mxu0 0.0
      %3173 = vmatpush1.msra.mxu0 0.0
      %3174 = vmatprep.subr.mxu0 0.0
      %3175 = vmatpush1.msra.mxu0 0.0
      %3176 = vmatprep.subr.mxu0 0.0
      %3177 = vmatpush1.msra.mxu0 0.0
      %3178 = vmatprep.subr.mxu0 0.0
      %3179 = vmatpush1.msra.mxu0 0.0
      %3180 = vmatprep.subr.mxu0 0.0
      %3181 = vmatpush1.msra.mxu0 0.0
      %3182 = vmatprep.subr.mxu0 0.0
      %3183 = vmatpush1.msra.mxu0 0.0
      %3184 = vmatprep.subr.mxu0 0.0
      %3185 = vmatpush1.msra.mxu0 0.0
      %3186 = vmatprep.subr.mxu0 0.0
      %3187 = vmatpush1.msra.mxu0 0.0
      %3188 = vmatprep.subr.mxu0 0.0
      %3189 = vmatpush1.msra.mxu0 0.0
      %3190 = vmatprep.subr.mxu0 0.0
      %3191 = vmatpush1.msra.mxu0 0.0
      %3192 = vmatprep.subr.mxu0 0.0
      %3193 = vmatpush1.msra.mxu0 0.0
      %3194 = vmatprep.subr.mxu0 0.0
      %3195 = vmatpush1.msra.mxu0 0.0
      %3196 = vmatprep.subr.mxu0 0.0
      %3197 = vmatpush1.msra.mxu0 0.0
      %3198 = vmatprep.subr.mxu0 0.0
      %3199 = vmatpush1.msra.mxu0 0.0
      %3200 = vmatprep.subr.mxu0 0.0
      %3201 = vmatpush1.msra.mxu0 %v3168
      %3202 = vmatprep.subr.mxu0 0.0
      %3203 = vmatpush2.msra.mxu0 0.0
      %3204 = vmatprep.subr.mxu0 0.0
      %3205 = vmatpush2.msra.mxu0 0.0
      %3206 = vmatprep.subr.mxu0 0.0
      %3207 = vmatpush2.msra.mxu0 0.0
      %3208 = vmatprep.subr.mxu0 0.0
      %3209 = vmatpush2.msra.mxu0 0.0
      %3210 = vmatprep.subr.mxu0 0.0
      %3211 = vmatpush2.msra.mxu0 0.0
      %3212 = vmatprep.subr.mxu0 0.0
      %3213 = vmatpush2.msra.mxu0 0.0
      %3214 = vmatprep.subr.mxu0 0.0
      %3215 = vmatpush2.msra.mxu0 0.0
      %3216 = vmatprep.subr.mxu0 0.0
      %3217 = vmatpush2.msra.mxu0 0.0
      %3218 = vmatprep.subr.mxu0 0.0
      %3219 = vmatpush2.msra.mxu0 0.0
      %3220 = vmatprep.subr.mxu0 0.0
      %3221 = vmatpush2.msra.mxu0 0.0
      %3222 = vmatprep.subr.mxu0 0.0
      %3223 = vmatpush2.msra.mxu0 0.0
      %3224 = vmatprep.subr.mxu0 0.0
      %3225 = vmatpush2.msra.mxu0 0.0
      %3226 = vmatprep.subr.mxu0 0.0
      %3227 = vmatpush2.msra.mxu0 0.0
      %3228 = vmatprep.subr.mxu0 0.0
      %3229 = vmatpush2.msra.mxu0 0.0
      %3230 = vmatprep.subr.mxu0 0.0
      %3231 = vmatpush2.msra.mxu0 0.0
      %3232 = vmatprep.subr.mxu0 0.0
      %3233 = vmatpush2.msra.mxu0 0.0
      %3234 = vmatprep.mubr.f32.mxu0 0.0
      %3235 = vmatmul.mubr.f32.gmra.mxu0 %v2552
      %v3236 = vpop.f32.mrf.mxu0
      %v3237 = vadd.f32 0.0, %v3236
      %v3238 = vpop.f32.mrf.mxu0
      %3239 = vmatprep.mubr.f32.mxu0 0.0
      %3240 = vmatmul.mubr.f32.gmra.mxu0 %v2555
      %v3241 = vpop.f32.mrf.mxu0
      %v3242 = vadd.f32 0.0, %v3241
      %v3243 = vpop.f32.mrf.mxu0
      %3244 = vmatprep.mubr.f32.mxu0 0.0
      %3245 = vmatmul.mubr.f32.gmra.mxu0 %v2558
      %v3246 = vpop.f32.mrf.mxu0
      %v3247 = vadd.f32 0.0, %v3246
      %v3248 = vpop.f32.mrf.mxu0
      %3249 = vmatprep.mubr.f32.mxu0 0.0
      %3250 = vmatmul.mubr.f32.gmra.mxu0 %v2561
      %v3251 = vpop.f32.mrf.mxu0
      %v3252 = vadd.f32 0.0, %v3251
      %v3253 = vpop.f32.mrf.mxu0
      %3254 = vmatprep.mubr.f32.mxu0 0.0
      %3255 = vmatmul.mubr.f32.gmra.mxu0 %v2564
      %v3256 = vpop.f32.mrf.mxu0
      %v3257 = vadd.f32 0.0, %v3256
      %v3258 = vpop.f32.mrf.mxu0
      %3259 = vmatprep.mubr.f32.mxu0 0.0
      %3260 = vmatmul.mubr.f32.gmra.mxu0 %v2567
      %v3261 = vpop.f32.mrf.mxu0
      %v3262 = vadd.f32 0.0, %v3261
      %v3263 = vpop.f32.mrf.mxu0
      %3264 = vmatprep.mubr.f32.mxu0 0.0
      %3265 = vmatmul.mubr.f32.gmra.mxu0 %v2570
      %v3266 = vpop.f32.mrf.mxu0
      %v3267 = vadd.f32 0.0, %v3266
      %v3268 = vpop.f32.mrf.mxu0
      %3269 = vmatprep.mubr.f32.mxu0 0.0
      %3270 = vmatmul.mubr.f32.gmra.mxu0 %v2573
      %v3271 = vpop.f32.mrf.mxu0
      %v3272 = vadd.f32 0.0, %v3271
      %v3273 = vpop.f32.mrf.mxu0
      %3274 = vmatprep.mubr.f32.mxu0 0.0
      %3275 = vmatmul.mubr.f32.gmra.mxu0 %v2576
      %v3276 = vpop.f32.mrf.mxu0
      %v3277 = vadd.f32 0.0, %v3276
      %v3278 = vpop.f32.mrf.mxu0
      %3279 = vmatprep.mubr.f32.mxu0 0.0
      %3280 = vmatmul.mubr.f32.gmra.mxu0 %v2579
      %v3281 = vpop.f32.mrf.mxu0
      %v3282 = vadd.f32 0.0, %v3281
      %v3283 = vpop.f32.mrf.mxu0
      %3284 = vmatprep.mubr.f32.mxu0 0.0
      %3285 = vmatmul.mubr.f32.gmra.mxu0 %v2582
      %v3286 = vpop.f32.mrf.mxu0
      %v3287 = vadd.f32 0.0, %v3286
      %v3288 = vpop.f32.mrf.mxu0
      %3289 = vmatprep.mubr.f32.mxu0 0.0
      %3290 = vmatmul.mubr.f32.gmra.mxu0 %v2585
      %v3291 = vpop.f32.mrf.mxu0
      %v3292 = vadd.f32 0.0, %v3291
      %v3293 = vpop.f32.mrf.mxu0
      %3294 = vmatprep.mubr.f32.mxu0 0.0
      %3295 = vmatmul.mubr.f32.gmra.mxu0 %v2588
      %v3296 = vpop.f32.mrf.mxu0
      %v3297 = vadd.f32 0.0, %v3296
      %v3298 = vpop.f32.mrf.mxu0
      %3299 = vmatprep.mubr.f32.mxu0 0.0
      %3300 = vmatmul.mubr.f32.gmra.mxu0 %v2591
      %v3301 = vpop.f32.mrf.mxu0
      %v3302 = vadd.f32 0.0, %v3301
      %v3303 = vpop.f32.mrf.mxu0
      %3304 = vmatprep.mubr.f32.mxu0 0.0
      %3305 = vmatmul.mubr.f32.gmra.mxu0 %v2594
      %v3306 = vpop.f32.mrf.mxu0
      %v3307 = vadd.f32 0.0, %v3306
      %v3308 = vpop.f32.mrf.mxu0
      %3309 = vmatprep.mubr.f32.mxu0 0.0
      %3310 = vmatmul.mubr.f32.gmra.mxu0 %v2597
      %v3311 = vpop.f32.mrf.mxu0
      %v3312 = vadd.f32 0.0, %v3311
      %v3313 = vpop.f32.mrf.mxu0
      %3314 = vmatprep.mubr.f32.mxu0 0.0
      %3315 = vmatmul.mubr.f32.gmra.mxu0 %v2600
      %v3316 = vpop.f32.mrf.mxu0
      %v3317 = vadd.f32 0.0, %v3316
      %v3318 = vpop.f32.mrf.mxu0
      %3319 = vmatprep.mubr.f32.mxu0 0.0
      %3320 = vmatmul.mubr.f32.gmra.mxu0 %v2603
      %v3321 = vpop.f32.mrf.mxu0
      %v3322 = vadd.f32 0.0, %v3321
      %v3323 = vpop.f32.mrf.mxu0
      %3324 = vmatprep.mubr.f32.mxu0 0.0
      %3325 = vmatmul.mubr.f32.gmra.mxu0 %v2606
      %v3326 = vpop.f32.mrf.mxu0
      %v3327 = vadd.f32 0.0, %v3326
      %v3328 = vpop.f32.mrf.mxu0
      %3329 = vmatprep.mubr.f32.mxu0 0.0
      %3330 = vmatmul.mubr.f32.gmra.mxu0 %v2609
      %v3331 = vpop.f32.mrf.mxu0
      %v3332 = vadd.f32 0.0, %v3331
      %v3333 = vpop.f32.mrf.mxu0
      %3334 = vmatprep.mubr.f32.mxu0 0.0
      %3335 = vmatmul.mubr.f32.gmra.mxu0 %v2612
      %v3336 = vpop.f32.mrf.mxu0
      %v3337 = vadd.f32 0.0, %v3336
      %v3338 = vpop.f32.mrf.mxu0
      %3339 = vmatprep.mubr.f32.mxu0 0.0
      %3340 = vmatmul.mubr.f32.gmra.mxu0 %v2615
      %v3341 = vpop.f32.mrf.mxu0
      %v3342 = vadd.f32 0.0, %v3341
      %v3343 = vpop.f32.mrf.mxu0
      %3344 = vmatprep.mubr.f32.mxu0 0.0
      %3345 = vmatmul.mubr.f32.gmra.mxu0 %v2618
      %v3346 = vpop.f32.mrf.mxu0
      %v3347 = vadd.f32 0.0, %v3346
      %v3348 = vpop.f32.mrf.mxu0
      %3349 = vmatprep.mubr.f32.mxu0 0.0
      %3350 = vmatmul.mubr.f32.gmra.mxu0 %v2621
      %v3351 = vpop.f32.mrf.mxu0
      %v3352 = vadd.f32 0.0, %v3351
      %v3353 = vpop.f32.mrf.mxu0
      %3354 = vmatprep.mubr.f32.mxu0 0.0
      %3355 = vmatmul.mubr.f32.gmra.mxu0 %v2624
      %v3356 = vpop.f32.mrf.mxu0
      %v3357 = vadd.f32 0.0, %v3356
      %v3358 = vpop.f32.mrf.mxu0
      %3359 = vmatprep.mubr.f32.mxu0 0.0
      %3360 = vmatmul.mubr.f32.gmra.mxu0 %v2627
      %v3361 = vpop.f32.mrf.mxu0
      %v3362 = vadd.f32 0.0, %v3361
      %v3363 = vpop.f32.mrf.mxu0
      %3364 = vmatprep.mubr.f32.mxu0 0.0
      %3365 = vmatmul.mubr.f32.gmra.mxu0 %v2630
      %v3366 = vpop.f32.mrf.mxu0
      %v3367 = vadd.f32 0.0, %v3366
      %v3368 = vpop.f32.mrf.mxu0
      %3369 = vmatprep.mubr.f32.mxu0 0.0
      %3370 = vmatmul.mubr.f32.gmra.mxu0 %v2633
      %v3371 = vpop.f32.mrf.mxu0
      %v3372 = vadd.f32 0.0, %v3371
      %v3373 = vpop.f32.mrf.mxu0
      %3374 = vmatprep.mubr.f32.mxu0 0.0
      %3375 = vmatmul.mubr.f32.gmra.mxu0 %v2896
      %v3376 = vpop.f32.mrf.mxu0
      %v3377 = vadd.f32 0.0, %v3376
      %v3378 = vpop.f32.mrf.mxu0
      %3379 = vmatprep.mubr.f32.mxu0 0.0
      %3380 = vmatmul.mubr.f32.gmra.mxu0 %v2899
      %v3381 = vpop.f32.mrf.mxu0
      %v3382 = vadd.f32 0.0, %v3381
      %v3383 = vpop.f32.mrf.mxu0
      %3384 = vmatprep.mubr.f32.mxu0 0.0
      %3385 = vmatmul.mubr.f32.gmra.mxu0 %v3162
      %v3386 = vpop.f32.mrf.mxu0
      %v3387 = vadd.f32 0.0, %v3386
      %v3388 = vpop.f32.mrf.mxu0
      %3389 = vmatprep.mubr.f32.mxu0 0.0
      %3390 = vmatmul.mubr.f32.gmra.mxu0 %v3165
      %v3391 = vpop.f32.mrf.mxu0
      %v3392 = vadd.f32 0.0, %v3391
      %v3393 = vpop.f32.mrf.mxu0
      %3394 = vdwg.mxu0
      %v3395 = vadd.f32 %v3129, %v3237
      %v3396 = vadd.f32 %v3130, %v3242
      %v3397 = vadd.f32 %v3131, %v3247
      %v3398 = vadd.f32 %v3132, %v3252
      %v3399 = vadd.f32 %v3133, %v3257
      %v3400 = vadd.f32 %v3134, %v3262
      %v3401 = vadd.f32 %v3135, %v3267
      %v3402 = vadd.f32 %v3136, %v3272
      %v3403 = vadd.f32 %v3137, %v3277
      %v3404 = vadd.f32 %v3138, %v3282
      %v3405 = vadd.f32 %v3139, %v3287
      %v3406 = vadd.f32 %v3140, %v3292
      %v3407 = vadd.f32 %v3141, %v3297
      %v3408 = vadd.f32 %v3142, %v3302
      %v3409 = vadd.f32 %v3143, %v3307
      %v3410 = vadd.f32 %v3144, %v3312
      %v3411 = vadd.f32 %v3145, %v3317
      %v3412 = vadd.f32 %v3146, %v3322
      %v3413 = vadd.f32 %v3147, %v3327
      %v3414 = vadd.f32 %v3148, %v3332
      %v3415 = vadd.f32 %v3149, %v3337
      %v3416 = vadd.f32 %v3150, %v3342
      %v3417 = vadd.f32 %v3151, %v3347
      %v3418 = vadd.f32 %v3152, %v3352
      %v3419 = vadd.f32 %v3153, %v3357
      %v3420 = vadd.f32 %v3154, %v3362
      %v3421 = vadd.f32 %v3155, %v3367
      %v3422 = vadd.f32 %v3156, %v3372
      %v3423 = vadd.f32 %v3157, %v3377
      %v3424 = vadd.f32 %v3158, %v3382
      %v3425 = vadd.f32 %v3159, %v3387
      %v3426 = vadd.f32 %v3160, %v3392
      %v3428 = vlaneseq
      %v3429 = vshrl.u32 %v3428, 7
      %v3430 = vsub.s32 0, %v3429
      %v3431 = vrot.slane %v717, %v3430
      %v3433 = vadd.f32 %v3395, %v3431
      %v3434 = vadd.f32 %v3396, %v3431
      %v3435 = vadd.f32 %v3397, %v3431
      %v3436 = vadd.f32 %v3398, %v3431
      %v3437 = vadd.f32 %v3399, %v3431
      %v3438 = vadd.f32 %v3400, %v3431
      %v3439 = vadd.f32 %v3401, %v3431
      %v3440 = vadd.f32 %v3402, %v3431
      %v3441 = vadd.f32 %v3403, %v3431
      %v3442 = vadd.f32 %v3404, %v3431
      %v3443 = vadd.f32 %v3405, %v3431
      %v3444 = vadd.f32 %v3406, %v3431
      %v3445 = vadd.f32 %v3407, %v3431
      %v3446 = vadd.f32 %v3408, %v3431
      %v3447 = vadd.f32 %v3409, %v3431
      %v3448 = vadd.f32 %v3410, %v3431
      %v3449 = vadd.f32 %v3411, %v3431
      %v3450 = vadd.f32 %v3412, %v3431
      %v3451 = vadd.f32 %v3413, %v3431
      %v3452 = vadd.f32 %v3414, %v3431
      %v3453 = vadd.f32 %v3415, %v3431
      %v3454 = vadd.f32 %v3416, %v3431
      %v3455 = vadd.f32 %v3417, %v3431
      %v3456 = vadd.f32 %v3418, %v3431
      %v3457 = vadd.f32 %v3419, %v3431
      %v3458 = vadd.f32 %v3420, %v3431
      %v3459 = vadd.f32 %v3421, %v3431
      %v3460 = vadd.f32 %v3422, %v3431
      %v3461 = vadd.f32 %v3423, %v3431
      %v3462 = vadd.f32 %v3424, %v3431
      %v3463 = vadd.f32 %v3425, %v3431
      %v3464 = vadd.f32 %v3426, %v3431
      %v3465 = vmax.f32 %v3433, 0.0
      %v3466 = vmax.f32 %v3434, 0.0
      %v3467 = vmax.f32 %v3435, 0.0
      %v3468 = vmax.f32 %v3436, 0.0
      %v3469 = vmax.f32 %v3437, 0.0
      %v3470 = vmax.f32 %v3438, 0.0
      %v3471 = vmax.f32 %v3439, 0.0
      %v3472 = vmax.f32 %v3440, 0.0
      %v3473 = vmax.f32 %v3441, 0.0
      %v3474 = vmax.f32 %v3442, 0.0
      %v3475 = vmax.f32 %v3443, 0.0
      %v3476 = vmax.f32 %v3444, 0.0
      %v3477 = vmax.f32 %v3445, 0.0
      %v3478 = vmax.f32 %v3446, 0.0
      %v3479 = vmax.f32 %v3447, 0.0
      %v3480 = vmax.f32 %v3448, 0.0
      %v3481 = vmax.f32 %v3449, 0.0
      %v3482 = vmax.f32 %v3450, 0.0
      %v3483 = vmax.f32 %v3451, 0.0
      %v3484 = vmax.f32 %v3452, 0.0
      %v3485 = vmax.f32 %v3453, 0.0
      %v3486 = vmax.f32 %v3454, 0.0
      %v3487 = vmax.f32 %v3455, 0.0
      %v3488 = vmax.f32 %v3456, 0.0
      %v3489 = vmax.f32 %v3457, 0.0
      %v3490 = vmax.f32 %v3458, 0.0
      %v3491 = vmax.f32 %v3459, 0.0
      %v3492 = vmax.f32 %v3460, 0.0
      %v3493 = vmax.f32 %v3461, 0.0
      %v3494 = vmax.f32 %v3462, 0.0
      %v3495 = vmax.f32 %v3463, 0.0
      %v3496 = vmax.f32 %v3464, 0.0
      %3497 = vst.msk [vmem:[%s224] sm:$0xff] %vm265, %v3465
      %3498 = vst.msk [vmem:[%s224 + $0x8] sm:$0xff] %vm265, %v3466
      %3499 = vst.msk [vmem:[%s224 + $0x10] sm:$0xff] %vm265, %v3467
      %3500 = vst.msk [vmem:[%s224 + $0x18] sm:$0xff] %vm265, %v3468
      %3501 = vst.msk [vmem:[%s224 + $0x20] sm:$0xff] %vm265, %v3469
      %3502 = vst.msk [vmem:[%s224 + $0x28] sm:$0xff] %vm265, %v3470
      %3503 = vst.msk [vmem:[%s224 + $0x30] sm:$0xff] %vm265, %v3471
      %3504 = vst.msk [vmem:[%s224 + $0x38] sm:$0xff] %vm265, %v3472
      %3505 = vst.msk [vmem:[%s224 + $0x40] sm:$0xff] %vm265, %v3473
      %3506 = vst.msk [vmem:[%s224 + $0x48] sm:$0xff] %vm265, %v3474
      %3507 = vst.msk [vmem:[%s224 + $0x50] sm:$0xff] %vm265, %v3475
      %3508 = vst.msk [vmem:[%s224 + $0x58] sm:$0xff] %vm265, %v3476
      %3509 = vst.msk [vmem:[%s224 + $0x60] sm:$0xff] %vm265, %v3477
      %3510 = vst.msk [vmem:[%s224 + $0x68] sm:$0xff] %vm265, %v3478
      %3511 = vst.msk [vmem:[%s224 + $0x70] sm:$0xff] %vm265, %v3479
      %3512 = vst.msk [vmem:[%s224 + $0x78] sm:$0xff] %vm265, %v3480
      %3513 = vst.msk [vmem:[%s224 + $0x80] sm:$0xff] %vm265, %v3481
      %3514 = vst.msk [vmem:[%s224 + $0x88] sm:$0xff] %vm265, %v3482
      %3515 = vst.msk [vmem:[%s224 + $0x90] sm:$0xff] %vm265, %v3483
      %3516 = vst.msk [vmem:[%s224 + $0x98] sm:$0xff] %vm265, %v3484
      %3517 = vst.msk [vmem:[%s224 + $0xa0] sm:$0xff] %vm265, %v3485
      %3518 = vst.msk [vmem:[%s224 + $0xa8] sm:$0xff] %vm265, %v3486
      %3519 = vst.msk [vmem:[%s224 + $0xb0] sm:$0xff] %vm265, %v3487
      %3520 = vst.msk [vmem:[%s224 + $0xb8] sm:$0xff] %vm265, %v3488
      %3521 = vst.msk [vmem:[%s224 + $0xc0] sm:$0xff] %vm265, %v3489
      %3522 = vst.msk [vmem:[%s224 + $0xc8] sm:$0xff] %vm265, %v3490
      %3523 = vst.msk [vmem:[%s224 + $0xd0] sm:$0xff] %vm265, %v3491
      %3524 = vst.msk [vmem:[%s224 + $0xd8] sm:$0xff] %vm265, %v3492
      %3525 = vst.msk [vmem:[%s224 + $0xe0] sm:$0xff] %vm265, %v3493
      %3526 = vst.msk [vmem:[%s224 + $0xe8] sm:$0xff] %vm265, %v3494
      %3527 = vst.msk [vmem:[%s224 + $0xf0] sm:$0xff] %vm265, %v3495
      %3528 = vst.msk [vmem:[%s224 + $0xf8] sm:$0xff] %vm265, %v3496
      %p3529 = scmp.lt.s32.totalorder %s16, 1
      %s3530 = scalar_select %p3529, %s16, 1
      %s3531 = smul.addr %s3530, 32
      %s3532 = smul.addr %s3531, 8
      %s3533 = scalar_lea.vmem %s5, %s3532
      // Predicated region
      $region41: #{double_conv_forward.1} parent=39 // pred_check
        %p3534 = pneg %p144
      $region42: #{double_conv_forward.1} parent=39 // pred_check_branch
        %3536 = sbr.rel (%p3534) target = $region44
      $region43: #{double_conv_forward.1} parent=39 // pred_region
        _
      $region44: #{double_conv_forward.1} parent=39 // pred_fallthru
        _
    $region40: #{double_conv_forward.1} parent=5 // pred_fallthru
      _
    %p3537 = scmp.le.s32.totalorder 2, %s11
    // Predicated region
    $region45: #{double_conv_forward.1} parent=5 // pred_check
      %p3538 = pneg %p3537
    $region46: #{double_conv_forward.1} parent=5 // pred_check_branch
      %3540 = sbr.rel (%p3538) target = $region48
    $region47: #{double_conv_forward.1} parent=5 // pred_region
      %s3541 = ssub.s32 %s11, 2
      // Predicated region
      $region49: #{double_conv_forward.1} parent=47 // pred_check
        %p3542 = pneg %p150
      $region50: #{double_conv_forward.1} parent=47 // pred_check_branch
        %3544 = sbr.rel (%p3542) target = $region52
      $region51: #{double_conv_forward.1} parent=47 // pred_region
        %p3545 = scmp.lt.s32.totalorder %s17, 1
        %s3546 = scalar_select %p3545, %s17, 1
        %s3547 = smul.addr %s3546, 32
        %s3548 = smul.addr %s3547, 8
        %s3549 = scalar_lea.vmem %s5, %s3548
      $region52: #{double_conv_forward.1} parent=47 // pred_fallthru
        _
    $region48: #{double_conv_forward.1} parent=5 // pred_fallthru
      _
  $region6: #{double_conv_forward.1} parent=0 // loop_footer
    %s15 = sadd.s32 1, %s11
  $region7: #{double_conv_forward.1} parent=0 // loop_footer_branch
    %10 = sbr.rel target = $region3
  $region8: #{double_conv_forward.1} parent=0 // loop_exit
    _

</llo_original>
